<compile_context>
chip_gen: v7x
topology: tpu7x:2x2x1
jax: 0.10.0
libtpu: 0.0.40
codegen_flags: <defaults>
</compile_context>

<pallas_src>
import numpy as np
import jax
import jax.numpy as jnp
from jax.experimental import pallas as pl
from jax.experimental.pallas import tpu as pltpu

_PRIMES = (1, 2654435761, 805459861)
_F2_18 = 262144.0  # 2 ** 18


def _hash_encoding_kernel(res_ref, x_ref, table_ref, out_ref):
    table_size = table_ref.shape[2]
    level = pl.program_id(0)
    res = res_ref[level]                         # int32 scalar (SMEM scalar prefetch)
    res_f = res.astype(jnp.float32)

    x = jnp.clip(x_ref[...], -1.0, 1.0)          # [3, T]  lane-major points
    coords = x * res_f
    cfl = jnp.floor(coords)
    cf = cfl.astype(jnp.int32)                   # [3, T], values in [-res, res]
    local = coords - cfl                         # [3, T]  fractional part

    def wrap(c):
        # c % res for c in [-res, 2*res): two compare+select corrections (no int mod).
        c = jnp.where(c < 0, c + res, c)
        return jnp.where(c >= res, c - res, c)

    def hash_term(c):
        # exact torch math: corner.float()/res -> ((v + 1) * 0.5) * 2**18 -> trunc
        c01 = (c.astype(jnp.float32) / res_f + 1.0) * 0.5
        return (c01 * _F2_18).astype(jnp.int32).astype(jnp.uint32)   # [3, T]

    # Hoisted per-(dim, offset) terms: 6 combos instead of 24.
    ci0 = hash_term(wrap(cf))                    # offset = 0
    ci1 = hash_term(wrap(cf + 1))                # offset = 1
    hc = [[ci0[d:d + 1, :] * jnp.uint32(_PRIMES[d]),
           ci1[d:d + 1, :] * jnp.uint32(_PRIMES[d])] for d in range(3)]    # [1, T]
    wf = [[1.0 - local[d:d + 1, :], local[d:d + 1, :]] for d in range(3)]  # [1, T]

    tn = x.shape[1]
    row_ids = jax.lax.broadcasted_iota(jnp.int32, (table_size, tn), 0)
    mask = jnp.uint32(table_size - 1)

    # Fuse the 8 corners into a single weighted one-hot, then one MXU matmul.
    acc1h = jnp.zeros((table_size, tn), jnp.float32)
    for j in range(8):
        # torch.meshgrid(indexing='ij') corner order: (0,0,0),(0,0,1),...,(1,1,1)
        b = ((j >> 2) & 1, (j >> 1) & 1, j & 1)
        h = ((hc[0][b[0]] + hc[1][b[1]] + hc[2][b[2]]) & mask).astype(jnp.int32)
        w = wf[0][b[0]] * wf[1][b[1]] * wf[2][b[2]]                  # [1, T]
        acc1h = acc1h + jnp.where(row_ids == h, w, 0.0)

    # [F, table_size] x [table_size, T] -> [F, T]   (lane-dense output tile)
    out_ref[0] = jnp.dot(table_ref[0], acc1h, preferred_element_type=jnp.float32)


def hash_encoding_pallas(x, tables, resolutions, *, tile_n=256):
    n, three = x.shape
    assert three == 3
    n_levels, table_size, n_features = tables.shape
    assert n % tile_n == 0

    x_t = x.T                                    # [3, N]   points along lanes
    tables_t = jnp.transpose(tables, (0, 2, 1))  # [L, F, table_size]

    out = pl.pallas_call(
        _hash_encoding_kernel,
        out_shape=jax.ShapeDtypeStruct((n_levels, n_features, n), jnp.float32),
        grid_spec=pltpu.PrefetchScalarGridSpec(
            num_scalar_prefetch=1,                      # resolutions -> SMEM
            grid=(n_levels, n // tile_n),
            in_specs=[
                pl.BlockSpec((3, tile_n), lambda l, i, res: (0, i)),
                pl.BlockSpec((1, n_features, table_size),
                             lambda l, i, res: (l, 0, 0)),
            ],
            out_specs=pl.BlockSpec((1, n_features, tile_n),
                                   lambda l, i, res: (l, 0, i)),
        ),
        compiler_params=pltpu.CompilerParams(
            dimension_semantics=("parallel", "parallel"),
            vmem_limit_bytes=32 * 1024 * 1024),
    )(resolutions, x_t, tables_t)
    # [L, F, N] -> [N, L, F] -> [N, L*F], same ordering as torch.cat(outputs, -1)
    return jnp.transpose(out, (2, 0, 1)).reshape(n, n_levels * n_features)


def hash_encoding_reference(x, tables, resolutions_py, hash_size):
    """Pure-JAX reference mirroring the PyTorch forward exactly."""
    table_size = 2 ** hash_size
    offsets = np.array([[(j >> 2) & 1, (j >> 1) & 1, j & 1] for j in range(8)],
                       dtype=np.int32)                                  # [8, 3]
    primes = jnp.array(_PRIMES, dtype=jnp.uint32)
    x = jnp.clip(x.astype(jnp.float32), -1.0, 1.0)
    outs = []
    for i, res in enumerate(resolutions_py):
        res_f = jnp.float32(res)
        coords = x * res_f
        cfl = jnp.floor(coords)
        cf = cfl.astype(jnp.int32)
        local = coords - cfl
        corner = (cf[:, None, :] + offsets[None]) % res                 # [N, 8, 3]
        c01 = (corner.astype(jnp.float32) / res_f + 1.0) * 0.5
        ci = (c01 * _F2_18).astype(jnp.int32).astype(jnp.uint32)
        h = (ci * primes[None, None, :]).sum(-1) & jnp.uint32(table_size - 1)
        feats = tables[i][h.astype(jnp.int32)]                          # [N, 8, F]
        w = jnp.where(offsets[None] == 0,
                      1.0 - local[:, None, :], local[:, None, :]).prod(-1)
        outs.append((w[..., None] * feats).sum(1))
    return jnp.concatenate(outs, -1)


if __name__ == "__main__":
    # Small, module-consistent hyperparameters (hash_size shrunk for the test).
    n_levels, n_features = 8, 2
    min_res, max_res = 16, 128
    hash_size = 9
    table_size = 2 ** hash_size
    N = 512
    tile_n = 256

    resolutions_py = [int(min_res * (max_res / min_res) ** (i / (n_levels - 1)))
                      for i in range(n_levels)]
    resolutions = jnp.array(resolutions_py, dtype=jnp.int32)

    key = jax.random.PRNGKey(0)
    k_tab, k_x = jax.random.split(key)
    # nn.init.uniform_(table.weight, -1e-4, 1e-4), stacked across levels.
    tables = jax.random.uniform(k_tab, (n_levels, table_size, n_features),
                                dtype=jnp.float32, minval=-1e-4, maxval=1e-4)
    x = jax.random.uniform(k_x, (N, 3), dtype=jnp.float32,
                           minval=-1.0, maxval=1.0)

    out = jax.block_until_ready(
        hash_encoding_pallas(x, tables, resolutions, tile_n=tile_n))
    assert out.shape == (N, n_levels * n_features)

    ref = jax.block_until_ready(
        hash_encoding_reference(x, tables, resolutions_py, hash_size))
    diff = np.abs(np.asarray(out) - np.asarray(ref))
    # Hash indices are bit-exact; remaining differences come only from MXU
    # accumulation order / precision of the weighted-one-hot matmul (outputs ~1e-4,
    # a wrong gather would show up as ~1e-4 errors).
    assert float(np.max(diff)) < 1e-5, f"max diff {float(np.max(diff)):.3e}"
    match_frac = float(np.mean(diff < 2e-6))
    assert match_frac > 0.97, f"mismatch fraction {1.0 - match_frac:.4f}"
    print("KERNEL_OK")
</pallas_src>

<mosaic_0001>
module attributes {stable_mosaic.version = 11 : i64} {
  func.func @_hash_encoding_kernel(%arg0: i32, %arg1: i32, %arg2: memref<8xi32, #tpu.memory_space<smem>>, %arg3: memref<3x256xf32, #tpu.memory_space<vmem>>, %arg4: memref<1x2x512xf32, #tpu.memory_space<vmem>>, %arg5: memref<1x2x256xf32, #tpu.memory_space<vmem>>) attributes {dimension_semantics = [#tpu.dimension_semantics<parallel>, #tpu.dimension_semantics<parallel>], iteration_bounds = array<i64: 8, 2>, scalar_prefetch = 1 : i64, scratch_operands = 0 : i64, tpu.core_type = #tpu.core_type<tc>, window_params = [{transform_indices = @transform_0, window_bounds = array<i64: 3, 256>}, {transform_indices = @transform_1, window_bounds = array<i64: 1, 2, 512>}, {transform_indices = @transform_2, window_bounds = array<i64: 1, 2, 256>}]} {
    %0 = arith.index_cast %arg0 : i32 to index
    %1 = memref.load %arg2[%0] : memref<8xi32, #tpu.memory_space<smem>>
    %2 = arith.sitofp %1 : i32 to f32
    %c0 = arith.constant 0 : index
    %c0_0 = arith.constant 0 : index
    %3 = vector.load %arg3[%c0, %c0_0] : memref<3x256xf32, #tpu.memory_space<vmem>>, vector<3x256xf32>
    %cst = arith.constant -1.000000e+00 : f32
    %cst_1 = arith.constant 1.000000e+00 : f32
    %4 = vector.broadcast %cst : f32 to vector<3x256xf32>
    %5 = arith.maximumf %4, %3 : vector<3x256xf32>
    %6 = vector.broadcast %cst_1 : f32 to vector<3x256xf32>
    %7 = arith.minimumf %6, %5 : vector<3x256xf32>
    %8 = vector.broadcast %2 : f32 to vector<3x256xf32>
    %9 = arith.mulf %7, %8 : vector<3x256xf32>
    %10 = math.floor %9 : vector<3x256xf32>
    %11 = arith.fptosi %10 : vector<3x256xf32> to vector<3x256xi32>
    %12 = arith.subf %9, %10 : vector<3x256xf32>
    %c0_i32 = arith.constant 0 : i32
    %13 = vector.broadcast %c0_i32 : i32 to vector<3x256xi32>
    %14 = arith.cmpi slt, %11, %13 : vector<3x256xi32>
    %15 = vector.broadcast %1 : i32 to vector<3x256xi32>
    %16 = arith.addi %11, %15 : vector<3x256xi32>
    %17 = arith.select %14, %16, %11 : vector<3x256xi1>, vector<3x256xi32>
    %18 = vector.broadcast %1 : i32 to vector<3x256xi32>
    %19 = arith.cmpi sge, %17, %18 : vector<3x256xi32>
    %20 = vector.broadcast %1 : i32 to vector<3x256xi32>
    %21 = arith.subi %17, %20 : vector<3x256xi32>
    %22 = arith.select %19, %21, %17 : vector<3x256xi1>, vector<3x256xi32>
    %23 = arith.sitofp %22 : vector<3x256xi32> to vector<3x256xf32>
    %24 = vector.broadcast %2 : f32 to vector<3x256xf32>
    %25 = arith.divf %23, %24 : vector<3x256xf32>
    %cst_2 = arith.constant 1.000000e+00 : f32
    %26 = vector.broadcast %cst_2 : f32 to vector<3x256xf32>
    %27 = arith.addf %25, %26 : vector<3x256xf32>
    %cst_3 = arith.constant 5.000000e-01 : f32
    %28 = vector.broadcast %cst_3 : f32 to vector<3x256xf32>
    %29 = arith.mulf %27, %28 : vector<3x256xf32>
    %cst_4 = arith.constant 2.621440e+05 : f32
    %30 = vector.broadcast %cst_4 : f32 to vector<3x256xf32>
    %31 = arith.mulf %29, %30 : vector<3x256xf32>
    %32 = arith.fptosi %31 : vector<3x256xf32> to vector<3x256xi32>
    %c1_i32 = arith.constant 1 : i32
    %33 = vector.broadcast %c1_i32 : i32 to vector<3x256xi32>
    %34 = arith.addi %11, %33 : vector<3x256xi32>
    %c0_i32_5 = arith.constant 0 : i32
    %35 = vector.broadcast %c0_i32_5 : i32 to vector<3x256xi32>
    %36 = arith.cmpi slt, %34, %35 : vector<3x256xi32>
    %37 = vector.broadcast %1 : i32 to vector<3x256xi32>
    %38 = arith.addi %34, %37 : vector<3x256xi32>
    %39 = arith.select %36, %38, %34 : vector<3x256xi1>, vector<3x256xi32>
    %40 = vector.broadcast %1 : i32 to vector<3x256xi32>
    %41 = arith.cmpi sge, %39, %40 : vector<3x256xi32>
    %42 = vector.broadcast %1 : i32 to vector<3x256xi32>
    %43 = arith.subi %39, %42 : vector<3x256xi32>
    %44 = arith.select %41, %43, %39 : vector<3x256xi1>, vector<3x256xi32>
    %45 = arith.sitofp %44 : vector<3x256xi32> to vector<3x256xf32>
    %46 = vector.broadcast %2 : f32 to vector<3x256xf32>
    %47 = arith.divf %45, %46 : vector<3x256xf32>
    %cst_6 = arith.constant 1.000000e+00 : f32
    %48 = vector.broadcast %cst_6 : f32 to vector<3x256xf32>
    %49 = arith.addf %47, %48 : vector<3x256xf32>
    %cst_7 = arith.constant 5.000000e-01 : f32
    %50 = vector.broadcast %cst_7 : f32 to vector<3x256xf32>
    %51 = arith.mulf %49, %50 : vector<3x256xf32>
    %cst_8 = arith.constant 2.621440e+05 : f32
    %52 = vector.broadcast %cst_8 : f32 to vector<3x256xf32>
    %53 = arith.mulf %51, %52 : vector<3x256xf32>
    %54 = arith.fptosi %53 : vector<3x256xf32> to vector<3x256xi32>
    %55 = vector.extract_strided_slice %32 {offsets = [0, 0], sizes = [1, 256], strides = [1, 1]} : vector<3x256xi32> to vector<1x256xi32>
    %c1_i32_9 = arith.constant 1 : i32
    %56 = vector.broadcast %c1_i32_9 : i32 to vector<1x256xi32>
    %57 = arith.muli %55, %56 : vector<1x256xi32>
    %58 = vector.extract_strided_slice %54 {offsets = [0, 0], sizes = [1, 256], strides = [1, 1]} : vector<3x256xi32> to vector<1x256xi32>
    %c1_i32_10 = arith.constant 1 : i32
    %59 = vector.broadcast %c1_i32_10 : i32 to vector<1x256xi32>
    %60 = arith.muli %58, %59 : vector<1x256xi32>
    %61 = vector.extract_strided_slice %32 {offsets = [1, 0], sizes = [1, 256], strides = [1, 1]} : vector<3x256xi32> to vector<1x256xi32>
    %c-1640531535_i32 = arith.constant -1640531535 : i32
    %62 = vector.broadcast %c-1640531535_i32 : i32 to vector<1x256xi32>
    %63 = arith.muli %61, %62 : vector<1x256xi32>
    %64 = vector.extract_strided_slice %54 {offsets = [1, 0], sizes = [1, 256], strides = [1, 1]} : vector<3x256xi32> to vector<1x256xi32>
    %c-1640531535_i32_11 = arith.constant -1640531535 : i32
    %65 = vector.broadcast %c-1640531535_i32_11 : i32 to vector<1x256xi32>
    %66 = arith.muli %64, %65 : vector<1x256xi32>
    %67 = vector.extract_strided_slice %32 {offsets = [2, 0], sizes = [1, 256], strides = [1, 1]} : vector<3x256xi32> to vector<1x256xi32>
    %c805459861_i32 = arith.constant 805459861 : i32
    %68 = vector.broadcast %c805459861_i32 : i32 to vector<1x256xi32>
    %69 = arith.muli %67, %68 : vector<1x256xi32>
    %70 = vector.extract_strided_slice %54 {offsets = [2, 0], sizes = [1, 256], strides = [1, 1]} : vector<3x256xi32> to vector<1x256xi32>
    %c805459861_i32_12 = arith.constant 805459861 : i32
    %71 = vector.broadcast %c805459861_i32_12 : i32 to vector<1x256xi32>
    %72 = arith.muli %70, %71 : vector<1x256xi32>
    %73 = vector.extract_strided_slice %12 {offsets = [0, 0], sizes = [1, 256], strides = [1, 1]} : vector<3x256xf32> to vector<1x256xf32>
    %cst_13 = arith.constant 1.000000e+00 : f32
    %74 = vector.broadcast %cst_13 : f32 to vector<1x256xf32>
    %75 = arith.subf %74, %73 : vector<1x256xf32>
    %76 = vector.extract_strided_slice %12 {offsets = [0, 0], sizes = [1, 256], strides = [1, 1]} : vector<3x256xf32> to vector<1x256xf32>
    %77 = vector.extract_strided_slice %12 {offsets = [1, 0], sizes = [1, 256], strides = [1, 1]} : vector<3x256xf32> to vector<1x256xf32>
    %cst_14 = arith.constant 1.000000e+00 : f32
    %78 = vector.broadcast %cst_14 : f32 to vector<1x256xf32>
    %79 = arith.subf %78, %77 : vector<1x256xf32>
    %80 = vector.extract_strided_slice %12 {offsets = [1, 0], sizes = [1, 256], strides = [1, 1]} : vector<3x256xf32> to vector<1x256xf32>
    %81 = vector.extract_strided_slice %12 {offsets = [2, 0], sizes = [1, 256], strides = [1, 1]} : vector<3x256xf32> to vector<1x256xf32>
    %cst_15 = arith.constant 1.000000e+00 : f32
    %82 = vector.broadcast %cst_15 : f32 to vector<1x256xf32>
    %83 = arith.subf %82, %81 : vector<1x256xf32>
    %84 = vector.extract_strided_slice %12 {offsets = [2, 0], sizes = [1, 256], strides = [1, 1]} : vector<3x256xf32> to vector<1x256xf32>
    %85 = tpu.iota {dimensions = array<i32: 0>} : vector<512x256xi32>
    %cst_16 = arith.constant 0.000000e+00 : f32
    %86 = vector.broadcast %cst_16 : f32 to vector<512x256xf32>
    %87 = arith.addi %57, %63 : vector<1x256xi32>
    %88 = arith.addi %87, %69 : vector<1x256xi32>
    %c511_i32 = arith.constant 511 : i32
    %89 = vector.broadcast %c511_i32 : i32 to vector<1x256xi32>
    %90 = arith.andi %88, %89 : vector<1x256xi32>
    %91 = arith.mulf %75, %79 : vector<1x256xf32>
    %92 = arith.mulf %91, %83 : vector<1x256xf32>
    %93 = vector.broadcast %90 : vector<1x256xi32> to vector<512x256xi32>
    %94 = arith.cmpi eq, %85, %93 : vector<512x256xi32>
    %cst_17 = arith.constant 0.000000e+00 : f32
    %95 = vector.shape_cast %92 : vector<1x256xf32> to vector<1x256xf32>
    %96 = vector.broadcast %95 : vector<1x256xf32> to vector<512x256xf32>
    %97 = vector.broadcast %cst_17 : f32 to vector<512x256xf32>
    %98 = arith.select %94, %96, %97 : vector<512x256xi1>, vector<512x256xf32>
    %99 = arith.addf %86, %98 : vector<512x256xf32>
    %100 = arith.addi %57, %63 : vector<1x256xi32>
    %101 = arith.addi %100, %72 : vector<1x256xi32>
    %c511_i32_18 = arith.constant 511 : i32
    %102 = vector.broadcast %c511_i32_18 : i32 to vector<1x256xi32>
    %103 = arith.andi %101, %102 : vector<1x256xi32>
    %104 = arith.mulf %75, %79 : vector<1x256xf32>
    %105 = arith.mulf %104, %84 : vector<1x256xf32>
    %106 = vector.broadcast %103 : vector<1x256xi32> to vector<512x256xi32>
    %107 = arith.cmpi eq, %85, %106 : vector<512x256xi32>
    %cst_19 = arith.constant 0.000000e+00 : f32
    %108 = vector.shape_cast %105 : vector<1x256xf32> to vector<1x256xf32>
    %109 = vector.broadcast %108 : vector<1x256xf32> to vector<512x256xf32>
    %110 = vector.broadcast %cst_19 : f32 to vector<512x256xf32>
    %111 = arith.select %107, %109, %110 : vector<512x256xi1>, vector<512x256xf32>
    %112 = arith.addf %99, %111 : vector<512x256xf32>
    %113 = arith.addi %57, %66 : vector<1x256xi32>
    %114 = arith.addi %113, %69 : vector<1x256xi32>
    %c511_i32_20 = arith.constant 511 : i32
    %115 = vector.broadcast %c511_i32_20 : i32 to vector<1x256xi32>
    %116 = arith.andi %114, %115 : vector<1x256xi32>
    %117 = arith.mulf %75, %80 : vector<1x256xf32>
    %118 = arith.mulf %117, %83 : vector<1x256xf32>
    %119 = vector.broadcast %116 : vector<1x256xi32> to vector<512x256xi32>
    %120 = arith.cmpi eq, %85, %119 : vector<512x256xi32>
    %cst_21 = arith.constant 0.000000e+00 : f32
    %121 = vector.shape_cast %118 : vector<1x256xf32> to vector<1x256xf32>
    %122 = vector.broadcast %121 : vector<1x256xf32> to vector<512x256xf32>
    %123 = vector.broadcast %cst_21 : f32 to vector<512x256xf32>
    %124 = arith.select %120, %122, %123 : vector<512x256xi1>, vector<512x256xf32>
    %125 = arith.addf %112, %124 : vector<512x256xf32>
    %126 = arith.addi %57, %66 : vector<1x256xi32>
    %127 = arith.addi %126, %72 : vector<1x256xi32>
    %c511_i32_22 = arith.constant 511 : i32
    %128 = vector.broadcast %c511_i32_22 : i32 to vector<1x256xi32>
    %129 = arith.andi %127, %128 : vector<1x256xi32>
    %130 = arith.mulf %75, %80 : vector<1x256xf32>
    %131 = arith.mulf %130, %84 : vector<1x256xf32>
    %132 = vector.broadcast %129 : vector<1x256xi32> to vector<512x256xi32>
    %133 = arith.cmpi eq, %85, %132 : vector<512x256xi32>
    %cst_23 = arith.constant 0.000000e+00 : f32
    %134 = vector.shape_cast %131 : vector<1x256xf32> to vector<1x256xf32>
    %135 = vector.broadcast %134 : vector<1x256xf32> to vector<512x256xf32>
    %136 = vector.broadcast %cst_23 : f32 to vector<512x256xf32>
    %137 = arith.select %133, %135, %136 : vector<512x256xi1>, vector<512x256xf32>
    %138 = arith.addf %125, %137 : vector<512x256xf32>
    %139 = arith.addi %60, %63 : vector<1x256xi32>
    %140 = arith.addi %139, %69 : vector<1x256xi32>
    %c511_i32_24 = arith.constant 511 : i32
    %141 = vector.broadcast %c511_i32_24 : i32 to vector<1x256xi32>
    %142 = arith.andi %140, %141 : vector<1x256xi32>
    %143 = arith.mulf %76, %79 : vector<1x256xf32>
    %144 = arith.mulf %143, %83 : vector<1x256xf32>
    %145 = vector.broadcast %142 : vector<1x256xi32> to vector<512x256xi32>
    %146 = arith.cmpi eq, %85, %145 : vector<512x256xi32>
    %cst_25 = arith.constant 0.000000e+00 : f32
    %147 = vector.shape_cast %144 : vector<1x256xf32> to vector<1x256xf32>
    %148 = vector.broadcast %147 : vector<1x256xf32> to vector<512x256xf32>
    %149 = vector.broadcast %cst_25 : f32 to vector<512x256xf32>
    %150 = arith.select %146, %148, %149 : vector<512x256xi1>, vector<512x256xf32>
    %151 = arith.addf %138, %150 : vector<512x256xf32>
    %152 = arith.addi %60, %63 : vector<1x256xi32>
    %153 = arith.addi %152, %72 : vector<1x256xi32>
    %c511_i32_26 = arith.constant 511 : i32
    %154 = vector.broadcast %c511_i32_26 : i32 to vector<1x256xi32>
    %155 = arith.andi %153, %154 : vector<1x256xi32>
    %156 = arith.mulf %76, %79 : vector<1x256xf32>
    %157 = arith.mulf %156, %84 : vector<1x256xf32>
    %158 = vector.broadcast %155 : vector<1x256xi32> to vector<512x256xi32>
    %159 = arith.cmpi eq, %85, %158 : vector<512x256xi32>
    %cst_27 = arith.constant 0.000000e+00 : f32
    %160 = vector.shape_cast %157 : vector<1x256xf32> to vector<1x256xf32>
    %161 = vector.broadcast %160 : vector<1x256xf32> to vector<512x256xf32>
    %162 = vector.broadcast %cst_27 : f32 to vector<512x256xf32>
    %163 = arith.select %159, %161, %162 : vector<512x256xi1>, vector<512x256xf32>
    %164 = arith.addf %151, %163 : vector<512x256xf32>
    %165 = arith.addi %60, %66 : vector<1x256xi32>
    %166 = arith.addi %165, %69 : vector<1x256xi32>
    %c511_i32_28 = arith.constant 511 : i32
    %167 = vector.broadcast %c511_i32_28 : i32 to vector<1x256xi32>
    %168 = arith.andi %166, %167 : vector<1x256xi32>
    %169 = arith.mulf %76, %80 : vector<1x256xf32>
    %170 = arith.mulf %169, %83 : vector<1x256xf32>
    %171 = vector.broadcast %168 : vector<1x256xi32> to vector<512x256xi32>
    %172 = arith.cmpi eq, %85, %171 : vector<512x256xi32>
    %cst_29 = arith.constant 0.000000e+00 : f32
    %173 = vector.shape_cast %170 : vector<1x256xf32> to vector<1x256xf32>
    %174 = vector.broadcast %173 : vector<1x256xf32> to vector<512x256xf32>
    %175 = vector.broadcast %cst_29 : f32 to vector<512x256xf32>
    %176 = arith.select %172, %174, %175 : vector<512x256xi1>, vector<512x256xf32>
    %177 = arith.addf %164, %176 : vector<512x256xf32>
    %178 = arith.addi %60, %66 : vector<1x256xi32>
    %179 = arith.addi %178, %72 : vector<1x256xi32>
    %c511_i32_30 = arith.constant 511 : i32
    %180 = vector.broadcast %c511_i32_30 : i32 to vector<1x256xi32>
    %181 = arith.andi %179, %180 : vector<1x256xi32>
    %182 = arith.mulf %76, %80 : vector<1x256xf32>
    %183 = arith.mulf %182, %84 : vector<1x256xf32>
    %184 = vector.broadcast %181 : vector<1x256xi32> to vector<512x256xi32>
    %185 = arith.cmpi eq, %85, %184 : vector<512x256xi32>
    %cst_31 = arith.constant 0.000000e+00 : f32
    %186 = vector.shape_cast %183 : vector<1x256xf32> to vector<1x256xf32>
    %187 = vector.broadcast %186 : vector<1x256xf32> to vector<512x256xf32>
    %188 = vector.broadcast %cst_31 : f32 to vector<512x256xf32>
    %189 = arith.select %185, %187, %188 : vector<512x256xi1>, vector<512x256xf32>
    %190 = arith.addf %177, %189 : vector<512x256xf32>
    %c0_32 = arith.constant 0 : index
    %c0_33 = arith.constant 0 : index
    %c0_34 = arith.constant 0 : index
    %191 = vector.load %arg4[%c0_32, %c0_33, %c0_34] : memref<1x2x512xf32, #tpu.memory_space<vmem>>, vector<1x2x512xf32>
    %192 = vector.shape_cast %191 : vector<1x2x512xf32> to vector<2x512xf32>
    %cst_35 = arith.constant dense<0.000000e+00> : vector<2x256xf32>
    %193 = tpu.matmul %192, %190, %cst_35 {dimension_numbers = #tpu.dot_dimension_numbers<[1], [0], [0], [1], [0, 0, 1, 1], [], []>} : vector<2x512xf32>, vector<512x256xf32>, vector<2x256xf32> -> vector<2x256xf32>
    %c0_36 = arith.constant 0 : index
    %c0_37 = arith.constant 0 : index
    %c0_38 = arith.constant 0 : index
    %194 = vector.load %arg5[%c0_36, %c0_37, %c0_38] : memref<1x2x256xf32, #tpu.memory_space<vmem>>, vector<1x2x256xf32>
    %195 = vector.shape_cast %194 : vector<1x2x256xf32> to vector<2x256xf32>
    %196 = vector.shape_cast %193 : vector<2x256xf32> to vector<1x2x256xf32>
    tpu.vector_store %arg5[%c0_36, %c0_37, %c0_38], %196 {strides = array<i32>} : memref<1x2x256xf32, #tpu.memory_space<vmem>>, vector<1x2x256xf32>,
    return
  }
  func.func @transform_0(%arg0: i32, %arg1: i32, %arg2: memref<8xi32, #tpu.memory_space<smem>>) -> (i32, i32) {
    %c0_i32 = arith.constant 0 : i32
    %c0_i32_0 = arith.constant 0 : i32
    return %c0_i32, %arg1 : i32, i32
  }
  func.func @transform_1(%arg0: i32, %arg1: i32, %arg2: memref<8xi32, #tpu.memory_space<smem>>) -> (i32, i32, i32) {
    %c0_i32 = arith.constant 0 : i32
    %c0_i32_0 = arith.constant 0 : i32
    %c0_i32_1 = arith.constant 0 : i32
    return %arg0, %c0_i32, %c0_i32_0 : i32, i32, i32
  }
  func.func @transform_2(%arg0: i32, %arg1: i32, %arg2: memref<8xi32, #tpu.memory_space<smem>>) -> (i32, i32, i32) {
    %c0_i32 = arith.constant 0 : i32
    %c0_i32_0 = arith.constant 0 : i32
    return %arg0, %c0_i32, %arg1 : i32, i32, i32
  }
}

</mosaic_0001>

<llo_original>
// kernel: tpu_custom_call.1
$region0: #{tpu_custom_call.1}
  #allocation0 [shape = 'u32[]', space=smem, size = 0x4, offset = 0x4, fixed_abs, tag = 'smem constant byte address 0x4 - core index']
  #allocation1 [shape = 'u32[144,128]{1,0:T(1,128)}', space=vmem, size = 0x12000, scoped, tag = 'internal scratch']
  #allocation2 [shape = 's32[1]{0}', space=sflag, size = 0x4, scoped, tag = 'scoped memory for tpu_custom_call.1']
  #allocation3 [shape = 'u8[512]{0}', space=smem, size = 0x200, scoped, tag = 'prefetched SMEM operand 0']
  %s0 = inlined_call_operand.hbm [shape: s32[8], index: 0, kind: input, shape index: {}]
  %s1 = inlined_call_operand.hbm [shape: f32[3,512], index: 1, kind: input, shape index: {}]
  %s2 = inlined_call_operand.hbm [shape: f32[8,2,512], index: 2, kind: input, shape index: {}]
  %s3 = inlined_call_operand.hbm [shape: f32[8,2,512], index: 3, kind: output, shape index: {}]
  %s4 = sld [smem:[#allocation0]]
  $region49: #{tpu_custom_call.1} parent=0
    _
  %s6 = ssub.s32 1, %s4
  %s7 = scalar_select 0, %s6, %s4
  %9 = dma.hbm_to_smem %s0, 16, [#allocation3], [#allocation2]
  %10 = dma.done [#allocation2], 16
  %11 = sfence
  $region1: #{tpu_custom_call.1} parent=0
    #allocation4 [shape = 'u8[8192]{0}', space=vmem, size = 0x2000, scoped, tag = 'input window, operand 1']
    #allocation5 [shape = 's32[2]{0}', space=sflag, size = 0x8, scoped, tag = 'scoped memory for tpu_custom_call.1']
    #allocation6 [shape = 's32[2]{0}', space=sflag, size = 0x8, scoped, tag = 'scoped memory for tpu_custom_call.1']
    #allocation7 [shape = 'u8[8192]{0}', space=vmem, size = 0x2000, scoped, tag = 'input window, operand 2']
    #allocation8 [shape = 's32[2]{0}', space=sflag, size = 0x8, scoped, tag = 'scoped memory for tpu_custom_call.1']
    #allocation9 [shape = 'u8[4096]{0}', space=vmem, size = 0x1000, scoped, tag = 'output window, operand 0']
    %12 = vsyncpa [#allocation5], 0
    %s13 = scalar_lea.sflag [#allocation5], 1
    %14 = vsyncpa %s13, 0
    %15 = vsyncpa [#allocation8], 0
    %s16 = scalar_lea.sflag [#allocation8], 1
    %17 = vsyncpa %s16, 0
    %18 = vsyncpa [#allocation6], 0
    %s19 = scalar_lea.sflag [#allocation6], 1
    %20 = vsyncpa %s19, 0
    loop: start=0, step=1, limit=18
    $region2: #{tpu_custom_call.1} parent=1 // loop_pre_header
      _
    $region3: #{tpu_custom_call.1} parent=1 // loop_header
      %s22 = sphi 0, %s26
      %p23 = scmp.ge.s32.totalorder %s22, 18
      %s29 = sphi 0, %s41
      %s30 = sphi 0, %s37
      %s31 = sphi 0, %s29
      %s32 = sphi 0, %s30
      %s33 = sphi 0, %s31
      %s34 = sphi 0, %s32
      %s44 = sphi 0, %s46
      %s47 = sphi 0, %s44
      %s48 = sphi 0, %s47
      %s64 = sphi 0, %s48
      %s70 = sphi 0, %s72
      %s73 = sphi 0, %s70
      %s74 = sphi 0, %s73
      %s90 = sphi 0, %s74
      %s98 = sphi 0, %s100
      %s101 = sphi 0, %s98
      %s102 = sphi 0, %s101
      %s118 = sphi 0, %s102
    $region4: #{tpu_custom_call.1} parent=1 // loop_header_branch
      %25 = sbr.rel (%p23) target = $region8
    $region5: #{tpu_custom_call.1} parent=1 // loop_body
      %s27 = ssub.s32 %s22, 1
      %s28 = ssub.s32 %s22, 2
      %s35 = sadd.s32 1, %s30
      %p36 = scmp.ge.s32.totalorder %s35, 2
      %s37 = scalar_select %p36, 0, %s35
      %s38 = sadd.s32 1, %s29
      %s39 = scalar_select %p36, %s38, %s29
      %p40 = scmp.ge.s32.totalorder %s39, 8
      %s41 = scalar_select %p40, 0, %s39
      %s42 = ssub.s32 %s30, %s37
      %p43 = scmp.eq.s32.totalorder %s42, 0
      %s45 = sadd.s32 %s44, 1
      %s46 = scalar_select %p43, %s44, %s45
      %p49 = pneg %p43
      %p50 = scmp.eq.s32.totalorder %s22, 15
      %p51 = por %p49, %p50
      %p52 = scmp.ne.s32.totalorder %s44, %s47
      %p53 = scmp.eq.s32.totalorder %s22, 0
      %p54 = por %p52, %p53
      %p55 = scmp.ne.s32.totalorder %s44, %s47
      %p56 = scmp.eq.s32.totalorder %s27, 15
      %p57 = por %p55, %p56
      %p58 = scmp.ne.s32.totalorder %s47, %s48
      %p59 = scmp.eq.s32.totalorder %s27, 0
      %p60 = por %p58, %p59
      %p61 = scmp.ne.s32.totalorder %s47, %s48
      %p62 = scmp.eq.s32.totalorder %s28, 15
      %p63 = por %p61, %p62
      %p65 = scmp.ne.s32.totalorder %s48, %s64
      %p66 = scmp.eq.s32.totalorder %s28, 0
      %p67 = por %p65, %p66
      %s68 = ssub.s32 %s29, %s41
      %p69 = scmp.eq.s32.totalorder %s68, 0
      %s71 = sadd.s32 %s70, 1
      %s72 = scalar_select %p69, %s70, %s71
      %p75 = pneg %p69
      %p76 = scmp.eq.s32.totalorder %s22, 15
      %p77 = por %p75, %p76
      %p78 = scmp.ne.s32.totalorder %s70, %s73
      %p79 = scmp.eq.s32.totalorder %s22, 0
      %p80 = por %p78, %p79
      %p81 = scmp.ne.s32.totalorder %s70, %s73
      %p82 = scmp.eq.s32.totalorder %s27, 15
      %p83 = por %p81, %p82
      %p84 = scmp.ne.s32.totalorder %s73, %s74
      %p85 = scmp.eq.s32.totalorder %s27, 0
      %p86 = por %p84, %p85
      %p87 = scmp.ne.s32.totalorder %s73, %s74
      %p88 = scmp.eq.s32.totalorder %s28, 15
      %p89 = por %p87, %p88
      %p91 = scmp.ne.s32.totalorder %s74, %s90
      %p92 = scmp.eq.s32.totalorder %s28, 0
      %p93 = por %p91, %p92
      %s94 = ssub.s32 %s29, %s41
      %s95 = ssub.s32 %s30, %s37
      %s96 = sor.u32 %s94, %s95
      %p97 = scmp.eq.s32.totalorder %s96, 0
      %s99 = sadd.s32 %s98, 1
      %s100 = scalar_select %p97, %s98, %s99
      %p103 = pneg %p97
      %p104 = scmp.eq.s32.totalorder %s22, 15
      %p105 = por %p103, %p104
      %p106 = scmp.ne.s32.totalorder %s98, %s101
      %p107 = scmp.eq.s32.totalorder %s22, 0
      %p108 = por %p106, %p107
      %p109 = scmp.ne.s32.totalorder %s98, %s101
      %p110 = scmp.eq.s32.totalorder %s27, 15
      %p111 = por %p109, %p110
      %p112 = scmp.ne.s32.totalorder %s101, %s102
      %p113 = scmp.eq.s32.totalorder %s27, 0
      %p114 = por %p112, %p113
      %p115 = scmp.ne.s32.totalorder %s101, %s102
      %p116 = scmp.eq.s32.totalorder %s28, 15
      %p117 = por %p115, %p116
      %p119 = scmp.ne.s32.totalorder %s102, %s118
      %p120 = scmp.eq.s32.totalorder %s28, 0
      %p121 = por %p119, %p120
      %p122 = scmp.le.s32.totalorder 1, %s22
      %p123 = scmp.lt.s32.totalorder %s22, 17
      %p124 = pnand %p122, %p123
      %p125 = pneg %p124
      // Predicated region
      $region9: #{tpu_custom_call.1} parent=5 // pred_check
        _
      $region10: #{tpu_custom_call.1} parent=5 // pred_check_branch
        %127 = sbr.rel (%p124) target = $region12
      $region11: #{tpu_custom_call.1} parent=5 // pred_region
        %s128 = ssub.s32 %s22, 1
      $region12: #{tpu_custom_call.1} parent=5 // pred_fallthru
        _
      %p129 = scmp.lt.s32.totalorder %s22, 16
      // Predicated region
      $region13: #{tpu_custom_call.1} parent=5 // pred_check
        %p130 = pneg %p129
      $region14: #{tpu_custom_call.1} parent=5 // pred_check_branch
        %132 = sbr.rel (%p130) target = $region16
      $region15: #{tpu_custom_call.1} parent=5 // pred_region
        // Predicated region
        $region17: #{tpu_custom_call.1} parent=15 // pred_check
          %p133 = pneg %p54
        $region18: #{tpu_custom_call.1} parent=15 // pred_check_branch
          %135 = sbr.rel (%p133) target = $region20
        $region19: #{tpu_custom_call.1} parent=15 // pred_region
          %s136 = sand.u32 %s44, 1
          %s137 = scalar_lea.sflag [#allocation5], %s136
          %s138 = sand.u32 %s44, 1
          %s139 = smul.addr %s138, 8
          %s140 = scalar_lea.vmem [#allocation4], %s139
          %s141 = smul.u32 2, %s30
          %s143 = ssub.s32 128, 128
          %144 = vsyncadd %s137, %s143
          %s145 = smul.addr %s141, 64
          %s146 = scalar_lea.hbm %s1, %s145
          %s148 = sshll.u32 %s140, 4
          %s149 = int_to_ptr.vmem [resolvable:$true] %s148
          %151 = dma.hbm_to_vmem [thread:$0]  %s146, 128, %s149, %s137
        $region20: #{tpu_custom_call.1} parent=15 // pred_fallthru
          _
        // Predicated region
        $region21: #{tpu_custom_call.1} parent=15 // pred_check
          %p152 = pneg %p80
        $region22: #{tpu_custom_call.1} parent=15 // pred_check_branch
          %154 = sbr.rel (%p152) target = $region24
        $region23: #{tpu_custom_call.1} parent=15 // pred_region
          %s155 = sand.u32 %s70, 1
          %s156 = scalar_lea.sflag [#allocation8], %s155
          %s157 = sand.u32 %s70, 1
          %s158 = smul.addr %s157, 8
          %s159 = scalar_lea.vmem [#allocation7], %s158
          %s161 = ssub.s32 128, 128
          %162 = vsyncadd %s156, %s161
          %s163 = smul.addr %s29, 4
          %s164 = smul.addr %s163, 32
          %s165 = scalar_lea.hbm %s2, %s164
          %s167 = sshll.u32 %s159, 4
          %s168 = int_to_ptr.vmem [resolvable:$true] %s167
          %170 = dma.hbm_to_vmem [thread:$0]  %s165, 128, %s168, %s156
        $region24: #{tpu_custom_call.1} parent=15 // pred_fallthru
          _
      $region16: #{tpu_custom_call.1} parent=5 // pred_fallthru
        _
      %p171 = scmp.le.s32.totalorder 1, %s22
      %p172 = scmp.lt.s32.totalorder %s22, 17
      %p173 = pnand %p171, %p172
      %p174 = pneg %p173
      // Predicated region
      $region25: #{tpu_custom_call.1} parent=5 // pred_check
        _
      $region26: #{tpu_custom_call.1} parent=5 // pred_check_branch
        %176 = sbr.rel (%p173) target = $region28
      $region27: #{tpu_custom_call.1} parent=5 // pred_region
        %s177 = ssub.s32 %s22, 1
        %s178 = sand.u32 %s47, 1
        %s179 = scalar_lea.sflag [#allocation5], %s178
        %s180 = sand.u32 %s47, 1
        %s181 = smul.addr %s180, 8
        %s182 = scalar_lea.vmem [#allocation4], %s181
        // Predicated region
        $region29: #{tpu_custom_call.1} parent=27 // pred_check
          %p183 = pneg %p60
        $region30: #{tpu_custom_call.1} parent=27 // pred_check_branch
          %185 = sbr.rel (%p183) target = $region32
        $region31: #{tpu_custom_call.1} parent=27 // pred_region
          %186 = dma.done %s179, 128
        $region32: #{tpu_custom_call.1} parent=27 // pred_fallthru
          _
        %s187 = sand.u32 %s73, 1
        %s188 = scalar_lea.sflag [#allocation8], %s187
        %s189 = sand.u32 %s73, 1
        %s190 = smul.addr %s189, 8
        %s191 = scalar_lea.vmem [#allocation7], %s190
        // Predicated region
        $region33: #{tpu_custom_call.1} parent=27 // pred_check
          %p192 = pneg %p86
        $region34: #{tpu_custom_call.1} parent=27 // pred_check_branch
          %194 = sbr.rel (%p192) target = $region36
        $region35: #{tpu_custom_call.1} parent=27 // pred_region
          %195 = dma.done %s188, 128
        $region36: #{tpu_custom_call.1} parent=27 // pred_fallthru
          _
        %s196 = sand.u32 %s47, 1
        %s197 = scalar_lea.sflag [#allocation5], %s196
        %s198 = sand.u32 %s47, 1
        %s199 = smul.addr %s198, 8
        %s200 = scalar_lea.vmem [#allocation4], %s199
        %p201 = pneg %p60
        %p202 = pneg %p57
        %s203 = sand.u32 %s73, 1
        %s204 = scalar_lea.sflag [#allocation8], %s203
        %s205 = sand.u32 %s73, 1
        %s206 = smul.addr %s205, 8
        %s207 = scalar_lea.vmem [#allocation7], %s206
        %p208 = pneg %p86
        %p209 = pneg %p83
        %p210 = pneg %p114
        %p211 = pneg %p111
        %s212 = sand.u32 %s101, 1
        %s213 = scalar_lea.sflag [#allocation6], %s212
        %s214 = sand.u32 %s101, 1
        %s215 = smul.addr %s214, 4
        %s216 = scalar_lea.vmem [#allocation9], %s215
        %s217 = smul.u32 2, %s32
        %s218 = smul.u32 2, %s32
        %s219 = sld [smem:[#allocation3 + %s31]]
        %s220 = scvt.s32.f32 %s219
        %v221 = vld [vmem:[%s182] sm:$0x77]
        %v222 = vmax.f32 %v221, -1.0
        %v223 = vmin.f32 %v222, 1.0
        %v224 = vstv %s220
        %v225 = vmul.f32 %v223, %v224
        %v226 = vfloor.f32 %v225
        %v227 = vcvt.f32.s32.to.zero.pseudo %v226
        %v228 = vsub.f32 %v225, %v226
        %vm229 = vcmp.lt.s32.totalorder %v227, 0
        %v230 = vstv %s219
        %v231 = vadd.s32 %v227, %v230
        %v232 = vsel %vm229, %v231, %v227
        %vm233 = vcmp.ge.s32.totalorder %v232, %v230
        %v234 = vsub.s32 %v232, %v230
        %v235 = vsel %vm233, %v234, %v232
        %v236 = vcvt.s32.f32 %v235
        %v237 = vrcp.pop %v224
        %v238 = vmul.f32 %v236, %v237
        %v239 = vadd.f32 %v238, 1.0
        %v240 = vmul.f32 %v239, 0.5
        %v241 = vmul.f32 %v240, 262144.0
        %v242 = vcvt.f32.s32.to.zero.pseudo %v241
        %v243 = vadd.s32 %v227, 1
        %vm244 = vcmp.lt.s32.totalorder %v243, 0
        %v245 = vadd.s32 %v243, %v230
        %v246 = vsel %vm244, %v245, %v243
        %vm247 = vcmp.ge.s32.totalorder %v246, %v230
        %v248 = vsub.s32 %v246, %v230
        %v249 = vsel %vm247, %v248, %v246
        %v250 = vcvt.s32.f32 %v249
        %v251 = vmul.f32 %v250, %v237
        %v252 = vadd.f32 %v251, 1.0
        %v253 = vmul.f32 %v252, 0.5
        %v254 = vmul.f32 %v253, 262144.0
        %v255 = vcvt.f32.s32.to.zero.pseudo %v254
        %v256 = vmul.u32 %v242, 2654435761
        %v257 = vmul.u32 %v255, 2654435761
        %v258 = vmul.u32 %v242, 805459861
        %v259 = vmul.u32 %v255, 805459861
        %v260 = vsub.f32 1.0, %v228
        %v261 = vlaneseq
        %v262 = vshrl.u32 %v261, 7
        %v263 = vadd.s32 %v262, 8
        %v264 = vadd.s32 %v262, 16
        %v265 = vadd.s32 %v262, 24
        %v266 = vadd.s32 %v262, 32
        %v267 = vadd.s32 %v262, 40
        %v268 = vadd.s32 %v262, 48
        %v269 = vadd.s32 %v262, 56
        %v270 = vadd.s32 %v262, 64
        %v271 = vadd.s32 %v262, 72
        %v272 = vadd.s32 %v262, 80
        %v273 = vadd.s32 %v262, 88
        %v274 = vadd.s32 %v262, 96
        %v275 = vadd.s32 %v262, 104
        %v276 = vadd.s32 %v262, 112
        %v277 = vadd.s32 %v262, 120
        %v278 = vadd.s32 %v262, 128
        %v279 = vadd.s32 %v262, 136
        %v280 = vadd.s32 %v262, 144
        %v281 = vadd.s32 %v262, 152
        %v282 = vadd.s32 %v262, 160
        %v283 = vadd.s32 %v262, 168
        %v284 = vadd.s32 %v262, 176
        %v285 = vadd.s32 %v262, 184
        %v286 = vadd.s32 %v262, 192
        %v287 = vadd.s32 %v262, 200
        %v288 = vadd.s32 %v262, 208
        %v289 = vadd.s32 %v262, 216
        %v290 = vadd.s32 %v262, 224
        %v291 = vadd.s32 %v262, 232
        %v292 = vadd.s32 %v262, 240
        %v293 = vadd.s32 %v262, 248
        %v294 = vadd.s32 %v262, 256
        %v295 = vadd.s32 %v262, 264
        %v296 = vadd.s32 %v262, 272
        %v297 = vadd.s32 %v262, 280
        %v298 = vadd.s32 %v262, 288
        %v299 = vadd.s32 %v262, 296
        %v300 = vadd.s32 %v262, 304
        %v301 = vadd.s32 %v262, 312
        %v302 = vadd.s32 %v262, 320
        %v303 = vadd.s32 %v262, 328
        %v304 = vadd.s32 %v262, 336
        %v305 = vadd.s32 %v262, 344
        %v306 = vadd.s32 %v262, 352
        %v307 = vadd.s32 %v262, 360
        %v308 = vadd.s32 %v262, 368
        %v309 = vadd.s32 %v262, 376
        %v310 = vadd.s32 %v262, 384
        %v311 = vadd.s32 %v262, 392
        %v312 = vadd.s32 %v262, 400
        %v313 = vadd.s32 %v262, 408
        %v314 = vadd.s32 %v262, 416
        %v315 = vadd.s32 %v262, 424
        %v316 = vadd.s32 %v262, 432
        %v317 = vadd.s32 %v262, 440
        %v318 = vadd.s32 %v262, 448
        %v319 = vadd.s32 %v262, 456
        %v320 = vadd.s32 %v262, 464
        %v321 = vadd.s32 %v262, 472
        %v322 = vadd.s32 %v262, 480
        %v323 = vadd.s32 %v262, 488
        %v324 = vadd.s32 %v262, 496
        %v325 = vadd.s32 %v262, 504
        %v326 = vrot.slane %v256, 5
        %v327 = vrot.slane %v326, 4
        %v328 = vadd.s32 %v242, %v327
        %v329 = vrot.slane %v258, 6
        %v330 = vrot.slane %v329, 4
        %v331 = vadd.s32 %v328, %v330
        %v332 = vand.u32 %v331, 511
        %v334 = vrot.slane %v260, 5
        %v335 = vrot.slane %v334, 4
        %v337 = vmul.f32 %v260, %v335
        %v338 = vrot.slane %v260, 6
        %v339 = vrot.slane %v338, 4
        %v341 = vmul.f32 %v337, %v339
        %v342 = vlaneseq
        %v343 = vshrl.u32 %v342, 7
        %v344 = vsub.s32 0, %v343
        %v345 = vrot.slane %v332, %v344
        %v346 = vlaneseq
        %v347 = vshrl.u32 %v346, 7
        %v348 = vsub.s32 4, %v347
        %v349 = vrot.slane %v332, %v348
        %v350 = vlaneseq
        %v351 = vshrl.u32 %v350, 7
        %v352 = vsub.s32 0, %v351
        %v353 = vrot.slane %v345, %v352
        %v354 = vlaneseq
        %v355 = vshrl.u32 %v354, 7
        %v356 = vsub.s32 0, %v355
        %v357 = vrot.slane %v349, %v356
        %vm358 = vcmp.eq.s32.totalorder %v262, %v353
        %vm359 = vcmp.eq.s32.totalorder %v262, %v357
        %vm360 = vcmp.eq.s32.totalorder %v263, %v353
        %vm361 = vcmp.eq.s32.totalorder %v263, %v357
        %vm362 = vcmp.eq.s32.totalorder %v264, %v353
        %vm363 = vcmp.eq.s32.totalorder %v264, %v357
        %vm364 = vcmp.eq.s32.totalorder %v265, %v353
        %vm365 = vcmp.eq.s32.totalorder %v265, %v357
        %vm366 = vcmp.eq.s32.totalorder %v266, %v353
        %vm367 = vcmp.eq.s32.totalorder %v266, %v357
        %vm368 = vcmp.eq.s32.totalorder %v267, %v353
        %vm369 = vcmp.eq.s32.totalorder %v267, %v357
        %vm370 = vcmp.eq.s32.totalorder %v268, %v353
        %vm371 = vcmp.eq.s32.totalorder %v268, %v357
        %vm372 = vcmp.eq.s32.totalorder %v269, %v353
        %vm373 = vcmp.eq.s32.totalorder %v269, %v357
        %vm374 = vcmp.eq.s32.totalorder %v270, %v353
        %vm375 = vcmp.eq.s32.totalorder %v270, %v357
        %vm376 = vcmp.eq.s32.totalorder %v271, %v353
        %vm377 = vcmp.eq.s32.totalorder %v271, %v357
        %vm378 = vcmp.eq.s32.totalorder %v272, %v353
        %vm379 = vcmp.eq.s32.totalorder %v272, %v357
        %vm380 = vcmp.eq.s32.totalorder %v273, %v353
        %vm381 = vcmp.eq.s32.totalorder %v273, %v357
        %vm382 = vcmp.eq.s32.totalorder %v274, %v353
        %vm383 = vcmp.eq.s32.totalorder %v274, %v357
        %vm384 = vcmp.eq.s32.totalorder %v275, %v353
        %vm385 = vcmp.eq.s32.totalorder %v275, %v357
        %vm386 = vcmp.eq.s32.totalorder %v276, %v353
        %vm387 = vcmp.eq.s32.totalorder %v276, %v357
        %vm388 = vcmp.eq.s32.totalorder %v277, %v353
        %vm389 = vcmp.eq.s32.totalorder %v277, %v357
        %vm390 = vcmp.eq.s32.totalorder %v278, %v353
        %vm391 = vcmp.eq.s32.totalorder %v278, %v357
        %vm392 = vcmp.eq.s32.totalorder %v279, %v353
        %vm393 = vcmp.eq.s32.totalorder %v279, %v357
        %vm394 = vcmp.eq.s32.totalorder %v280, %v353
        %vm395 = vcmp.eq.s32.totalorder %v280, %v357
        %vm396 = vcmp.eq.s32.totalorder %v281, %v353
        %vm397 = vcmp.eq.s32.totalorder %v281, %v357
        %vm398 = vcmp.eq.s32.totalorder %v282, %v353
        %vm399 = vcmp.eq.s32.totalorder %v282, %v357
        %vm400 = vcmp.eq.s32.totalorder %v283, %v353
        %vm401 = vcmp.eq.s32.totalorder %v283, %v357
        %vm402 = vcmp.eq.s32.totalorder %v284, %v353
        %vm403 = vcmp.eq.s32.totalorder %v284, %v357
        %vm404 = vcmp.eq.s32.totalorder %v285, %v353
        %vm405 = vcmp.eq.s32.totalorder %v285, %v357
        %vm406 = vcmp.eq.s32.totalorder %v286, %v353
        %vm407 = vcmp.eq.s32.totalorder %v286, %v357
        %vm408 = vcmp.eq.s32.totalorder %v287, %v353
        %vm409 = vcmp.eq.s32.totalorder %v287, %v357
        %vm410 = vcmp.eq.s32.totalorder %v288, %v353
        %vm411 = vcmp.eq.s32.totalorder %v288, %v357
        %vm412 = vcmp.eq.s32.totalorder %v289, %v353
        %vm413 = vcmp.eq.s32.totalorder %v289, %v357
        %vm414 = vcmp.eq.s32.totalorder %v290, %v353
        %vm415 = vcmp.eq.s32.totalorder %v290, %v357
        %vm416 = vcmp.eq.s32.totalorder %v291, %v353
        %vm417 = vcmp.eq.s32.totalorder %v291, %v357
        %vm418 = vcmp.eq.s32.totalorder %v292, %v353
        %vm419 = vcmp.eq.s32.totalorder %v292, %v357
        %vm420 = vcmp.eq.s32.totalorder %v293, %v353
        %vm421 = vcmp.eq.s32.totalorder %v293, %v357
        %vm422 = vcmp.eq.s32.totalorder %v294, %v353
        %vm423 = vcmp.eq.s32.totalorder %v294, %v357
        %vm424 = vcmp.eq.s32.totalorder %v295, %v353
        %vm425 = vcmp.eq.s32.totalorder %v295, %v357
        %vm426 = vcmp.eq.s32.totalorder %v296, %v353
        %vm427 = vcmp.eq.s32.totalorder %v296, %v357
        %vm428 = vcmp.eq.s32.totalorder %v297, %v353
        %vm429 = vcmp.eq.s32.totalorder %v297, %v357
        %vm430 = vcmp.eq.s32.totalorder %v298, %v353
        %vm431 = vcmp.eq.s32.totalorder %v298, %v357
        %vm432 = vcmp.eq.s32.totalorder %v299, %v353
        %vm433 = vcmp.eq.s32.totalorder %v299, %v357
        %vm434 = vcmp.eq.s32.totalorder %v300, %v353
        %vm435 = vcmp.eq.s32.totalorder %v300, %v357
        %vm436 = vcmp.eq.s32.totalorder %v301, %v353
        %vm437 = vcmp.eq.s32.totalorder %v301, %v357
        %vm438 = vcmp.eq.s32.totalorder %v302, %v353
        %vm439 = vcmp.eq.s32.totalorder %v302, %v357
        %vm440 = vcmp.eq.s32.totalorder %v303, %v353
        %vm441 = vcmp.eq.s32.totalorder %v303, %v357
        %vm442 = vcmp.eq.s32.totalorder %v304, %v353
        %vm443 = vcmp.eq.s32.totalorder %v304, %v357
        %vm444 = vcmp.eq.s32.totalorder %v305, %v353
        %vm445 = vcmp.eq.s32.totalorder %v305, %v357
        %vm446 = vcmp.eq.s32.totalorder %v306, %v353
        %vm447 = vcmp.eq.s32.totalorder %v306, %v357
        %vm448 = vcmp.eq.s32.totalorder %v307, %v353
        %vm449 = vcmp.eq.s32.totalorder %v307, %v357
        %vm450 = vcmp.eq.s32.totalorder %v308, %v353
        %vm451 = vcmp.eq.s32.totalorder %v308, %v357
        %vm452 = vcmp.eq.s32.totalorder %v309, %v353
        %vm453 = vcmp.eq.s32.totalorder %v309, %v357
        %vm454 = vcmp.eq.s32.totalorder %v310, %v353
        %vm455 = vcmp.eq.s32.totalorder %v310, %v357
        %vm456 = vcmp.eq.s32.totalorder %v311, %v353
        %vm457 = vcmp.eq.s32.totalorder %v311, %v357
        %vm458 = vcmp.eq.s32.totalorder %v312, %v353
        %vm459 = vcmp.eq.s32.totalorder %v312, %v357
        %vm460 = vcmp.eq.s32.totalorder %v313, %v353
        %vm461 = vcmp.eq.s32.totalorder %v313, %v357
        %vm462 = vcmp.eq.s32.totalorder %v314, %v353
        %vm463 = vcmp.eq.s32.totalorder %v314, %v357
        %vm464 = vcmp.eq.s32.totalorder %v315, %v353
        %vm465 = vcmp.eq.s32.totalorder %v315, %v357
        %vm466 = vcmp.eq.s32.totalorder %v316, %v353
        %vm467 = vcmp.eq.s32.totalorder %v316, %v357
        %vm468 = vcmp.eq.s32.totalorder %v317, %v353
        %vm469 = vcmp.eq.s32.totalorder %v317, %v357
        %vm470 = vcmp.eq.s32.totalorder %v318, %v353
        %vm471 = vcmp.eq.s32.totalorder %v318, %v357
        %vm472 = vcmp.eq.s32.totalorder %v319, %v353
        %vm473 = vcmp.eq.s32.totalorder %v319, %v357
        %vm474 = vcmp.eq.s32.totalorder %v320, %v353
        %vm475 = vcmp.eq.s32.totalorder %v320, %v357
        %vm476 = vcmp.eq.s32.totalorder %v321, %v353
        %vm477 = vcmp.eq.s32.totalorder %v321, %v357
        %vm478 = vcmp.eq.s32.totalorder %v322, %v353
        %vm479 = vcmp.eq.s32.totalorder %v322, %v357
        %vm480 = vcmp.eq.s32.totalorder %v323, %v353
        %vm481 = vcmp.eq.s32.totalorder %v323, %v357
        %vm482 = vcmp.eq.s32.totalorder %v324, %v353
        %vm483 = vcmp.eq.s32.totalorder %v324, %v357
        %vm484 = vcmp.eq.s32.totalorder %v325, %v353
        %vm485 = vcmp.eq.s32.totalorder %v325, %v357
        %v487 = vlaneseq
        %v488 = vshrl.u32 %v487, 7
        %v489 = vsub.s32 0, %v488
        %v490 = vrot.slane %v341, %v489
        %v491 = vlaneseq
        %v492 = vshrl.u32 %v491, 7
        %v493 = vsub.s32 4, %v492
        %v494 = vrot.slane %v341, %v493
        %v497 = vlaneseq
        %v498 = vshrl.u32 %v497, 7
        %v499 = vsub.s32 0, %v498
        %v500 = vrot.slane %v490, %v499
        %v501 = vlaneseq
        %v502 = vshrl.u32 %v501, 7
        %v503 = vsub.s32 0, %v502
        %v504 = vrot.slane %v494, %v503
        %v505 = vsel %vm358, %v500, 0.0
        %v506 = vsel %vm359, %v504, 0.0
        %v507 = vsel %vm360, %v500, 0.0
        %v508 = vsel %vm361, %v504, 0.0
        %v509 = vsel %vm362, %v500, 0.0
        %v510 = vsel %vm363, %v504, 0.0
        %v511 = vsel %vm364, %v500, 0.0
        %v512 = vsel %vm365, %v504, 0.0
        %v513 = vsel %vm366, %v500, 0.0
        %v514 = vsel %vm367, %v504, 0.0
        %v515 = vsel %vm368, %v500, 0.0
        %v516 = vsel %vm369, %v504, 0.0
        %v517 = vsel %vm370, %v500, 0.0
        %v518 = vsel %vm371, %v504, 0.0
        %v519 = vsel %vm372, %v500, 0.0
        %v520 = vsel %vm373, %v504, 0.0
        %v521 = vsel %vm374, %v500, 0.0
        %v522 = vsel %vm375, %v504, 0.0
        %v523 = vsel %vm376, %v500, 0.0
        %v524 = vsel %vm377, %v504, 0.0
        %v525 = vsel %vm378, %v500, 0.0
        %v526 = vsel %vm379, %v504, 0.0
        %v527 = vsel %vm380, %v500, 0.0
        %v528 = vsel %vm381, %v504, 0.0
        %v529 = vsel %vm382, %v500, 0.0
        %v530 = vsel %vm383, %v504, 0.0
        %v531 = vsel %vm384, %v500, 0.0
        %v532 = vsel %vm385, %v504, 0.0
        %v533 = vsel %vm386, %v500, 0.0
        %v534 = vsel %vm387, %v504, 0.0
        %v535 = vsel %vm388, %v500, 0.0
        %v536 = vsel %vm389, %v504, 0.0
        %v537 = vsel %vm390, %v500, 0.0
        %v538 = vsel %vm391, %v504, 0.0
        %v539 = vsel %vm392, %v500, 0.0
        %v540 = vsel %vm393, %v504, 0.0
        %v541 = vsel %vm394, %v500, 0.0
        %v542 = vsel %vm395, %v504, 0.0
        %v543 = vsel %vm396, %v500, 0.0
        %v544 = vsel %vm397, %v504, 0.0
        %v545 = vsel %vm398, %v500, 0.0
        %v546 = vsel %vm399, %v504, 0.0
        %v547 = vsel %vm400, %v500, 0.0
        %v548 = vsel %vm401, %v504, 0.0
        %v549 = vsel %vm402, %v500, 0.0
        %v550 = vsel %vm403, %v504, 0.0
        %v551 = vsel %vm404, %v500, 0.0
        %v552 = vsel %vm405, %v504, 0.0
        %v553 = vsel %vm406, %v500, 0.0
        %v554 = vsel %vm407, %v504, 0.0
        %v555 = vsel %vm408, %v500, 0.0
        %v556 = vsel %vm409, %v504, 0.0
        %v557 = vsel %vm410, %v500, 0.0
        %v558 = vsel %vm411, %v504, 0.0
        %v559 = vsel %vm412, %v500, 0.0
        %v560 = vsel %vm413, %v504, 0.0
        %v561 = vsel %vm414, %v500, 0.0
        %v562 = vsel %vm415, %v504, 0.0
        %v563 = vsel %vm416, %v500, 0.0
        %v564 = vsel %vm417, %v504, 0.0
        %v565 = vsel %vm418, %v500, 0.0
        %v566 = vsel %vm419, %v504, 0.0
        %v567 = vsel %vm420, %v500, 0.0
        %v568 = vsel %vm421, %v504, 0.0
        %v569 = vsel %vm422, %v500, 0.0
        %v570 = vsel %vm423, %v504, 0.0
        %v571 = vsel %vm424, %v500, 0.0
        %v572 = vsel %vm425, %v504, 0.0
        %v573 = vsel %vm426, %v500, 0.0
        %v574 = vsel %vm427, %v504, 0.0
        %v575 = vsel %vm428, %v500, 0.0
        %v576 = vsel %vm429, %v504, 0.0
        %v577 = vsel %vm430, %v500, 0.0
        %v578 = vsel %vm431, %v504, 0.0
        %v579 = vsel %vm432, %v500, 0.0
        %v580 = vsel %vm433, %v504, 0.0
        %v581 = vsel %vm434, %v500, 0.0
        %v582 = vsel %vm435, %v504, 0.0
        %v583 = vsel %vm436, %v500, 0.0
        %v584 = vsel %vm437, %v504, 0.0
        %v585 = vsel %vm438, %v500, 0.0
        %v586 = vsel %vm439, %v504, 0.0
        %v587 = vsel %vm440, %v500, 0.0
        %v588 = vsel %vm441, %v504, 0.0
        %v589 = vsel %vm442, %v500, 0.0
        %v590 = vsel %vm443, %v504, 0.0
        %v591 = vsel %vm444, %v500, 0.0
        %v592 = vsel %vm445, %v504, 0.0
        %v593 = vsel %vm446, %v500, 0.0
        %v594 = vsel %vm447, %v504, 0.0
        %v595 = vsel %vm448, %v500, 0.0
        %v596 = vsel %vm449, %v504, 0.0
        %v597 = vsel %vm450, %v500, 0.0
        %v598 = vsel %vm451, %v504, 0.0
        %v599 = vsel %vm452, %v500, 0.0
        %v600 = vsel %vm453, %v504, 0.0
        %v601 = vsel %vm454, %v500, 0.0
        %v602 = vsel %vm455, %v504, 0.0
        %v603 = vsel %vm456, %v500, 0.0
        %v604 = vsel %vm457, %v504, 0.0
        %v605 = vsel %vm458, %v500, 0.0
        %v606 = vsel %vm459, %v504, 0.0
        %v607 = vsel %vm460, %v500, 0.0
        %v608 = vsel %vm461, %v504, 0.0
        %v609 = vsel %vm462, %v500, 0.0
        %v610 = vsel %vm463, %v504, 0.0
        %v611 = vsel %vm464, %v500, 0.0
        %v612 = vsel %vm465, %v504, 0.0
        %v613 = vsel %vm466, %v500, 0.0
        %v614 = vsel %vm467, %v504, 0.0
        %v615 = vsel %vm468, %v500, 0.0
        %v616 = vsel %vm469, %v504, 0.0
        %v617 = vsel %vm470, %v500, 0.0
        %v618 = vsel %vm471, %v504, 0.0
        %v619 = vsel %vm472, %v500, 0.0
        %v620 = vsel %vm473, %v504, 0.0
        %v621 = vsel %vm474, %v500, 0.0
        %v622 = vsel %vm475, %v504, 0.0
        %v623 = vsel %vm476, %v500, 0.0
        %v624 = vsel %vm477, %v504, 0.0
        %v625 = vsel %vm478, %v500, 0.0
        %v626 = vsel %vm479, %v504, 0.0
        %v627 = vsel %vm480, %v500, 0.0
        %v628 = vsel %vm481, %v504, 0.0
        %v629 = vsel %vm482, %v500, 0.0
        %v630 = vsel %vm483, %v504, 0.0
        %v631 = vsel %vm484, %v500, 0.0
        %v632 = vsel %vm485, %v504, 0.0
        %v633 = vadd.f32 %v505, 0.0
        %v634 = vadd.f32 %v506, 0.0
        %v635 = vadd.f32 %v507, 0.0
        %v636 = vadd.f32 %v508, 0.0
        %v637 = vadd.f32 %v509, 0.0
        %v638 = vadd.f32 %v510, 0.0
        %v639 = vadd.f32 %v511, 0.0
        %v640 = vadd.f32 %v512, 0.0
        %v641 = vadd.f32 %v513, 0.0
        %v642 = vadd.f32 %v514, 0.0
        %v643 = vadd.f32 %v515, 0.0
        %v644 = vadd.f32 %v516, 0.0
        %v645 = vadd.f32 %v517, 0.0
        %v646 = vadd.f32 %v518, 0.0
        %v647 = vadd.f32 %v519, 0.0
        %v648 = vadd.f32 %v520, 0.0
        %v649 = vadd.f32 %v521, 0.0
        %v650 = vadd.f32 %v522, 0.0
        %v651 = vadd.f32 %v523, 0.0
        %v652 = vadd.f32 %v524, 0.0
        %v653 = vadd.f32 %v525, 0.0
        %v654 = vadd.f32 %v526, 0.0
        %v655 = vadd.f32 %v527, 0.0
        %v656 = vadd.f32 %v528, 0.0
        %v657 = vadd.f32 %v529, 0.0
        %v658 = vadd.f32 %v530, 0.0
        %v659 = vadd.f32 %v531, 0.0
        %v660 = vadd.f32 %v532, 0.0
        %v661 = vadd.f32 %v533, 0.0
        %v662 = vadd.f32 %v534, 0.0
        %v663 = vadd.f32 %v535, 0.0
        %v664 = vadd.f32 %v536, 0.0
        %v665 = vadd.f32 %v537, 0.0
        %v666 = vadd.f32 %v538, 0.0
        %v667 = vadd.f32 %v539, 0.0
        %v668 = vadd.f32 %v540, 0.0
        %v669 = vadd.f32 %v541, 0.0
        %v670 = vadd.f32 %v542, 0.0
        %v671 = vadd.f32 %v543, 0.0
        %v672 = vadd.f32 %v544, 0.0
        %v673 = vadd.f32 %v545, 0.0
        %v674 = vadd.f32 %v546, 0.0
        %v675 = vadd.f32 %v547, 0.0
        %v676 = vadd.f32 %v548, 0.0
        %v677 = vadd.f32 %v549, 0.0
        %v678 = vadd.f32 %v550, 0.0
        %v679 = vadd.f32 %v551, 0.0
        %v680 = vadd.f32 %v552, 0.0
        %v681 = vadd.f32 %v553, 0.0
        %v682 = vadd.f32 %v554, 0.0
        %v683 = vadd.f32 %v555, 0.0
        %v684 = vadd.f32 %v556, 0.0
        %v685 = vadd.f32 %v557, 0.0
        %v686 = vadd.f32 %v558, 0.0
        %v687 = vadd.f32 %v559, 0.0
        %v688 = vadd.f32 %v560, 0.0
        %v689 = vadd.f32 %v561, 0.0
        %v690 = vadd.f32 %v562, 0.0
        %v691 = vadd.f32 %v563, 0.0
        %v692 = vadd.f32 %v564, 0.0
        %v693 = vadd.f32 %v565, 0.0
        %v694 = vadd.f32 %v566, 0.0
        %v695 = vadd.f32 %v567, 0.0
        %v696 = vadd.f32 %v568, 0.0
        %v697 = vadd.f32 %v569, 0.0
        %v698 = vadd.f32 %v570, 0.0
        %v699 = vadd.f32 %v571, 0.0
        %v700 = vadd.f32 %v572, 0.0
        %v701 = vadd.f32 %v573, 0.0
        %v702 = vadd.f32 %v574, 0.0
        %v703 = vadd.f32 %v575, 0.0
        %v704 = vadd.f32 %v576, 0.0
        %v705 = vadd.f32 %v577, 0.0
        %v706 = vadd.f32 %v578, 0.0
        %v707 = vadd.f32 %v579, 0.0
        %v708 = vadd.f32 %v580, 0.0
        %v709 = vadd.f32 %v581, 0.0
        %v710 = vadd.f32 %v582, 0.0
        %v711 = vadd.f32 %v583, 0.0
        %v712 = vadd.f32 %v584, 0.0
        %v713 = vadd.f32 %v585, 0.0
        %v714 = vadd.f32 %v586, 0.0
        %v715 = vadd.f32 %v587, 0.0
        %v716 = vadd.f32 %v588, 0.0
        %v717 = vadd.f32 %v589, 0.0
        %v718 = vadd.f32 %v590, 0.0
        %v719 = vadd.f32 %v591, 0.0
        %v720 = vadd.f32 %v592, 0.0
        %v721 = vadd.f32 %v593, 0.0
        %v722 = vadd.f32 %v594, 0.0
        %v723 = vadd.f32 %v595, 0.0
        %v724 = vadd.f32 %v596, 0.0
        %v725 = vadd.f32 %v597, 0.0
        %v726 = vadd.f32 %v598, 0.0
        %v727 = vadd.f32 %v599, 0.0
        %v728 = vadd.f32 %v600, 0.0
        %v729 = vadd.f32 %v601, 0.0
        %v730 = vadd.f32 %v602, 0.0
        %v731 = vadd.f32 %v603, 0.0
        %v732 = vadd.f32 %v604, 0.0
        %v733 = vadd.f32 %v605, 0.0
        %v734 = vadd.f32 %v606, 0.0
        %v735 = vadd.f32 %v607, 0.0
        %v736 = vadd.f32 %v608, 0.0
        %v737 = vadd.f32 %v609, 0.0
        %v738 = vadd.f32 %v610, 0.0
        %v739 = vadd.f32 %v611, 0.0
        %v740 = vadd.f32 %v612, 0.0
        %v741 = vadd.f32 %v613, 0.0
        %v742 = vadd.f32 %v614, 0.0
        %v743 = vadd.f32 %v615, 0.0
        %v744 = vadd.f32 %v616, 0.0
        %v745 = vadd.f32 %v617, 0.0
        %v746 = vadd.f32 %v618, 0.0
        %v747 = vadd.f32 %v619, 0.0
        %v748 = vadd.f32 %v620, 0.0
        %v749 = vadd.f32 %v621, 0.0
        %v750 = vadd.f32 %v622, 0.0
        %v751 = vadd.f32 %v623, 0.0
        %v752 = vadd.f32 %v624, 0.0
        %v753 = vadd.f32 %v625, 0.0
        %v754 = vadd.f32 %v626, 0.0
        %v755 = vadd.f32 %v627, 0.0
        %v756 = vadd.f32 %v628, 0.0
        %v757 = vadd.f32 %v629, 0.0
        %v758 = vadd.f32 %v630, 0.0
        %v759 = vadd.f32 %v631, 0.0
        %v760 = vadd.f32 %v632, 0.0
        %v761 = vrot.slane %v259, 6
        %v762 = vrot.slane %v761, 4
        %v763 = vadd.s32 %v328, %v762
        %v764 = vand.u32 %v763, 511
        %v766 = vrot.slane %v228, 6
        %v767 = vrot.slane %v766, 4
        %v769 = vmul.f32 %v337, %v767
        %v770 = vlaneseq
        %v771 = vshrl.u32 %v770, 7
        %v772 = vsub.s32 0, %v771
        %v773 = vrot.slane %v764, %v772
        %v774 = vlaneseq
        %v775 = vshrl.u32 %v774, 7
        %v776 = vsub.s32 4, %v775
        %v777 = vrot.slane %v764, %v776
        %v778 = vlaneseq
        %v779 = vshrl.u32 %v778, 7
        %v780 = vsub.s32 0, %v779
        %v781 = vrot.slane %v773, %v780
        %v782 = vlaneseq
        %v783 = vshrl.u32 %v782, 7
        %v784 = vsub.s32 0, %v783
        %v785 = vrot.slane %v777, %v784
        %vm786 = vcmp.eq.s32.totalorder %v262, %v781
        %vm787 = vcmp.eq.s32.totalorder %v262, %v785
        %vm788 = vcmp.eq.s32.totalorder %v263, %v781
        %vm789 = vcmp.eq.s32.totalorder %v263, %v785
        %vm790 = vcmp.eq.s32.totalorder %v264, %v781
        %vm791 = vcmp.eq.s32.totalorder %v264, %v785
        %vm792 = vcmp.eq.s32.totalorder %v265, %v781
        %vm793 = vcmp.eq.s32.totalorder %v265, %v785
        %vm794 = vcmp.eq.s32.totalorder %v266, %v781
        %vm795 = vcmp.eq.s32.totalorder %v266, %v785
        %vm796 = vcmp.eq.s32.totalorder %v267, %v781
        %vm797 = vcmp.eq.s32.totalorder %v267, %v785
        %vm798 = vcmp.eq.s32.totalorder %v268, %v781
        %vm799 = vcmp.eq.s32.totalorder %v268, %v785
        %vm800 = vcmp.eq.s32.totalorder %v269, %v781
        %vm801 = vcmp.eq.s32.totalorder %v269, %v785
        %vm802 = vcmp.eq.s32.totalorder %v270, %v781
        %vm803 = vcmp.eq.s32.totalorder %v270, %v785
        %vm804 = vcmp.eq.s32.totalorder %v271, %v781
        %vm805 = vcmp.eq.s32.totalorder %v271, %v785
        %vm806 = vcmp.eq.s32.totalorder %v272, %v781
        %vm807 = vcmp.eq.s32.totalorder %v272, %v785
        %vm808 = vcmp.eq.s32.totalorder %v273, %v781
        %vm809 = vcmp.eq.s32.totalorder %v273, %v785
        %vm810 = vcmp.eq.s32.totalorder %v274, %v781
        %vm811 = vcmp.eq.s32.totalorder %v274, %v785
        %vm812 = vcmp.eq.s32.totalorder %v275, %v781
        %vm813 = vcmp.eq.s32.totalorder %v275, %v785
        %vm814 = vcmp.eq.s32.totalorder %v276, %v781
        %vm815 = vcmp.eq.s32.totalorder %v276, %v785
        %vm816 = vcmp.eq.s32.totalorder %v277, %v781
        %vm817 = vcmp.eq.s32.totalorder %v277, %v785
        %vm818 = vcmp.eq.s32.totalorder %v278, %v781
        %vm819 = vcmp.eq.s32.totalorder %v278, %v785
        %vm820 = vcmp.eq.s32.totalorder %v279, %v781
        %vm821 = vcmp.eq.s32.totalorder %v279, %v785
        %vm822 = vcmp.eq.s32.totalorder %v280, %v781
        %vm823 = vcmp.eq.s32.totalorder %v280, %v785
        %vm824 = vcmp.eq.s32.totalorder %v281, %v781
        %vm825 = vcmp.eq.s32.totalorder %v281, %v785
        %vm826 = vcmp.eq.s32.totalorder %v282, %v781
        %vm827 = vcmp.eq.s32.totalorder %v282, %v785
        %vm828 = vcmp.eq.s32.totalorder %v283, %v781
        %vm829 = vcmp.eq.s32.totalorder %v283, %v785
        %vm830 = vcmp.eq.s32.totalorder %v284, %v781
        %vm831 = vcmp.eq.s32.totalorder %v284, %v785
        %vm832 = vcmp.eq.s32.totalorder %v285, %v781
        %vm833 = vcmp.eq.s32.totalorder %v285, %v785
        %vm834 = vcmp.eq.s32.totalorder %v286, %v781
        %vm835 = vcmp.eq.s32.totalorder %v286, %v785
        %vm836 = vcmp.eq.s32.totalorder %v287, %v781
        %vm837 = vcmp.eq.s32.totalorder %v287, %v785
        %vm838 = vcmp.eq.s32.totalorder %v288, %v781
        %vm839 = vcmp.eq.s32.totalorder %v288, %v785
        %vm840 = vcmp.eq.s32.totalorder %v289, %v781
        %vm841 = vcmp.eq.s32.totalorder %v289, %v785
        %vm842 = vcmp.eq.s32.totalorder %v290, %v781
        %vm843 = vcmp.eq.s32.totalorder %v290, %v785
        %vm844 = vcmp.eq.s32.totalorder %v291, %v781
        %vm845 = vcmp.eq.s32.totalorder %v291, %v785
        %vm846 = vcmp.eq.s32.totalorder %v292, %v781
        %vm847 = vcmp.eq.s32.totalorder %v292, %v785
        %vm848 = vcmp.eq.s32.totalorder %v293, %v781
        %vm849 = vcmp.eq.s32.totalorder %v293, %v785
        %vm850 = vcmp.eq.s32.totalorder %v294, %v781
        %vm851 = vcmp.eq.s32.totalorder %v294, %v785
        %vm852 = vcmp.eq.s32.totalorder %v295, %v781
        %vm853 = vcmp.eq.s32.totalorder %v295, %v785
        %vm854 = vcmp.eq.s32.totalorder %v296, %v781
        %vm855 = vcmp.eq.s32.totalorder %v296, %v785
        %vm856 = vcmp.eq.s32.totalorder %v297, %v781
        %vm857 = vcmp.eq.s32.totalorder %v297, %v785
        %vm858 = vcmp.eq.s32.totalorder %v298, %v781
        %vm859 = vcmp.eq.s32.totalorder %v298, %v785
        %vm860 = vcmp.eq.s32.totalorder %v299, %v781
        %vm861 = vcmp.eq.s32.totalorder %v299, %v785
        %vm862 = vcmp.eq.s32.totalorder %v300, %v781
        %vm863 = vcmp.eq.s32.totalorder %v300, %v785
        %vm864 = vcmp.eq.s32.totalorder %v301, %v781
        %vm865 = vcmp.eq.s32.totalorder %v301, %v785
        %vm866 = vcmp.eq.s32.totalorder %v302, %v781
        %vm867 = vcmp.eq.s32.totalorder %v302, %v785
        %vm868 = vcmp.eq.s32.totalorder %v303, %v781
        %vm869 = vcmp.eq.s32.totalorder %v303, %v785
        %vm870 = vcmp.eq.s32.totalorder %v304, %v781
        %vm871 = vcmp.eq.s32.totalorder %v304, %v785
        %vm872 = vcmp.eq.s32.totalorder %v305, %v781
        %vm873 = vcmp.eq.s32.totalorder %v305, %v785
        %vm874 = vcmp.eq.s32.totalorder %v306, %v781
        %vm875 = vcmp.eq.s32.totalorder %v306, %v785
        %vm876 = vcmp.eq.s32.totalorder %v307, %v781
        %vm877 = vcmp.eq.s32.totalorder %v307, %v785
        %vm878 = vcmp.eq.s32.totalorder %v308, %v781
        %vm879 = vcmp.eq.s32.totalorder %v308, %v785
        %vm880 = vcmp.eq.s32.totalorder %v309, %v781
        %vm881 = vcmp.eq.s32.totalorder %v309, %v785
        %vm882 = vcmp.eq.s32.totalorder %v310, %v781
        %vm883 = vcmp.eq.s32.totalorder %v310, %v785
        %vm884 = vcmp.eq.s32.totalorder %v311, %v781
        %vm885 = vcmp.eq.s32.totalorder %v311, %v785
        %vm886 = vcmp.eq.s32.totalorder %v312, %v781
        %vm887 = vcmp.eq.s32.totalorder %v312, %v785
        %vm888 = vcmp.eq.s32.totalorder %v313, %v781
        %vm889 = vcmp.eq.s32.totalorder %v313, %v785
        %vm890 = vcmp.eq.s32.totalorder %v314, %v781
        %vm891 = vcmp.eq.s32.totalorder %v314, %v785
        %vm892 = vcmp.eq.s32.totalorder %v315, %v781
        %vm893 = vcmp.eq.s32.totalorder %v315, %v785
        %vm894 = vcmp.eq.s32.totalorder %v316, %v781
        %vm895 = vcmp.eq.s32.totalorder %v316, %v785
        %vm896 = vcmp.eq.s32.totalorder %v317, %v781
        %vm897 = vcmp.eq.s32.totalorder %v317, %v785
        %vm898 = vcmp.eq.s32.totalorder %v318, %v781
        %vm899 = vcmp.eq.s32.totalorder %v318, %v785
        %vm900 = vcmp.eq.s32.totalorder %v319, %v781
        %vm901 = vcmp.eq.s32.totalorder %v319, %v785
        %vm902 = vcmp.eq.s32.totalorder %v320, %v781
        %vm903 = vcmp.eq.s32.totalorder %v320, %v785
        %vm904 = vcmp.eq.s32.totalorder %v321, %v781
        %vm905 = vcmp.eq.s32.totalorder %v321, %v785
        %vm906 = vcmp.eq.s32.totalorder %v322, %v781
        %vm907 = vcmp.eq.s32.totalorder %v322, %v785
        %vm908 = vcmp.eq.s32.totalorder %v323, %v781
        %vm909 = vcmp.eq.s32.totalorder %v323, %v785
        %vm910 = vcmp.eq.s32.totalorder %v324, %v781
        %vm911 = vcmp.eq.s32.totalorder %v324, %v785
        %vm912 = vcmp.eq.s32.totalorder %v325, %v781
        %vm913 = vcmp.eq.s32.totalorder %v325, %v785
        %v915 = vlaneseq
        %v916 = vshrl.u32 %v915, 7
        %v917 = vsub.s32 0, %v916
        %v918 = vrot.slane %v769, %v917
        %v919 = vlaneseq
        %v920 = vshrl.u32 %v919, 7
        %v921 = vsub.s32 4, %v920
        %v922 = vrot.slane %v769, %v921
        %v925 = vlaneseq
        %v926 = vshrl.u32 %v925, 7
        %v927 = vsub.s32 0, %v926
        %v928 = vrot.slane %v918, %v927
        %v929 = vlaneseq
        %v930 = vshrl.u32 %v929, 7
        %v931 = vsub.s32 0, %v930
        %v932 = vrot.slane %v922, %v931
        %v933 = vsel %vm786, %v928, 0.0
        %v934 = vsel %vm787, %v932, 0.0
        %v935 = vsel %vm788, %v928, 0.0
        %v936 = vsel %vm789, %v932, 0.0
        %v937 = vsel %vm790, %v928, 0.0
        %v938 = vsel %vm791, %v932, 0.0
        %v939 = vsel %vm792, %v928, 0.0
        %v940 = vsel %vm793, %v932, 0.0
        %v941 = vsel %vm794, %v928, 0.0
        %v942 = vsel %vm795, %v932, 0.0
        %v943 = vsel %vm796, %v928, 0.0
        %v944 = vsel %vm797, %v932, 0.0
        %v945 = vsel %vm798, %v928, 0.0
        %v946 = vsel %vm799, %v932, 0.0
        %v947 = vsel %vm800, %v928, 0.0
        %v948 = vsel %vm801, %v932, 0.0
        %v949 = vsel %vm802, %v928, 0.0
        %v950 = vsel %vm803, %v932, 0.0
        %v951 = vsel %vm804, %v928, 0.0
        %v952 = vsel %vm805, %v932, 0.0
        %v953 = vsel %vm806, %v928, 0.0
        %v954 = vsel %vm807, %v932, 0.0
        %v955 = vsel %vm808, %v928, 0.0
        %v956 = vsel %vm809, %v932, 0.0
        %v957 = vsel %vm810, %v928, 0.0
        %v958 = vsel %vm811, %v932, 0.0
        %v959 = vsel %vm812, %v928, 0.0
        %v960 = vsel %vm813, %v932, 0.0
        %v961 = vsel %vm814, %v928, 0.0
        %v962 = vsel %vm815, %v932, 0.0
        %v963 = vsel %vm816, %v928, 0.0
        %v964 = vsel %vm817, %v932, 0.0
        %v965 = vsel %vm818, %v928, 0.0
        %v966 = vsel %vm819, %v932, 0.0
        %v967 = vsel %vm820, %v928, 0.0
        %v968 = vsel %vm821, %v932, 0.0
        %v969 = vsel %vm822, %v928, 0.0
        %v970 = vsel %vm823, %v932, 0.0
        %v971 = vsel %vm824, %v928, 0.0
        %v972 = vsel %vm825, %v932, 0.0
        %v973 = vsel %vm826, %v928, 0.0
        %v974 = vsel %vm827, %v932, 0.0
        %v975 = vsel %vm828, %v928, 0.0
        %v976 = vsel %vm829, %v932, 0.0
        %v977 = vsel %vm830, %v928, 0.0
        %v978 = vsel %vm831, %v932, 0.0
        %v979 = vsel %vm832, %v928, 0.0
        %v980 = vsel %vm833, %v932, 0.0
        %v981 = vsel %vm834, %v928, 0.0
        %v982 = vsel %vm835, %v932, 0.0
        %v983 = vsel %vm836, %v928, 0.0
        %v984 = vsel %vm837, %v932, 0.0
        %v985 = vsel %vm838, %v928, 0.0
        %v986 = vsel %vm839, %v932, 0.0
        %v987 = vsel %vm840, %v928, 0.0
        %v988 = vsel %vm841, %v932, 0.0
        %v989 = vsel %vm842, %v928, 0.0
        %v990 = vsel %vm843, %v932, 0.0
        %v991 = vsel %vm844, %v928, 0.0
        %v992 = vsel %vm845, %v932, 0.0
        %v993 = vsel %vm846, %v928, 0.0
        %v994 = vsel %vm847, %v932, 0.0
        %v995 = vsel %vm848, %v928, 0.0
        %v996 = vsel %vm849, %v932, 0.0
        %v997 = vsel %vm850, %v928, 0.0
        %v998 = vsel %vm851, %v932, 0.0
        %v999 = vsel %vm852, %v928, 0.0
        %v1000 = vsel %vm853, %v932, 0.0
        %v1001 = vsel %vm854, %v928, 0.0
        %v1002 = vsel %vm855, %v932, 0.0
        %v1003 = vsel %vm856, %v928, 0.0
        %v1004 = vsel %vm857, %v932, 0.0
        %v1005 = vsel %vm858, %v928, 0.0
        %v1006 = vsel %vm859, %v932, 0.0
        %v1007 = vsel %vm860, %v928, 0.0
        %v1008 = vsel %vm861, %v932, 0.0
        %v1009 = vsel %vm862, %v928, 0.0
        %v1010 = vsel %vm863, %v932, 0.0
        %v1011 = vsel %vm864, %v928, 0.0
        %v1012 = vsel %vm865, %v932, 0.0
        %v1013 = vsel %vm866, %v928, 0.0
        %v1014 = vsel %vm867, %v932, 0.0
        %v1015 = vsel %vm868, %v928, 0.0
        %v1016 = vsel %vm869, %v932, 0.0
        %v1017 = vsel %vm870, %v928, 0.0
        %v1018 = vsel %vm871, %v932, 0.0
        %v1019 = vsel %vm872, %v928, 0.0
        %v1020 = vsel %vm873, %v932, 0.0
        %v1021 = vsel %vm874, %v928, 0.0
        %v1022 = vsel %vm875, %v932, 0.0
        %v1023 = vsel %vm876, %v928, 0.0
        %v1024 = vsel %vm877, %v932, 0.0
        %v1025 = vsel %vm878, %v928, 0.0
        %v1026 = vsel %vm879, %v932, 0.0
        %v1027 = vsel %vm880, %v928, 0.0
        %v1028 = vsel %vm881, %v932, 0.0
        %v1029 = vsel %vm882, %v928, 0.0
        %v1030 = vsel %vm883, %v932, 0.0
        %v1031 = vsel %vm884, %v928, 0.0
        %v1032 = vsel %vm885, %v932, 0.0
        %v1033 = vsel %vm886, %v928, 0.0
        %v1034 = vsel %vm887, %v932, 0.0
        %v1035 = vsel %vm888, %v928, 0.0
        %v1036 = vsel %vm889, %v932, 0.0
        %v1037 = vsel %vm890, %v928, 0.0
        %v1038 = vsel %vm891, %v932, 0.0
        %v1039 = vsel %vm892, %v928, 0.0
        %v1040 = vsel %vm893, %v932, 0.0
        %v1041 = vsel %vm894, %v928, 0.0
        %v1042 = vsel %vm895, %v932, 0.0
        %v1043 = vsel %vm896, %v928, 0.0
        %v1044 = vsel %vm897, %v932, 0.0
        %v1045 = vsel %vm898, %v928, 0.0
        %v1046 = vsel %vm899, %v932, 0.0
        %v1047 = vsel %vm900, %v928, 0.0
        %v1048 = vsel %vm901, %v932, 0.0
        %v1049 = vsel %vm902, %v928, 0.0
        %v1050 = vsel %vm903, %v932, 0.0
        %v1051 = vsel %vm904, %v928, 0.0
        %v1052 = vsel %vm905, %v932, 0.0
        %v1053 = vsel %vm906, %v928, 0.0
        %v1054 = vsel %vm907, %v932, 0.0
        %v1055 = vsel %vm908, %v928, 0.0
        %v1056 = vsel %vm909, %v932, 0.0
        %v1057 = vsel %vm910, %v928, 0.0
        %v1058 = vsel %vm911, %v932, 0.0
        %v1059 = vsel %vm912, %v928, 0.0
        %v1060 = vsel %vm913, %v932, 0.0
        %v1061 = vadd.f32 %v633, %v933
        %v1062 = vadd.f32 %v634, %v934
        %v1063 = vadd.f32 %v635, %v935
        %v1064 = vadd.f32 %v636, %v936
        %v1065 = vadd.f32 %v637, %v937
        %v1066 = vadd.f32 %v638, %v938
        %v1067 = vadd.f32 %v639, %v939
        %v1068 = vadd.f32 %v640, %v940
        %v1069 = vadd.f32 %v641, %v941
        %v1070 = vadd.f32 %v642, %v942
        %v1071 = vadd.f32 %v643, %v943
        %v1072 = vadd.f32 %v644, %v944
        %v1073 = vadd.f32 %v645, %v945
        %v1074 = vadd.f32 %v646, %v946
        %v1075 = vadd.f32 %v647, %v947
        %v1076 = vadd.f32 %v648, %v948
        %v1077 = vadd.f32 %v649, %v949
        %v1078 = vadd.f32 %v650, %v950
        %v1079 = vadd.f32 %v651, %v951
        %v1080 = vadd.f32 %v652, %v952
        %v1081 = vadd.f32 %v653, %v953
        %v1082 = vadd.f32 %v654, %v954
        %v1083 = vadd.f32 %v655, %v955
        %v1084 = vadd.f32 %v656, %v956
        %v1085 = vadd.f32 %v657, %v957
        %v1086 = vadd.f32 %v658, %v958
        %v1087 = vadd.f32 %v659, %v959
        %v1088 = vadd.f32 %v660, %v960
        %v1089 = vadd.f32 %v661, %v961
        %v1090 = vadd.f32 %v662, %v962
        %v1091 = vadd.f32 %v663, %v963
        %v1092 = vadd.f32 %v664, %v964
        %v1093 = vadd.f32 %v665, %v965
        %v1094 = vadd.f32 %v666, %v966
        %v1095 = vadd.f32 %v667, %v967
        %v1096 = vadd.f32 %v668, %v968
        %v1097 = vadd.f32 %v669, %v969
        %v1098 = vadd.f32 %v670, %v970
        %v1099 = vadd.f32 %v671, %v971
        %v1100 = vadd.f32 %v672, %v972
        %v1101 = vadd.f32 %v673, %v973
        %v1102 = vadd.f32 %v674, %v974
        %v1103 = vadd.f32 %v675, %v975
        %v1104 = vadd.f32 %v676, %v976
        %v1105 = vadd.f32 %v677, %v977
        %v1106 = vadd.f32 %v678, %v978
        %v1107 = vadd.f32 %v679, %v979
        %v1108 = vadd.f32 %v680, %v980
        %v1109 = vadd.f32 %v681, %v981
        %v1110 = vadd.f32 %v682, %v982
        %v1111 = vadd.f32 %v683, %v983
        %v1112 = vadd.f32 %v684, %v984
        %v1113 = vadd.f32 %v685, %v985
        %v1114 = vadd.f32 %v686, %v986
        %v1115 = vadd.f32 %v687, %v987
        %v1116 = vadd.f32 %v688, %v988
        %v1117 = vadd.f32 %v689, %v989
        %v1118 = vadd.f32 %v690, %v990
        %v1119 = vadd.f32 %v691, %v991
        %v1120 = vadd.f32 %v692, %v992
        %v1121 = vadd.f32 %v693, %v993
        %v1122 = vadd.f32 %v694, %v994
        %v1123 = vadd.f32 %v695, %v995
        %v1124 = vadd.f32 %v696, %v996
        %v1125 = vadd.f32 %v697, %v997
        %v1126 = vadd.f32 %v698, %v998
        %v1127 = vadd.f32 %v699, %v999
        %v1128 = vadd.f32 %v700, %v1000
        %v1129 = vadd.f32 %v701, %v1001
        %v1130 = vadd.f32 %v702, %v1002
        %v1131 = vadd.f32 %v703, %v1003
        %v1132 = vadd.f32 %v704, %v1004
        %v1133 = vadd.f32 %v705, %v1005
        %v1134 = vadd.f32 %v706, %v1006
        %v1135 = vadd.f32 %v707, %v1007
        %v1136 = vadd.f32 %v708, %v1008
        %v1137 = vadd.f32 %v709, %v1009
        %v1138 = vadd.f32 %v710, %v1010
        %v1139 = vadd.f32 %v711, %v1011
        %v1140 = vadd.f32 %v712, %v1012
        %v1141 = vadd.f32 %v713, %v1013
        %v1142 = vadd.f32 %v714, %v1014
        %v1143 = vadd.f32 %v715, %v1015
        %v1144 = vadd.f32 %v716, %v1016
        %v1145 = vadd.f32 %v717, %v1017
        %v1146 = vadd.f32 %v718, %v1018
        %v1147 = vadd.f32 %v719, %v1019
        %v1148 = vadd.f32 %v720, %v1020
        %v1149 = vadd.f32 %v721, %v1021
        %v1150 = vadd.f32 %v722, %v1022
        %v1151 = vadd.f32 %v723, %v1023
        %v1152 = vadd.f32 %v724, %v1024
        %v1153 = vadd.f32 %v725, %v1025
        %v1154 = vadd.f32 %v726, %v1026
        %v1155 = vadd.f32 %v727, %v1027
        %v1156 = vadd.f32 %v728, %v1028
        %v1157 = vadd.f32 %v729, %v1029
        %v1158 = vadd.f32 %v730, %v1030
        %v1159 = vadd.f32 %v731, %v1031
        %v1160 = vadd.f32 %v732, %v1032
        %v1161 = vadd.f32 %v733, %v1033
        %v1162 = vadd.f32 %v734, %v1034
        %v1163 = vadd.f32 %v735, %v1035
        %v1164 = vadd.f32 %v736, %v1036
        %v1165 = vadd.f32 %v737, %v1037
        %v1166 = vadd.f32 %v738, %v1038
        %v1167 = vadd.f32 %v739, %v1039
        %v1168 = vadd.f32 %v740, %v1040
        %v1169 = vadd.f32 %v741, %v1041
        %v1170 = vadd.f32 %v742, %v1042
        %v1171 = vadd.f32 %v743, %v1043
        %v1172 = vadd.f32 %v744, %v1044
        %v1173 = vadd.f32 %v745, %v1045
        %v1174 = vadd.f32 %v746, %v1046
        %v1175 = vadd.f32 %v747, %v1047
        %v1176 = vadd.f32 %v748, %v1048
        %v1177 = vadd.f32 %v749, %v1049
        %v1178 = vadd.f32 %v750, %v1050
        %v1179 = vadd.f32 %v751, %v1051
        %v1180 = vadd.f32 %v752, %v1052
        %v1181 = vadd.f32 %v753, %v1053
        %v1182 = vadd.f32 %v754, %v1054
        %v1183 = vadd.f32 %v755, %v1055
        %v1184 = vadd.f32 %v756, %v1056
        %v1185 = vadd.f32 %v757, %v1057
        %v1186 = vadd.f32 %v758, %v1058
        %v1187 = vadd.f32 %v759, %v1059
        %v1188 = vadd.f32 %v760, %v1060
        %v1189 = vrot.slane %v257, 5
        %v1190 = vrot.slane %v1189, 4
        %v1191 = vadd.s32 %v242, %v1190
        %v1192 = vadd.s32 %v1191, %v330
        %v1193 = vand.u32 %v1192, 511
        %v1194 = vrot.slane %v228, 5
        %v1195 = vrot.slane %v1194, 4
        %v1197 = vmul.f32 %v260, %v1195
        %v1198 = vmul.f32 %v1197, %v339
        %v1199 = vlaneseq
        %v1200 = vshrl.u32 %v1199, 7
        %v1201 = vsub.s32 0, %v1200
        %v1202 = vrot.slane %v1193, %v1201
        %v1203 = vlaneseq
        %v1204 = vshrl.u32 %v1203, 7
        %v1205 = vsub.s32 4, %v1204
        %v1206 = vrot.slane %v1193, %v1205
        %v1207 = vlaneseq
        %v1208 = vshrl.u32 %v1207, 7
        %v1209 = vsub.s32 0, %v1208
        %v1210 = vrot.slane %v1202, %v1209
        %v1211 = vlaneseq
        %v1212 = vshrl.u32 %v1211, 7
        %v1213 = vsub.s32 0, %v1212
        %v1214 = vrot.slane %v1206, %v1213
        %vm1215 = vcmp.eq.s32.totalorder %v262, %v1210
        %vm1216 = vcmp.eq.s32.totalorder %v262, %v1214
        %vm1217 = vcmp.eq.s32.totalorder %v263, %v1210
        %vm1218 = vcmp.eq.s32.totalorder %v263, %v1214
        %vm1219 = vcmp.eq.s32.totalorder %v264, %v1210
        %vm1220 = vcmp.eq.s32.totalorder %v264, %v1214
        %vm1221 = vcmp.eq.s32.totalorder %v265, %v1210
        %vm1222 = vcmp.eq.s32.totalorder %v265, %v1214
        %vm1223 = vcmp.eq.s32.totalorder %v266, %v1210
        %vm1224 = vcmp.eq.s32.totalorder %v266, %v1214
        %vm1225 = vcmp.eq.s32.totalorder %v267, %v1210
        %vm1226 = vcmp.eq.s32.totalorder %v267, %v1214
        %vm1227 = vcmp.eq.s32.totalorder %v268, %v1210
        %vm1228 = vcmp.eq.s32.totalorder %v268, %v1214
        %vm1229 = vcmp.eq.s32.totalorder %v269, %v1210
        %vm1230 = vcmp.eq.s32.totalorder %v269, %v1214
        %vm1231 = vcmp.eq.s32.totalorder %v270, %v1210
        %vm1232 = vcmp.eq.s32.totalorder %v270, %v1214
        %vm1233 = vcmp.eq.s32.totalorder %v271, %v1210
        %vm1234 = vcmp.eq.s32.totalorder %v271, %v1214
        %vm1235 = vcmp.eq.s32.totalorder %v272, %v1210
        %vm1236 = vcmp.eq.s32.totalorder %v272, %v1214
        %vm1237 = vcmp.eq.s32.totalorder %v273, %v1210
        %vm1238 = vcmp.eq.s32.totalorder %v273, %v1214
        %vm1239 = vcmp.eq.s32.totalorder %v274, %v1210
        %vm1240 = vcmp.eq.s32.totalorder %v274, %v1214
        %vm1241 = vcmp.eq.s32.totalorder %v275, %v1210
        %vm1242 = vcmp.eq.s32.totalorder %v275, %v1214
        %vm1243 = vcmp.eq.s32.totalorder %v276, %v1210
        %vm1244 = vcmp.eq.s32.totalorder %v276, %v1214
        %vm1245 = vcmp.eq.s32.totalorder %v277, %v1210
        %vm1246 = vcmp.eq.s32.totalorder %v277, %v1214
        %vm1247 = vcmp.eq.s32.totalorder %v278, %v1210
        %vm1248 = vcmp.eq.s32.totalorder %v278, %v1214
        %vm1249 = vcmp.eq.s32.totalorder %v279, %v1210
        %vm1250 = vcmp.eq.s32.totalorder %v279, %v1214
        %vm1251 = vcmp.eq.s32.totalorder %v280, %v1210
        %vm1252 = vcmp.eq.s32.totalorder %v280, %v1214
        %vm1253 = vcmp.eq.s32.totalorder %v281, %v1210
        %vm1254 = vcmp.eq.s32.totalorder %v281, %v1214
        %vm1255 = vcmp.eq.s32.totalorder %v282, %v1210
        %vm1256 = vcmp.eq.s32.totalorder %v282, %v1214
        %vm1257 = vcmp.eq.s32.totalorder %v283, %v1210
        %vm1258 = vcmp.eq.s32.totalorder %v283, %v1214
        %vm1259 = vcmp.eq.s32.totalorder %v284, %v1210
        %vm1260 = vcmp.eq.s32.totalorder %v284, %v1214
        %vm1261 = vcmp.eq.s32.totalorder %v285, %v1210
        %vm1262 = vcmp.eq.s32.totalorder %v285, %v1214
        %vm1263 = vcmp.eq.s32.totalorder %v286, %v1210
        %vm1264 = vcmp.eq.s32.totalorder %v286, %v1214
        %vm1265 = vcmp.eq.s32.totalorder %v287, %v1210
        %vm1266 = vcmp.eq.s32.totalorder %v287, %v1214
        %vm1267 = vcmp.eq.s32.totalorder %v288, %v1210
        %vm1268 = vcmp.eq.s32.totalorder %v288, %v1214
        %vm1269 = vcmp.eq.s32.totalorder %v289, %v1210
        %vm1270 = vcmp.eq.s32.totalorder %v289, %v1214
        %vm1271 = vcmp.eq.s32.totalorder %v290, %v1210
        %vm1272 = vcmp.eq.s32.totalorder %v290, %v1214
        %vm1273 = vcmp.eq.s32.totalorder %v291, %v1210
        %vm1274 = vcmp.eq.s32.totalorder %v291, %v1214
        %vm1275 = vcmp.eq.s32.totalorder %v292, %v1210
        %vm1276 = vcmp.eq.s32.totalorder %v292, %v1214
        %vm1277 = vcmp.eq.s32.totalorder %v293, %v1210
        %vm1278 = vcmp.eq.s32.totalorder %v293, %v1214
        %vm1279 = vcmp.eq.s32.totalorder %v294, %v1210
        %vm1280 = vcmp.eq.s32.totalorder %v294, %v1214
        %vm1281 = vcmp.eq.s32.totalorder %v295, %v1210
        %vm1282 = vcmp.eq.s32.totalorder %v295, %v1214
        %vm1283 = vcmp.eq.s32.totalorder %v296, %v1210
        %vm1284 = vcmp.eq.s32.totalorder %v296, %v1214
        %vm1285 = vcmp.eq.s32.totalorder %v297, %v1210
        %vm1286 = vcmp.eq.s32.totalorder %v297, %v1214
        %vm1287 = vcmp.eq.s32.totalorder %v298, %v1210
        %vm1288 = vcmp.eq.s32.totalorder %v298, %v1214
        %vm1289 = vcmp.eq.s32.totalorder %v299, %v1210
        %vm1290 = vcmp.eq.s32.totalorder %v299, %v1214
        %vm1291 = vcmp.eq.s32.totalorder %v300, %v1210
        %vm1292 = vcmp.eq.s32.totalorder %v300, %v1214
        %vm1293 = vcmp.eq.s32.totalorder %v301, %v1210
        %vm1294 = vcmp.eq.s32.totalorder %v301, %v1214
        %vm1295 = vcmp.eq.s32.totalorder %v302, %v1210
        %vm1296 = vcmp.eq.s32.totalorder %v302, %v1214
        %vm1297 = vcmp.eq.s32.totalorder %v303, %v1210
        %vm1298 = vcmp.eq.s32.totalorder %v303, %v1214
        %vm1299 = vcmp.eq.s32.totalorder %v304, %v1210
        %vm1300 = vcmp.eq.s32.totalorder %v304, %v1214
        %vm1301 = vcmp.eq.s32.totalorder %v305, %v1210
        %vm1302 = vcmp.eq.s32.totalorder %v305, %v1214
        %vm1303 = vcmp.eq.s32.totalorder %v306, %v1210
        %vm1304 = vcmp.eq.s32.totalorder %v306, %v1214
        %vm1305 = vcmp.eq.s32.totalorder %v307, %v1210
        %vm1306 = vcmp.eq.s32.totalorder %v307, %v1214
        %vm1307 = vcmp.eq.s32.totalorder %v308, %v1210
        %vm1308 = vcmp.eq.s32.totalorder %v308, %v1214
        %vm1309 = vcmp.eq.s32.totalorder %v309, %v1210
        %vm1310 = vcmp.eq.s32.totalorder %v309, %v1214
        %vm1311 = vcmp.eq.s32.totalorder %v310, %v1210
        %vm1312 = vcmp.eq.s32.totalorder %v310, %v1214
        %vm1313 = vcmp.eq.s32.totalorder %v311, %v1210
        %vm1314 = vcmp.eq.s32.totalorder %v311, %v1214
        %vm1315 = vcmp.eq.s32.totalorder %v312, %v1210
        %vm1316 = vcmp.eq.s32.totalorder %v312, %v1214
        %vm1317 = vcmp.eq.s32.totalorder %v313, %v1210
        %vm1318 = vcmp.eq.s32.totalorder %v313, %v1214
        %vm1319 = vcmp.eq.s32.totalorder %v314, %v1210
        %vm1320 = vcmp.eq.s32.totalorder %v314, %v1214
        %vm1321 = vcmp.eq.s32.totalorder %v315, %v1210
        %vm1322 = vcmp.eq.s32.totalorder %v315, %v1214
        %vm1323 = vcmp.eq.s32.totalorder %v316, %v1210
        %vm1324 = vcmp.eq.s32.totalorder %v316, %v1214
        %vm1325 = vcmp.eq.s32.totalorder %v317, %v1210
        %vm1326 = vcmp.eq.s32.totalorder %v317, %v1214
        %vm1327 = vcmp.eq.s32.totalorder %v318, %v1210
        %vm1328 = vcmp.eq.s32.totalorder %v318, %v1214
        %vm1329 = vcmp.eq.s32.totalorder %v319, %v1210
        %vm1330 = vcmp.eq.s32.totalorder %v319, %v1214
        %vm1331 = vcmp.eq.s32.totalorder %v320, %v1210
        %vm1332 = vcmp.eq.s32.totalorder %v320, %v1214
        %vm1333 = vcmp.eq.s32.totalorder %v321, %v1210
        %vm1334 = vcmp.eq.s32.totalorder %v321, %v1214
        %vm1335 = vcmp.eq.s32.totalorder %v322, %v1210
        %vm1336 = vcmp.eq.s32.totalorder %v322, %v1214
        %vm1337 = vcmp.eq.s32.totalorder %v323, %v1210
        %vm1338 = vcmp.eq.s32.totalorder %v323, %v1214
        %vm1339 = vcmp.eq.s32.totalorder %v324, %v1210
        %vm1340 = vcmp.eq.s32.totalorder %v324, %v1214
        %vm1341 = vcmp.eq.s32.totalorder %v325, %v1210
        %vm1342 = vcmp.eq.s32.totalorder %v325, %v1214
        %v1344 = vlaneseq
        %v1345 = vshrl.u32 %v1344, 7
        %v1346 = vsub.s32 0, %v1345
        %v1347 = vrot.slane %v1198, %v1346
        %v1348 = vlaneseq
        %v1349 = vshrl.u32 %v1348, 7
        %v1350 = vsub.s32 4, %v1349
        %v1351 = vrot.slane %v1198, %v1350
        %v1354 = vlaneseq
        %v1355 = vshrl.u32 %v1354, 7
        %v1356 = vsub.s32 0, %v1355
        %v1357 = vrot.slane %v1347, %v1356
        %v1358 = vlaneseq
        %v1359 = vshrl.u32 %v1358, 7
        %v1360 = vsub.s32 0, %v1359
        %v1361 = vrot.slane %v1351, %v1360
        %v1362 = vsel %vm1215, %v1357, 0.0
        %v1363 = vsel %vm1216, %v1361, 0.0
        %v1364 = vsel %vm1217, %v1357, 0.0
        %v1365 = vsel %vm1218, %v1361, 0.0
        %v1366 = vsel %vm1219, %v1357, 0.0
        %v1367 = vsel %vm1220, %v1361, 0.0
        %v1368 = vsel %vm1221, %v1357, 0.0
        %v1369 = vsel %vm1222, %v1361, 0.0
        %v1370 = vsel %vm1223, %v1357, 0.0
        %v1371 = vsel %vm1224, %v1361, 0.0
        %v1372 = vsel %vm1225, %v1357, 0.0
        %v1373 = vsel %vm1226, %v1361, 0.0
        %v1374 = vsel %vm1227, %v1357, 0.0
        %v1375 = vsel %vm1228, %v1361, 0.0
        %v1376 = vsel %vm1229, %v1357, 0.0
        %v1377 = vsel %vm1230, %v1361, 0.0
        %v1378 = vsel %vm1231, %v1357, 0.0
        %v1379 = vsel %vm1232, %v1361, 0.0
        %v1380 = vsel %vm1233, %v1357, 0.0
        %v1381 = vsel %vm1234, %v1361, 0.0
        %v1382 = vsel %vm1235, %v1357, 0.0
        %v1383 = vsel %vm1236, %v1361, 0.0
        %v1384 = vsel %vm1237, %v1357, 0.0
        %v1385 = vsel %vm1238, %v1361, 0.0
        %v1386 = vsel %vm1239, %v1357, 0.0
        %v1387 = vsel %vm1240, %v1361, 0.0
        %v1388 = vsel %vm1241, %v1357, 0.0
        %v1389 = vsel %vm1242, %v1361, 0.0
        %v1390 = vsel %vm1243, %v1357, 0.0
        %v1391 = vsel %vm1244, %v1361, 0.0
        %v1392 = vsel %vm1245, %v1357, 0.0
        %v1393 = vsel %vm1246, %v1361, 0.0
        %v1394 = vsel %vm1247, %v1357, 0.0
        %v1395 = vsel %vm1248, %v1361, 0.0
        %v1396 = vsel %vm1249, %v1357, 0.0
        %v1397 = vsel %vm1250, %v1361, 0.0
        %v1398 = vsel %vm1251, %v1357, 0.0
        %v1399 = vsel %vm1252, %v1361, 0.0
        %v1400 = vsel %vm1253, %v1357, 0.0
        %v1401 = vsel %vm1254, %v1361, 0.0
        %v1402 = vsel %vm1255, %v1357, 0.0
        %v1403 = vsel %vm1256, %v1361, 0.0
        %v1404 = vsel %vm1257, %v1357, 0.0
        %v1405 = vsel %vm1258, %v1361, 0.0
        %v1406 = vsel %vm1259, %v1357, 0.0
        %v1407 = vsel %vm1260, %v1361, 0.0
        %v1408 = vsel %vm1261, %v1357, 0.0
        %v1409 = vsel %vm1262, %v1361, 0.0
        %v1410 = vsel %vm1263, %v1357, 0.0
        %v1411 = vsel %vm1264, %v1361, 0.0
        %v1412 = vsel %vm1265, %v1357, 0.0
        %v1413 = vsel %vm1266, %v1361, 0.0
        %v1414 = vsel %vm1267, %v1357, 0.0
        %v1415 = vsel %vm1268, %v1361, 0.0
        %v1416 = vsel %vm1269, %v1357, 0.0
        %v1417 = vsel %vm1270, %v1361, 0.0
        %v1418 = vsel %vm1271, %v1357, 0.0
        %v1419 = vsel %vm1272, %v1361, 0.0
        %v1420 = vsel %vm1273, %v1357, 0.0
        %v1421 = vsel %vm1274, %v1361, 0.0
        %v1422 = vsel %vm1275, %v1357, 0.0
        %v1423 = vsel %vm1276, %v1361, 0.0
        %v1424 = vsel %vm1277, %v1357, 0.0
        %v1425 = vsel %vm1278, %v1361, 0.0
        %v1426 = vsel %vm1279, %v1357, 0.0
        %v1427 = vsel %vm1280, %v1361, 0.0
        %v1428 = vsel %vm1281, %v1357, 0.0
        %v1429 = vsel %vm1282, %v1361, 0.0
        %v1430 = vsel %vm1283, %v1357, 0.0
        %v1431 = vsel %vm1284, %v1361, 0.0
        %v1432 = vsel %vm1285, %v1357, 0.0
        %v1433 = vsel %vm1286, %v1361, 0.0
        %v1434 = vsel %vm1287, %v1357, 0.0
        %v1435 = vsel %vm1288, %v1361, 0.0
        %v1436 = vsel %vm1289, %v1357, 0.0
        %v1437 = vsel %vm1290, %v1361, 0.0
        %v1438 = vsel %vm1291, %v1357, 0.0
        %v1439 = vsel %vm1292, %v1361, 0.0
        %v1440 = vsel %vm1293, %v1357, 0.0
        %v1441 = vsel %vm1294, %v1361, 0.0
        %v1442 = vsel %vm1295, %v1357, 0.0
        %v1443 = vsel %vm1296, %v1361, 0.0
        %v1444 = vsel %vm1297, %v1357, 0.0
        %v1445 = vsel %vm1298, %v1361, 0.0
        %v1446 = vsel %vm1299, %v1357, 0.0
        %v1447 = vsel %vm1300, %v1361, 0.0
        %v1448 = vsel %vm1301, %v1357, 0.0
        %v1449 = vsel %vm1302, %v1361, 0.0
        %v1450 = vsel %vm1303, %v1357, 0.0
        %v1451 = vsel %vm1304, %v1361, 0.0
        %v1452 = vsel %vm1305, %v1357, 0.0
        %v1453 = vsel %vm1306, %v1361, 0.0
        %v1454 = vsel %vm1307, %v1357, 0.0
        %v1455 = vsel %vm1308, %v1361, 0.0
        %v1456 = vsel %vm1309, %v1357, 0.0
        %v1457 = vsel %vm1310, %v1361, 0.0
        %v1458 = vsel %vm1311, %v1357, 0.0
        %v1459 = vsel %vm1312, %v1361, 0.0
        %v1460 = vsel %vm1313, %v1357, 0.0
        %v1461 = vsel %vm1314, %v1361, 0.0
        %v1462 = vsel %vm1315, %v1357, 0.0
        %v1463 = vsel %vm1316, %v1361, 0.0
        %v1464 = vsel %vm1317, %v1357, 0.0
        %v1465 = vsel %vm1318, %v1361, 0.0
        %v1466 = vsel %vm1319, %v1357, 0.0
        %v1467 = vsel %vm1320, %v1361, 0.0
        %v1468 = vsel %vm1321, %v1357, 0.0
        %v1469 = vsel %vm1322, %v1361, 0.0
        %v1470 = vsel %vm1323, %v1357, 0.0
        %v1471 = vsel %vm1324, %v1361, 0.0
        %v1472 = vsel %vm1325, %v1357, 0.0
        %v1473 = vsel %vm1326, %v1361, 0.0
        %v1474 = vsel %vm1327, %v1357, 0.0
        %v1475 = vsel %vm1328, %v1361, 0.0
        %v1476 = vsel %vm1329, %v1357, 0.0
        %v1477 = vsel %vm1330, %v1361, 0.0
        %v1478 = vsel %vm1331, %v1357, 0.0
        %v1479 = vsel %vm1332, %v1361, 0.0
        %v1480 = vsel %vm1333, %v1357, 0.0
        %v1481 = vsel %vm1334, %v1361, 0.0
        %v1482 = vsel %vm1335, %v1357, 0.0
        %v1483 = vsel %vm1336, %v1361, 0.0
        %v1484 = vsel %vm1337, %v1357, 0.0
        %v1485 = vsel %vm1338, %v1361, 0.0
        %v1486 = vsel %vm1339, %v1357, 0.0
        %v1487 = vsel %vm1340, %v1361, 0.0
        %v1488 = vsel %vm1341, %v1357, 0.0
        %v1489 = vsel %vm1342, %v1361, 0.0
        %v1490 = vadd.f32 %v1061, %v1362
        %v1491 = vadd.f32 %v1062, %v1363
        %v1492 = vadd.f32 %v1063, %v1364
        %v1493 = vadd.f32 %v1064, %v1365
        %v1494 = vadd.f32 %v1065, %v1366
        %v1495 = vadd.f32 %v1066, %v1367
        %v1496 = vadd.f32 %v1067, %v1368
        %v1497 = vadd.f32 %v1068, %v1369
        %v1498 = vadd.f32 %v1069, %v1370
        %v1499 = vadd.f32 %v1070, %v1371
        %v1500 = vadd.f32 %v1071, %v1372
        %v1501 = vadd.f32 %v1072, %v1373
        %v1502 = vadd.f32 %v1073, %v1374
        %v1503 = vadd.f32 %v1074, %v1375
        %v1504 = vadd.f32 %v1075, %v1376
        %v1505 = vadd.f32 %v1076, %v1377
        %v1506 = vadd.f32 %v1077, %v1378
        %v1507 = vadd.f32 %v1078, %v1379
        %v1508 = vadd.f32 %v1079, %v1380
        %v1509 = vadd.f32 %v1080, %v1381
        %v1510 = vadd.f32 %v1081, %v1382
        %v1511 = vadd.f32 %v1082, %v1383
        %v1512 = vadd.f32 %v1083, %v1384
        %v1513 = vadd.f32 %v1084, %v1385
        %v1514 = vadd.f32 %v1085, %v1386
        %v1515 = vadd.f32 %v1086, %v1387
        %v1516 = vadd.f32 %v1087, %v1388
        %v1517 = vadd.f32 %v1088, %v1389
        %v1518 = vadd.f32 %v1089, %v1390
        %v1519 = vadd.f32 %v1090, %v1391
        %v1520 = vadd.f32 %v1091, %v1392
        %v1521 = vadd.f32 %v1092, %v1393
        %v1522 = vadd.f32 %v1093, %v1394
        %v1523 = vadd.f32 %v1094, %v1395
        %v1524 = vadd.f32 %v1095, %v1396
        %v1525 = vadd.f32 %v1096, %v1397
        %v1526 = vadd.f32 %v1097, %v1398
        %v1527 = vadd.f32 %v1098, %v1399
        %v1528 = vadd.f32 %v1099, %v1400
        %v1529 = vadd.f32 %v1100, %v1401
        %v1530 = vadd.f32 %v1101, %v1402
        %v1531 = vadd.f32 %v1102, %v1403
        %v1532 = vadd.f32 %v1103, %v1404
        %v1533 = vadd.f32 %v1104, %v1405
        %v1534 = vadd.f32 %v1105, %v1406
        %v1535 = vadd.f32 %v1106, %v1407
        %v1536 = vadd.f32 %v1107, %v1408
        %v1537 = vadd.f32 %v1108, %v1409
        %v1538 = vadd.f32 %v1109, %v1410
        %v1539 = vadd.f32 %v1110, %v1411
        %v1540 = vadd.f32 %v1111, %v1412
        %v1541 = vadd.f32 %v1112, %v1413
        %v1542 = vadd.f32 %v1113, %v1414
        %v1543 = vadd.f32 %v1114, %v1415
        %v1544 = vadd.f32 %v1115, %v1416
        %v1545 = vadd.f32 %v1116, %v1417
        %v1546 = vadd.f32 %v1117, %v1418
        %v1547 = vadd.f32 %v1118, %v1419
        %v1548 = vadd.f32 %v1119, %v1420
        %v1549 = vadd.f32 %v1120, %v1421
        %v1550 = vadd.f32 %v1121, %v1422
        %v1551 = vadd.f32 %v1122, %v1423
        %v1552 = vadd.f32 %v1123, %v1424
        %v1553 = vadd.f32 %v1124, %v1425
        %v1554 = vadd.f32 %v1125, %v1426
        %v1555 = vadd.f32 %v1126, %v1427
        %v1556 = vadd.f32 %v1127, %v1428
        %v1557 = vadd.f32 %v1128, %v1429
        %v1558 = vadd.f32 %v1129, %v1430
        %v1559 = vadd.f32 %v1130, %v1431
        %v1560 = vadd.f32 %v1131, %v1432
        %v1561 = vadd.f32 %v1132, %v1433
        %v1562 = vadd.f32 %v1133, %v1434
        %v1563 = vadd.f32 %v1134, %v1435
        %v1564 = vadd.f32 %v1135, %v1436
        %v1565 = vadd.f32 %v1136, %v1437
        %v1566 = vadd.f32 %v1137, %v1438
        %v1567 = vadd.f32 %v1138, %v1439
        %v1568 = vadd.f32 %v1139, %v1440
        %v1569 = vadd.f32 %v1140, %v1441
        %v1570 = vadd.f32 %v1141, %v1442
        %v1571 = vadd.f32 %v1142, %v1443
        %v1572 = vadd.f32 %v1143, %v1444
        %v1573 = vadd.f32 %v1144, %v1445
        %v1574 = vadd.f32 %v1145, %v1446
        %v1575 = vadd.f32 %v1146, %v1447
        %v1576 = vadd.f32 %v1147, %v1448
        %v1577 = vadd.f32 %v1148, %v1449
        %v1578 = vadd.f32 %v1149, %v1450
        %v1579 = vadd.f32 %v1150, %v1451
        %v1580 = vadd.f32 %v1151, %v1452
        %v1581 = vadd.f32 %v1152, %v1453
        %v1582 = vadd.f32 %v1153, %v1454
        %v1583 = vadd.f32 %v1154, %v1455
        %v1584 = vadd.f32 %v1155, %v1456
        %v1585 = vadd.f32 %v1156, %v1457
        %v1586 = vadd.f32 %v1157, %v1458
        %v1587 = vadd.f32 %v1158, %v1459
        %v1588 = vadd.f32 %v1159, %v1460
        %v1589 = vadd.f32 %v1160, %v1461
        %v1590 = vadd.f32 %v1161, %v1462
        %v1591 = vadd.f32 %v1162, %v1463
        %v1592 = vadd.f32 %v1163, %v1464
        %v1593 = vadd.f32 %v1164, %v1465
        %v1594 = vadd.f32 %v1165, %v1466
        %v1595 = vadd.f32 %v1166, %v1467
        %v1596 = vadd.f32 %v1167, %v1468
        %v1597 = vadd.f32 %v1168, %v1469
        %v1598 = vadd.f32 %v1169, %v1470
        %v1599 = vadd.f32 %v1170, %v1471
        %v1600 = vadd.f32 %v1171, %v1472
        %v1601 = vadd.f32 %v1172, %v1473
        %v1602 = vadd.f32 %v1173, %v1474
        %v1603 = vadd.f32 %v1174, %v1475
        %v1604 = vadd.f32 %v1175, %v1476
        %v1605 = vadd.f32 %v1176, %v1477
        %v1606 = vadd.f32 %v1177, %v1478
        %v1607 = vadd.f32 %v1178, %v1479
        %v1608 = vadd.f32 %v1179, %v1480
        %v1609 = vadd.f32 %v1180, %v1481
        %v1610 = vadd.f32 %v1181, %v1482
        %v1611 = vadd.f32 %v1182, %v1483
        %v1612 = vadd.f32 %v1183, %v1484
        %v1613 = vadd.f32 %v1184, %v1485
        %v1614 = vadd.f32 %v1185, %v1486
        %v1615 = vadd.f32 %v1186, %v1487
        %v1616 = vadd.f32 %v1187, %v1488
        %v1617 = vadd.f32 %v1188, %v1489
        %v1618 = vadd.s32 %v1191, %v762
        %v1619 = vand.u32 %v1618, 511
        %v1620 = vmul.f32 %v1197, %v767
        %v1621 = vlaneseq
        %v1622 = vshrl.u32 %v1621, 7
        %v1623 = vsub.s32 0, %v1622
        %v1624 = vrot.slane %v1619, %v1623
        %v1625 = vlaneseq
        %v1626 = vshrl.u32 %v1625, 7
        %v1627 = vsub.s32 4, %v1626
        %v1628 = vrot.slane %v1619, %v1627
        %v1629 = vlaneseq
        %v1630 = vshrl.u32 %v1629, 7
        %v1631 = vsub.s32 0, %v1630
        %v1632 = vrot.slane %v1624, %v1631
        %v1633 = vlaneseq
        %v1634 = vshrl.u32 %v1633, 7
        %v1635 = vsub.s32 0, %v1634
        %v1636 = vrot.slane %v1628, %v1635
        %vm1637 = vcmp.eq.s32.totalorder %v262, %v1632
        %vm1638 = vcmp.eq.s32.totalorder %v262, %v1636
        %vm1639 = vcmp.eq.s32.totalorder %v263, %v1632
        %vm1640 = vcmp.eq.s32.totalorder %v263, %v1636
        %vm1641 = vcmp.eq.s32.totalorder %v264, %v1632
        %vm1642 = vcmp.eq.s32.totalorder %v264, %v1636
        %vm1643 = vcmp.eq.s32.totalorder %v265, %v1632
        %vm1644 = vcmp.eq.s32.totalorder %v265, %v1636
        %vm1645 = vcmp.eq.s32.totalorder %v266, %v1632
        %vm1646 = vcmp.eq.s32.totalorder %v266, %v1636
        %vm1647 = vcmp.eq.s32.totalorder %v267, %v1632
        %vm1648 = vcmp.eq.s32.totalorder %v267, %v1636
        %vm1649 = vcmp.eq.s32.totalorder %v268, %v1632
        %vm1650 = vcmp.eq.s32.totalorder %v268, %v1636
        %vm1651 = vcmp.eq.s32.totalorder %v269, %v1632
        %vm1652 = vcmp.eq.s32.totalorder %v269, %v1636
        %vm1653 = vcmp.eq.s32.totalorder %v270, %v1632
        %vm1654 = vcmp.eq.s32.totalorder %v270, %v1636
        %vm1655 = vcmp.eq.s32.totalorder %v271, %v1632
        %vm1656 = vcmp.eq.s32.totalorder %v271, %v1636
        %vm1657 = vcmp.eq.s32.totalorder %v272, %v1632
        %vm1658 = vcmp.eq.s32.totalorder %v272, %v1636
        %vm1659 = vcmp.eq.s32.totalorder %v273, %v1632
        %vm1660 = vcmp.eq.s32.totalorder %v273, %v1636
        %vm1661 = vcmp.eq.s32.totalorder %v274, %v1632
        %vm1662 = vcmp.eq.s32.totalorder %v274, %v1636
        %vm1663 = vcmp.eq.s32.totalorder %v275, %v1632
        %vm1664 = vcmp.eq.s32.totalorder %v275, %v1636
        %vm1665 = vcmp.eq.s32.totalorder %v276, %v1632
        %vm1666 = vcmp.eq.s32.totalorder %v276, %v1636
        %vm1667 = vcmp.eq.s32.totalorder %v277, %v1632
        %vm1668 = vcmp.eq.s32.totalorder %v277, %v1636
        %vm1669 = vcmp.eq.s32.totalorder %v278, %v1632
        %vm1670 = vcmp.eq.s32.totalorder %v278, %v1636
        %vm1671 = vcmp.eq.s32.totalorder %v279, %v1632
        %vm1672 = vcmp.eq.s32.totalorder %v279, %v1636
        %vm1673 = vcmp.eq.s32.totalorder %v280, %v1632
        %vm1674 = vcmp.eq.s32.totalorder %v280, %v1636
        %vm1675 = vcmp.eq.s32.totalorder %v281, %v1632
        %vm1676 = vcmp.eq.s32.totalorder %v281, %v1636
        %vm1677 = vcmp.eq.s32.totalorder %v282, %v1632
        %vm1678 = vcmp.eq.s32.totalorder %v282, %v1636
        %vm1679 = vcmp.eq.s32.totalorder %v283, %v1632
        %vm1680 = vcmp.eq.s32.totalorder %v283, %v1636
        %vm1681 = vcmp.eq.s32.totalorder %v284, %v1632
        %vm1682 = vcmp.eq.s32.totalorder %v284, %v1636
        %vm1683 = vcmp.eq.s32.totalorder %v285, %v1632
        %vm1684 = vcmp.eq.s32.totalorder %v285, %v1636
        %vm1685 = vcmp.eq.s32.totalorder %v286, %v1632
        %vm1686 = vcmp.eq.s32.totalorder %v286, %v1636
        %vm1687 = vcmp.eq.s32.totalorder %v287, %v1632
        %vm1688 = vcmp.eq.s32.totalorder %v287, %v1636
        %vm1689 = vcmp.eq.s32.totalorder %v288, %v1632
        %vm1690 = vcmp.eq.s32.totalorder %v288, %v1636
        %vm1691 = vcmp.eq.s32.totalorder %v289, %v1632
        %vm1692 = vcmp.eq.s32.totalorder %v289, %v1636
        %vm1693 = vcmp.eq.s32.totalorder %v290, %v1632
        %vm1694 = vcmp.eq.s32.totalorder %v290, %v1636
        %vm1695 = vcmp.eq.s32.totalorder %v291, %v1632
        %vm1696 = vcmp.eq.s32.totalorder %v291, %v1636
        %vm1697 = vcmp.eq.s32.totalorder %v292, %v1632
        %vm1698 = vcmp.eq.s32.totalorder %v292, %v1636
        %vm1699 = vcmp.eq.s32.totalorder %v293, %v1632
        %vm1700 = vcmp.eq.s32.totalorder %v293, %v1636
        %vm1701 = vcmp.eq.s32.totalorder %v294, %v1632
        %vm1702 = vcmp.eq.s32.totalorder %v294, %v1636
        %vm1703 = vcmp.eq.s32.totalorder %v295, %v1632
        %vm1704 = vcmp.eq.s32.totalorder %v295, %v1636
        %vm1705 = vcmp.eq.s32.totalorder %v296, %v1632
        %vm1706 = vcmp.eq.s32.totalorder %v296, %v1636
        %vm1707 = vcmp.eq.s32.totalorder %v297, %v1632
        %vm1708 = vcmp.eq.s32.totalorder %v297, %v1636
        %vm1709 = vcmp.eq.s32.totalorder %v298, %v1632
        %vm1710 = vcmp.eq.s32.totalorder %v298, %v1636
        %vm1711 = vcmp.eq.s32.totalorder %v299, %v1632
        %vm1712 = vcmp.eq.s32.totalorder %v299, %v1636
        %vm1713 = vcmp.eq.s32.totalorder %v300, %v1632
        %vm1714 = vcmp.eq.s32.totalorder %v300, %v1636
        %vm1715 = vcmp.eq.s32.totalorder %v301, %v1632
        %vm1716 = vcmp.eq.s32.totalorder %v301, %v1636
        %vm1717 = vcmp.eq.s32.totalorder %v302, %v1632
        %vm1718 = vcmp.eq.s32.totalorder %v302, %v1636
        %vm1719 = vcmp.eq.s32.totalorder %v303, %v1632
        %vm1720 = vcmp.eq.s32.totalorder %v303, %v1636
        %vm1721 = vcmp.eq.s32.totalorder %v304, %v1632
        %vm1722 = vcmp.eq.s32.totalorder %v304, %v1636
        %vm1723 = vcmp.eq.s32.totalorder %v305, %v1632
        %vm1724 = vcmp.eq.s32.totalorder %v305, %v1636
        %vm1725 = vcmp.eq.s32.totalorder %v306, %v1632
        %vm1726 = vcmp.eq.s32.totalorder %v306, %v1636
        %vm1727 = vcmp.eq.s32.totalorder %v307, %v1632
        %vm1728 = vcmp.eq.s32.totalorder %v307, %v1636
        %vm1729 = vcmp.eq.s32.totalorder %v308, %v1632
        %vm1730 = vcmp.eq.s32.totalorder %v308, %v1636
        %vm1731 = vcmp.eq.s32.totalorder %v309, %v1632
        %vm1732 = vcmp.eq.s32.totalorder %v309, %v1636
        %vm1733 = vcmp.eq.s32.totalorder %v310, %v1632
        %vm1734 = vcmp.eq.s32.totalorder %v310, %v1636
        %vm1735 = vcmp.eq.s32.totalorder %v311, %v1632
        %vm1736 = vcmp.eq.s32.totalorder %v311, %v1636
        %vm1737 = vcmp.eq.s32.totalorder %v312, %v1632
        %vm1738 = vcmp.eq.s32.totalorder %v312, %v1636
        %vm1739 = vcmp.eq.s32.totalorder %v313, %v1632
        %vm1740 = vcmp.eq.s32.totalorder %v313, %v1636
        %vm1741 = vcmp.eq.s32.totalorder %v314, %v1632
        %vm1742 = vcmp.eq.s32.totalorder %v314, %v1636
        %vm1743 = vcmp.eq.s32.totalorder %v315, %v1632
        %vm1744 = vcmp.eq.s32.totalorder %v315, %v1636
        %vm1745 = vcmp.eq.s32.totalorder %v316, %v1632
        %vm1746 = vcmp.eq.s32.totalorder %v316, %v1636
        %vm1747 = vcmp.eq.s32.totalorder %v317, %v1632
        %vm1748 = vcmp.eq.s32.totalorder %v317, %v1636
        %vm1749 = vcmp.eq.s32.totalorder %v318, %v1632
        %vm1750 = vcmp.eq.s32.totalorder %v318, %v1636
        %vm1751 = vcmp.eq.s32.totalorder %v319, %v1632
        %vm1752 = vcmp.eq.s32.totalorder %v319, %v1636
        %vm1753 = vcmp.eq.s32.totalorder %v320, %v1632
        %vm1754 = vcmp.eq.s32.totalorder %v320, %v1636
        %vm1755 = vcmp.eq.s32.totalorder %v321, %v1632
        %vm1756 = vcmp.eq.s32.totalorder %v321, %v1636
        %vm1757 = vcmp.eq.s32.totalorder %v322, %v1632
        %vm1758 = vcmp.eq.s32.totalorder %v322, %v1636
        %vm1759 = vcmp.eq.s32.totalorder %v323, %v1632
        %vm1760 = vcmp.eq.s32.totalorder %v323, %v1636
        %vm1761 = vcmp.eq.s32.totalorder %v324, %v1632
        %vm1762 = vcmp.eq.s32.totalorder %v324, %v1636
        %vm1763 = vcmp.eq.s32.totalorder %v325, %v1632
        %vm1764 = vcmp.eq.s32.totalorder %v325, %v1636
        %v1766 = vlaneseq
        %v1767 = vshrl.u32 %v1766, 7
        %v1768 = vsub.s32 0, %v1767
        %v1769 = vrot.slane %v1620, %v1768
        %v1770 = vlaneseq
        %v1771 = vshrl.u32 %v1770, 7
        %v1772 = vsub.s32 4, %v1771
        %v1773 = vrot.slane %v1620, %v1772
        %v1776 = vlaneseq
        %v1777 = vshrl.u32 %v1776, 7
        %v1778 = vsub.s32 0, %v1777
        %v1779 = vrot.slane %v1769, %v1778
        %v1780 = vlaneseq
        %v1781 = vshrl.u32 %v1780, 7
        %v1782 = vsub.s32 0, %v1781
        %v1783 = vrot.slane %v1773, %v1782
        %v1784 = vsel %vm1637, %v1779, 0.0
        %v1785 = vsel %vm1638, %v1783, 0.0
        %v1786 = vsel %vm1639, %v1779, 0.0
        %v1787 = vsel %vm1640, %v1783, 0.0
        %v1788 = vsel %vm1641, %v1779, 0.0
        %v1789 = vsel %vm1642, %v1783, 0.0
        %v1790 = vsel %vm1643, %v1779, 0.0
        %v1791 = vsel %vm1644, %v1783, 0.0
        %v1792 = vsel %vm1645, %v1779, 0.0
        %v1793 = vsel %vm1646, %v1783, 0.0
        %v1794 = vsel %vm1647, %v1779, 0.0
        %v1795 = vsel %vm1648, %v1783, 0.0
        %v1796 = vsel %vm1649, %v1779, 0.0
        %v1797 = vsel %vm1650, %v1783, 0.0
        %v1798 = vsel %vm1651, %v1779, 0.0
        %v1799 = vsel %vm1652, %v1783, 0.0
        %v1800 = vsel %vm1653, %v1779, 0.0
        %v1801 = vsel %vm1654, %v1783, 0.0
        %v1802 = vsel %vm1655, %v1779, 0.0
        %v1803 = vsel %vm1656, %v1783, 0.0
        %v1804 = vsel %vm1657, %v1779, 0.0
        %v1805 = vsel %vm1658, %v1783, 0.0
        %v1806 = vsel %vm1659, %v1779, 0.0
        %v1807 = vsel %vm1660, %v1783, 0.0
        %v1808 = vsel %vm1661, %v1779, 0.0
        %v1809 = vsel %vm1662, %v1783, 0.0
        %v1810 = vsel %vm1663, %v1779, 0.0
        %v1811 = vsel %vm1664, %v1783, 0.0
        %v1812 = vsel %vm1665, %v1779, 0.0
        %v1813 = vsel %vm1666, %v1783, 0.0
        %v1814 = vsel %vm1667, %v1779, 0.0
        %v1815 = vsel %vm1668, %v1783, 0.0
        %v1816 = vsel %vm1669, %v1779, 0.0
        %v1817 = vsel %vm1670, %v1783, 0.0
        %v1818 = vsel %vm1671, %v1779, 0.0
        %v1819 = vsel %vm1672, %v1783, 0.0
        %v1820 = vsel %vm1673, %v1779, 0.0
        %v1821 = vsel %vm1674, %v1783, 0.0
        %v1822 = vsel %vm1675, %v1779, 0.0
        %v1823 = vsel %vm1676, %v1783, 0.0
        %v1824 = vsel %vm1677, %v1779, 0.0
        %v1825 = vsel %vm1678, %v1783, 0.0
        %v1826 = vsel %vm1679, %v1779, 0.0
        %v1827 = vsel %vm1680, %v1783, 0.0
        %v1828 = vsel %vm1681, %v1779, 0.0
        %v1829 = vsel %vm1682, %v1783, 0.0
        %v1830 = vsel %vm1683, %v1779, 0.0
        %v1831 = vsel %vm1684, %v1783, 0.0
        %v1832 = vsel %vm1685, %v1779, 0.0
        %v1833 = vsel %vm1686, %v1783, 0.0
        %v1834 = vsel %vm1687, %v1779, 0.0
        %v1835 = vsel %vm1688, %v1783, 0.0
        %v1836 = vsel %vm1689, %v1779, 0.0
        %v1837 = vsel %vm1690, %v1783, 0.0
        %v1838 = vsel %vm1691, %v1779, 0.0
        %v1839 = vsel %vm1692, %v1783, 0.0
        %v1840 = vsel %vm1693, %v1779, 0.0
        %v1841 = vsel %vm1694, %v1783, 0.0
        %v1842 = vsel %vm1695, %v1779, 0.0
        %v1843 = vsel %vm1696, %v1783, 0.0
        %v1844 = vsel %vm1697, %v1779, 0.0
        %v1845 = vsel %vm1698, %v1783, 0.0
        %v1846 = vsel %vm1699, %v1779, 0.0
        %v1847 = vsel %vm1700, %v1783, 0.0
        %v1848 = vsel %vm1701, %v1779, 0.0
        %v1849 = vsel %vm1702, %v1783, 0.0
        %v1850 = vsel %vm1703, %v1779, 0.0
        %v1851 = vsel %vm1704, %v1783, 0.0
        %v1852 = vsel %vm1705, %v1779, 0.0
        %v1853 = vsel %vm1706, %v1783, 0.0
        %v1854 = vsel %vm1707, %v1779, 0.0
        %v1855 = vsel %vm1708, %v1783, 0.0
        %v1856 = vsel %vm1709, %v1779, 0.0
        %v1857 = vsel %vm1710, %v1783, 0.0
        %v1858 = vsel %vm1711, %v1779, 0.0
        %v1859 = vsel %vm1712, %v1783, 0.0
        %v1860 = vsel %vm1713, %v1779, 0.0
        %v1861 = vsel %vm1714, %v1783, 0.0
        %v1862 = vsel %vm1715, %v1779, 0.0
        %v1863 = vsel %vm1716, %v1783, 0.0
        %v1864 = vsel %vm1717, %v1779, 0.0
        %v1865 = vsel %vm1718, %v1783, 0.0
        %v1866 = vsel %vm1719, %v1779, 0.0
        %v1867 = vsel %vm1720, %v1783, 0.0
        %v1868 = vsel %vm1721, %v1779, 0.0
        %v1869 = vsel %vm1722, %v1783, 0.0
        %v1870 = vsel %vm1723, %v1779, 0.0
        %v1871 = vsel %vm1724, %v1783, 0.0
        %v1872 = vsel %vm1725, %v1779, 0.0
        %v1873 = vsel %vm1726, %v1783, 0.0
        %v1874 = vsel %vm1727, %v1779, 0.0
        %v1875 = vsel %vm1728, %v1783, 0.0
        %v1876 = vsel %vm1729, %v1779, 0.0
        %v1877 = vsel %vm1730, %v1783, 0.0
        %v1878 = vsel %vm1731, %v1779, 0.0
        %v1879 = vsel %vm1732, %v1783, 0.0
        %v1880 = vsel %vm1733, %v1779, 0.0
        %v1881 = vsel %vm1734, %v1783, 0.0
        %v1882 = vsel %vm1735, %v1779, 0.0
        %v1883 = vsel %vm1736, %v1783, 0.0
        %v1884 = vsel %vm1737, %v1779, 0.0
        %v1885 = vsel %vm1738, %v1783, 0.0
        %v1886 = vsel %vm1739, %v1779, 0.0
        %v1887 = vsel %vm1740, %v1783, 0.0
        %v1888 = vsel %vm1741, %v1779, 0.0
        %v1889 = vsel %vm1742, %v1783, 0.0
        %v1890 = vsel %vm1743, %v1779, 0.0
        %v1891 = vsel %vm1744, %v1783, 0.0
        %v1892 = vsel %vm1745, %v1779, 0.0
        %v1893 = vsel %vm1746, %v1783, 0.0
        %v1894 = vsel %vm1747, %v1779, 0.0
        %v1895 = vsel %vm1748, %v1783, 0.0
        %v1896 = vsel %vm1749, %v1779, 0.0
        %v1897 = vsel %vm1750, %v1783, 0.0
        %v1898 = vsel %vm1751, %v1779, 0.0
        %v1899 = vsel %vm1752, %v1783, 0.0
        %v1900 = vsel %vm1753, %v1779, 0.0
        %v1901 = vsel %vm1754, %v1783, 0.0
        %v1902 = vsel %vm1755, %v1779, 0.0
        %v1903 = vsel %vm1756, %v1783, 0.0
        %v1904 = vsel %vm1757, %v1779, 0.0
        %v1905 = vsel %vm1758, %v1783, 0.0
        %v1906 = vsel %vm1759, %v1779, 0.0
        %v1907 = vsel %vm1760, %v1783, 0.0
        %v1908 = vsel %vm1761, %v1779, 0.0
        %v1909 = vsel %vm1762, %v1783, 0.0
        %v1910 = vsel %vm1763, %v1779, 0.0
        %v1911 = vsel %vm1764, %v1783, 0.0
        %v1912 = vadd.f32 %v1490, %v1784
        %v1913 = vadd.f32 %v1491, %v1785
        %v1914 = vadd.f32 %v1492, %v1786
        %v1915 = vadd.f32 %v1493, %v1787
        %v1916 = vadd.f32 %v1494, %v1788
        %v1917 = vadd.f32 %v1495, %v1789
        %v1918 = vadd.f32 %v1496, %v1790
        %v1919 = vadd.f32 %v1497, %v1791
        %v1920 = vadd.f32 %v1498, %v1792
        %v1921 = vadd.f32 %v1499, %v1793
        %v1922 = vadd.f32 %v1500, %v1794
        %v1923 = vadd.f32 %v1501, %v1795
        %v1924 = vadd.f32 %v1502, %v1796
        %v1925 = vadd.f32 %v1503, %v1797
        %v1926 = vadd.f32 %v1504, %v1798
        %v1927 = vadd.f32 %v1505, %v1799
        %v1928 = vadd.f32 %v1506, %v1800
        %v1929 = vadd.f32 %v1507, %v1801
        %v1930 = vadd.f32 %v1508, %v1802
        %v1931 = vadd.f32 %v1509, %v1803
        %v1932 = vadd.f32 %v1510, %v1804
        %v1933 = vadd.f32 %v1511, %v1805
        %v1934 = vadd.f32 %v1512, %v1806
        %v1935 = vadd.f32 %v1513, %v1807
        %v1936 = vadd.f32 %v1514, %v1808
        %v1937 = vadd.f32 %v1515, %v1809
        %v1938 = vadd.f32 %v1516, %v1810
        %v1939 = vadd.f32 %v1517, %v1811
        %v1940 = vadd.f32 %v1518, %v1812
        %v1941 = vadd.f32 %v1519, %v1813
        %v1942 = vadd.f32 %v1520, %v1814
        %v1943 = vadd.f32 %v1521, %v1815
        %v1944 = vadd.f32 %v1522, %v1816
        %v1945 = vadd.f32 %v1523, %v1817
        %v1946 = vadd.f32 %v1524, %v1818
        %v1947 = vadd.f32 %v1525, %v1819
        %v1948 = vadd.f32 %v1526, %v1820
        %v1949 = vadd.f32 %v1527, %v1821
        %v1950 = vadd.f32 %v1528, %v1822
        %v1951 = vadd.f32 %v1529, %v1823
        %v1952 = vadd.f32 %v1530, %v1824
        %v1953 = vadd.f32 %v1531, %v1825
        %v1954 = vadd.f32 %v1532, %v1826
        %v1955 = vadd.f32 %v1533, %v1827
        %v1956 = vadd.f32 %v1534, %v1828
        %v1957 = vadd.f32 %v1535, %v1829
        %v1958 = vadd.f32 %v1536, %v1830
        %v1959 = vadd.f32 %v1537, %v1831
        %v1960 = vadd.f32 %v1538, %v1832
        %v1961 = vadd.f32 %v1539, %v1833
        %v1962 = vadd.f32 %v1540, %v1834
        %v1963 = vadd.f32 %v1541, %v1835
        %v1964 = vadd.f32 %v1542, %v1836
        %v1965 = vadd.f32 %v1543, %v1837
        %v1966 = vadd.f32 %v1544, %v1838
        %v1967 = vadd.f32 %v1545, %v1839
        %v1968 = vadd.f32 %v1546, %v1840
        %v1969 = vadd.f32 %v1547, %v1841
        %v1970 = vadd.f32 %v1548, %v1842
        %v1971 = vadd.f32 %v1549, %v1843
        %v1972 = vadd.f32 %v1550, %v1844
        %v1973 = vadd.f32 %v1551, %v1845
        %v1974 = vadd.f32 %v1552, %v1846
        %v1975 = vadd.f32 %v1553, %v1847
        %v1976 = vadd.f32 %v1554, %v1848
        %v1977 = vadd.f32 %v1555, %v1849
        %v1978 = vadd.f32 %v1556, %v1850
        %v1979 = vadd.f32 %v1557, %v1851
        %v1980 = vadd.f32 %v1558, %v1852
        %v1981 = vadd.f32 %v1559, %v1853
        %v1982 = vadd.f32 %v1560, %v1854
        %v1983 = vadd.f32 %v1561, %v1855
        %v1984 = vadd.f32 %v1562, %v1856
        %v1985 = vadd.f32 %v1563, %v1857
        %v1986 = vadd.f32 %v1564, %v1858
        %v1987 = vadd.f32 %v1565, %v1859
        %v1988 = vadd.f32 %v1566, %v1860
        %v1989 = vadd.f32 %v1567, %v1861
        %v1990 = vadd.f32 %v1568, %v1862
        %v1991 = vadd.f32 %v1569, %v1863
        %v1992 = vadd.f32 %v1570, %v1864
        %v1993 = vadd.f32 %v1571, %v1865
        %v1994 = vadd.f32 %v1572, %v1866
        %v1995 = vadd.f32 %v1573, %v1867
        %v1996 = vadd.f32 %v1574, %v1868
        %v1997 = vadd.f32 %v1575, %v1869
        %v1998 = vadd.f32 %v1576, %v1870
        %v1999 = vadd.f32 %v1577, %v1871
        %v2000 = vadd.f32 %v1578, %v1872
        %v2001 = vadd.f32 %v1579, %v1873
        %v2002 = vadd.f32 %v1580, %v1874
        %v2003 = vadd.f32 %v1581, %v1875
        %v2004 = vadd.f32 %v1582, %v1876
        %v2005 = vadd.f32 %v1583, %v1877
        %v2006 = vadd.f32 %v1584, %v1878
        %v2007 = vadd.f32 %v1585, %v1879
        %v2008 = vadd.f32 %v1586, %v1880
        %v2009 = vadd.f32 %v1587, %v1881
        %v2010 = vadd.f32 %v1588, %v1882
        %v2011 = vadd.f32 %v1589, %v1883
        %v2012 = vadd.f32 %v1590, %v1884
        %v2013 = vadd.f32 %v1591, %v1885
        %v2014 = vadd.f32 %v1592, %v1886
        %v2015 = vadd.f32 %v1593, %v1887
        %v2016 = vadd.f32 %v1594, %v1888
        %v2017 = vadd.f32 %v1595, %v1889
        %v2018 = vadd.f32 %v1596, %v1890
        %v2019 = vadd.f32 %v1597, %v1891
        %v2020 = vadd.f32 %v1598, %v1892
        %v2021 = vadd.f32 %v1599, %v1893
        %v2022 = vadd.f32 %v1600, %v1894
        %v2023 = vadd.f32 %v1601, %v1895
        %v2024 = vadd.f32 %v1602, %v1896
        %v2025 = vadd.f32 %v1603, %v1897
        %v2026 = vadd.f32 %v1604, %v1898
        %v2027 = vadd.f32 %v1605, %v1899
        %v2028 = vadd.f32 %v1606, %v1900
        %v2029 = vadd.f32 %v1607, %v1901
        %v2030 = vadd.f32 %v1608, %v1902
        %v2031 = vadd.f32 %v1609, %v1903
        %v2032 = vadd.f32 %v1610, %v1904
        %v2033 = vadd.f32 %v1611, %v1905
        %v2034 = vadd.f32 %v1612, %v1906
        %v2035 = vadd.f32 %v1613, %v1907
        %v2036 = vadd.f32 %v1614, %v1908
        %v2037 = vadd.f32 %v1615, %v1909
        %v2038 = vadd.f32 %v1616, %v1910
        %v2039 = vadd.f32 %v1617, %v1911
        %v2040 = vadd.s32 %v255, %v327
        %v2041 = vadd.s32 %v2040, %v330
        %v2042 = vand.u32 %v2041, 511
        %v2043 = vmul.f32 %v228, %v335
        %v2044 = vmul.f32 %v2043, %v339
        %v2045 = vlaneseq
        %v2046 = vshrl.u32 %v2045, 7
        %v2047 = vsub.s32 0, %v2046
        %v2048 = vrot.slane %v2042, %v2047
        %v2049 = vlaneseq
        %v2050 = vshrl.u32 %v2049, 7
        %v2051 = vsub.s32 4, %v2050
        %v2052 = vrot.slane %v2042, %v2051
        %v2053 = vlaneseq
        %v2054 = vshrl.u32 %v2053, 7
        %v2055 = vsub.s32 0, %v2054
        %v2056 = vrot.slane %v2048, %v2055
        %v2057 = vlaneseq
        %v2058 = vshrl.u32 %v2057, 7
        %v2059 = vsub.s32 0, %v2058
        %v2060 = vrot.slane %v2052, %v2059
        %vm2061 = vcmp.eq.s32.totalorder %v262, %v2056
        %vm2062 = vcmp.eq.s32.totalorder %v262, %v2060
        %vm2063 = vcmp.eq.s32.totalorder %v263, %v2056
        %vm2064 = vcmp.eq.s32.totalorder %v263, %v2060
        %vm2065 = vcmp.eq.s32.totalorder %v264, %v2056
        %vm2066 = vcmp.eq.s32.totalorder %v264, %v2060
        %vm2067 = vcmp.eq.s32.totalorder %v265, %v2056
        %vm2068 = vcmp.eq.s32.totalorder %v265, %v2060
        %vm2069 = vcmp.eq.s32.totalorder %v266, %v2056
        %vm2070 = vcmp.eq.s32.totalorder %v266, %v2060
        %vm2071 = vcmp.eq.s32.totalorder %v267, %v2056
        %vm2072 = vcmp.eq.s32.totalorder %v267, %v2060
        %vm2073 = vcmp.eq.s32.totalorder %v268, %v2056
        %vm2074 = vcmp.eq.s32.totalorder %v268, %v2060
        %vm2075 = vcmp.eq.s32.totalorder %v269, %v2056
        %vm2076 = vcmp.eq.s32.totalorder %v269, %v2060
        %vm2077 = vcmp.eq.s32.totalorder %v270, %v2056
        %vm2078 = vcmp.eq.s32.totalorder %v270, %v2060
        %vm2079 = vcmp.eq.s32.totalorder %v271, %v2056
        %vm2080 = vcmp.eq.s32.totalorder %v271, %v2060
        %vm2081 = vcmp.eq.s32.totalorder %v272, %v2056
        %vm2082 = vcmp.eq.s32.totalorder %v272, %v2060
        %vm2083 = vcmp.eq.s32.totalorder %v273, %v2056
        %vm2084 = vcmp.eq.s32.totalorder %v273, %v2060
        %vm2085 = vcmp.eq.s32.totalorder %v274, %v2056
        %vm2086 = vcmp.eq.s32.totalorder %v274, %v2060
        %vm2087 = vcmp.eq.s32.totalorder %v275, %v2056
        %vm2088 = vcmp.eq.s32.totalorder %v275, %v2060
        %vm2089 = vcmp.eq.s32.totalorder %v276, %v2056
        %vm2090 = vcmp.eq.s32.totalorder %v276, %v2060
        %vm2091 = vcmp.eq.s32.totalorder %v277, %v2056
        %vm2092 = vcmp.eq.s32.totalorder %v277, %v2060
        %vm2093 = vcmp.eq.s32.totalorder %v278, %v2056
        %vm2094 = vcmp.eq.s32.totalorder %v278, %v2060
        %vm2095 = vcmp.eq.s32.totalorder %v279, %v2056
        %vm2096 = vcmp.eq.s32.totalorder %v279, %v2060
        %vm2097 = vcmp.eq.s32.totalorder %v280, %v2056
        %vm2098 = vcmp.eq.s32.totalorder %v280, %v2060
        %vm2099 = vcmp.eq.s32.totalorder %v281, %v2056
        %vm2100 = vcmp.eq.s32.totalorder %v281, %v2060
        %vm2101 = vcmp.eq.s32.totalorder %v282, %v2056
        %vm2102 = vcmp.eq.s32.totalorder %v282, %v2060
        %vm2103 = vcmp.eq.s32.totalorder %v283, %v2056
        %vm2104 = vcmp.eq.s32.totalorder %v283, %v2060
        %vm2105 = vcmp.eq.s32.totalorder %v284, %v2056
        %vm2106 = vcmp.eq.s32.totalorder %v284, %v2060
        %vm2107 = vcmp.eq.s32.totalorder %v285, %v2056
        %vm2108 = vcmp.eq.s32.totalorder %v285, %v2060
        %vm2109 = vcmp.eq.s32.totalorder %v286, %v2056
        %vm2110 = vcmp.eq.s32.totalorder %v286, %v2060
        %vm2111 = vcmp.eq.s32.totalorder %v287, %v2056
        %vm2112 = vcmp.eq.s32.totalorder %v287, %v2060
        %vm2113 = vcmp.eq.s32.totalorder %v288, %v2056
        %vm2114 = vcmp.eq.s32.totalorder %v288, %v2060
        %vm2115 = vcmp.eq.s32.totalorder %v289, %v2056
        %vm2116 = vcmp.eq.s32.totalorder %v289, %v2060
        %vm2117 = vcmp.eq.s32.totalorder %v290, %v2056
        %vm2118 = vcmp.eq.s32.totalorder %v290, %v2060
        %vm2119 = vcmp.eq.s32.totalorder %v291, %v2056
        %vm2120 = vcmp.eq.s32.totalorder %v291, %v2060
        %vm2121 = vcmp.eq.s32.totalorder %v292, %v2056
        %vm2122 = vcmp.eq.s32.totalorder %v292, %v2060
        %vm2123 = vcmp.eq.s32.totalorder %v293, %v2056
        %vm2124 = vcmp.eq.s32.totalorder %v293, %v2060
        %vm2125 = vcmp.eq.s32.totalorder %v294, %v2056
        %vm2126 = vcmp.eq.s32.totalorder %v294, %v2060
        %vm2127 = vcmp.eq.s32.totalorder %v295, %v2056
        %vm2128 = vcmp.eq.s32.totalorder %v295, %v2060
        %vm2129 = vcmp.eq.s32.totalorder %v296, %v2056
        %vm2130 = vcmp.eq.s32.totalorder %v296, %v2060
        %vm2131 = vcmp.eq.s32.totalorder %v297, %v2056
        %vm2132 = vcmp.eq.s32.totalorder %v297, %v2060
        %vm2133 = vcmp.eq.s32.totalorder %v298, %v2056
        %vm2134 = vcmp.eq.s32.totalorder %v298, %v2060
        %vm2135 = vcmp.eq.s32.totalorder %v299, %v2056
        %vm2136 = vcmp.eq.s32.totalorder %v299, %v2060
        %vm2137 = vcmp.eq.s32.totalorder %v300, %v2056
        %vm2138 = vcmp.eq.s32.totalorder %v300, %v2060
        %vm2139 = vcmp.eq.s32.totalorder %v301, %v2056
        %vm2140 = vcmp.eq.s32.totalorder %v301, %v2060
        %vm2141 = vcmp.eq.s32.totalorder %v302, %v2056
        %vm2142 = vcmp.eq.s32.totalorder %v302, %v2060
        %vm2143 = vcmp.eq.s32.totalorder %v303, %v2056
        %vm2144 = vcmp.eq.s32.totalorder %v303, %v2060
        %vm2145 = vcmp.eq.s32.totalorder %v304, %v2056
        %vm2146 = vcmp.eq.s32.totalorder %v304, %v2060
        %vm2147 = vcmp.eq.s32.totalorder %v305, %v2056
        %vm2148 = vcmp.eq.s32.totalorder %v305, %v2060
        %vm2149 = vcmp.eq.s32.totalorder %v306, %v2056
        %vm2150 = vcmp.eq.s32.totalorder %v306, %v2060
        %vm2151 = vcmp.eq.s32.totalorder %v307, %v2056
        %vm2152 = vcmp.eq.s32.totalorder %v307, %v2060
        %vm2153 = vcmp.eq.s32.totalorder %v308, %v2056
        %vm2154 = vcmp.eq.s32.totalorder %v308, %v2060
        %vm2155 = vcmp.eq.s32.totalorder %v309, %v2056
        %vm2156 = vcmp.eq.s32.totalorder %v309, %v2060
        %vm2157 = vcmp.eq.s32.totalorder %v310, %v2056
        %vm2158 = vcmp.eq.s32.totalorder %v310, %v2060
        %vm2159 = vcmp.eq.s32.totalorder %v311, %v2056
        %vm2160 = vcmp.eq.s32.totalorder %v311, %v2060
        %vm2161 = vcmp.eq.s32.totalorder %v312, %v2056
        %vm2162 = vcmp.eq.s32.totalorder %v312, %v2060
        %vm2163 = vcmp.eq.s32.totalorder %v313, %v2056
        %vm2164 = vcmp.eq.s32.totalorder %v313, %v2060
        %vm2165 = vcmp.eq.s32.totalorder %v314, %v2056
        %vm2166 = vcmp.eq.s32.totalorder %v314, %v2060
        %vm2167 = vcmp.eq.s32.totalorder %v315, %v2056
        %vm2168 = vcmp.eq.s32.totalorder %v315, %v2060
        %vm2169 = vcmp.eq.s32.totalorder %v316, %v2056
        %vm2170 = vcmp.eq.s32.totalorder %v316, %v2060
        %vm2171 = vcmp.eq.s32.totalorder %v317, %v2056
        %vm2172 = vcmp.eq.s32.totalorder %v317, %v2060
        %vm2173 = vcmp.eq.s32.totalorder %v318, %v2056
        %vm2174 = vcmp.eq.s32.totalorder %v318, %v2060
        %vm2175 = vcmp.eq.s32.totalorder %v319, %v2056
        %vm2176 = vcmp.eq.s32.totalorder %v319, %v2060
        %vm2177 = vcmp.eq.s32.totalorder %v320, %v2056
        %vm2178 = vcmp.eq.s32.totalorder %v320, %v2060
        %vm2179 = vcmp.eq.s32.totalorder %v321, %v2056
        %vm2180 = vcmp.eq.s32.totalorder %v321, %v2060
        %vm2181 = vcmp.eq.s32.totalorder %v322, %v2056
        %vm2182 = vcmp.eq.s32.totalorder %v322, %v2060
        %vm2183 = vcmp.eq.s32.totalorder %v323, %v2056
        %vm2184 = vcmp.eq.s32.totalorder %v323, %v2060
        %vm2185 = vcmp.eq.s32.totalorder %v324, %v2056
        %vm2186 = vcmp.eq.s32.totalorder %v324, %v2060
        %vm2187 = vcmp.eq.s32.totalorder %v325, %v2056
        %vm2188 = vcmp.eq.s32.totalorder %v325, %v2060
        %v2190 = vlaneseq
        %v2191 = vshrl.u32 %v2190, 7
        %v2192 = vsub.s32 0, %v2191
        %v2193 = vrot.slane %v2044, %v2192
        %v2194 = vlaneseq
        %v2195 = vshrl.u32 %v2194, 7
        %v2196 = vsub.s32 4, %v2195
        %v2197 = vrot.slane %v2044, %v2196
        %v2200 = vlaneseq
        %v2201 = vshrl.u32 %v2200, 7
        %v2202 = vsub.s32 0, %v2201
        %v2203 = vrot.slane %v2193, %v2202
        %v2204 = vlaneseq
        %v2205 = vshrl.u32 %v2204, 7
        %v2206 = vsub.s32 0, %v2205
        %v2207 = vrot.slane %v2197, %v2206
        %v2208 = vsel %vm2061, %v2203, 0.0
        %v2209 = vsel %vm2062, %v2207, 0.0
        %v2210 = vsel %vm2063, %v2203, 0.0
        %v2211 = vsel %vm2064, %v2207, 0.0
        %v2212 = vsel %vm2065, %v2203, 0.0
        %v2213 = vsel %vm2066, %v2207, 0.0
        %v2214 = vsel %vm2067, %v2203, 0.0
        %v2215 = vsel %vm2068, %v2207, 0.0
        %v2216 = vsel %vm2069, %v2203, 0.0
        %v2217 = vsel %vm2070, %v2207, 0.0
        %v2218 = vsel %vm2071, %v2203, 0.0
        %v2219 = vsel %vm2072, %v2207, 0.0
        %v2220 = vsel %vm2073, %v2203, 0.0
        %v2221 = vsel %vm2074, %v2207, 0.0
        %v2222 = vsel %vm2075, %v2203, 0.0
        %v2223 = vsel %vm2076, %v2207, 0.0
        %v2224 = vsel %vm2077, %v2203, 0.0
        %v2225 = vsel %vm2078, %v2207, 0.0
        %v2226 = vsel %vm2079, %v2203, 0.0
        %v2227 = vsel %vm2080, %v2207, 0.0
        %v2228 = vsel %vm2081, %v2203, 0.0
        %v2229 = vsel %vm2082, %v2207, 0.0
        %v2230 = vsel %vm2083, %v2203, 0.0
        %v2231 = vsel %vm2084, %v2207, 0.0
        %v2232 = vsel %vm2085, %v2203, 0.0
        %v2233 = vsel %vm2086, %v2207, 0.0
        %v2234 = vsel %vm2087, %v2203, 0.0
        %v2235 = vsel %vm2088, %v2207, 0.0
        %v2236 = vsel %vm2089, %v2203, 0.0
        %v2237 = vsel %vm2090, %v2207, 0.0
        %v2238 = vsel %vm2091, %v2203, 0.0
        %v2239 = vsel %vm2092, %v2207, 0.0
        %v2240 = vsel %vm2093, %v2203, 0.0
        %v2241 = vsel %vm2094, %v2207, 0.0
        %v2242 = vsel %vm2095, %v2203, 0.0
        %v2243 = vsel %vm2096, %v2207, 0.0
        %v2244 = vsel %vm2097, %v2203, 0.0
        %v2245 = vsel %vm2098, %v2207, 0.0
        %v2246 = vsel %vm2099, %v2203, 0.0
        %v2247 = vsel %vm2100, %v2207, 0.0
        %v2248 = vsel %vm2101, %v2203, 0.0
        %v2249 = vsel %vm2102, %v2207, 0.0
        %v2250 = vsel %vm2103, %v2203, 0.0
        %v2251 = vsel %vm2104, %v2207, 0.0
        %v2252 = vsel %vm2105, %v2203, 0.0
        %v2253 = vsel %vm2106, %v2207, 0.0
        %v2254 = vsel %vm2107, %v2203, 0.0
        %v2255 = vsel %vm2108, %v2207, 0.0
        %v2256 = vsel %vm2109, %v2203, 0.0
        %v2257 = vsel %vm2110, %v2207, 0.0
        %v2258 = vsel %vm2111, %v2203, 0.0
        %v2259 = vsel %vm2112, %v2207, 0.0
        %v2260 = vsel %vm2113, %v2203, 0.0
        %v2261 = vsel %vm2114, %v2207, 0.0
        %v2262 = vsel %vm2115, %v2203, 0.0
        %v2263 = vsel %vm2116, %v2207, 0.0
        %v2264 = vsel %vm2117, %v2203, 0.0
        %v2265 = vsel %vm2118, %v2207, 0.0
        %v2266 = vsel %vm2119, %v2203, 0.0
        %v2267 = vsel %vm2120, %v2207, 0.0
        %v2268 = vsel %vm2121, %v2203, 0.0
        %v2269 = vsel %vm2122, %v2207, 0.0
        %v2270 = vsel %vm2123, %v2203, 0.0
        %v2271 = vsel %vm2124, %v2207, 0.0
        %v2272 = vsel %vm2125, %v2203, 0.0
        %v2273 = vsel %vm2126, %v2207, 0.0
        %v2274 = vsel %vm2127, %v2203, 0.0
        %v2275 = vsel %vm2128, %v2207, 0.0
        %v2276 = vsel %vm2129, %v2203, 0.0
        %v2277 = vsel %vm2130, %v2207, 0.0
        %v2278 = vsel %vm2131, %v2203, 0.0
        %v2279 = vsel %vm2132, %v2207, 0.0
        %v2280 = vsel %vm2133, %v2203, 0.0
        %v2281 = vsel %vm2134, %v2207, 0.0
        %v2282 = vsel %vm2135, %v2203, 0.0
        %v2283 = vsel %vm2136, %v2207, 0.0
        %v2284 = vsel %vm2137, %v2203, 0.0
        %v2285 = vsel %vm2138, %v2207, 0.0
        %v2286 = vsel %vm2139, %v2203, 0.0
        %v2287 = vsel %vm2140, %v2207, 0.0
        %v2288 = vsel %vm2141, %v2203, 0.0
        %v2289 = vsel %vm2142, %v2207, 0.0
        %v2290 = vsel %vm2143, %v2203, 0.0
        %v2291 = vsel %vm2144, %v2207, 0.0
        %v2292 = vsel %vm2145, %v2203, 0.0
        %v2293 = vsel %vm2146, %v2207, 0.0
        %v2294 = vsel %vm2147, %v2203, 0.0
        %v2295 = vsel %vm2148, %v2207, 0.0
        %v2296 = vsel %vm2149, %v2203, 0.0
        %v2297 = vsel %vm2150, %v2207, 0.0
        %v2298 = vsel %vm2151, %v2203, 0.0
        %v2299 = vsel %vm2152, %v2207, 0.0
        %v2300 = vsel %vm2153, %v2203, 0.0
        %v2301 = vsel %vm2154, %v2207, 0.0
        %v2302 = vsel %vm2155, %v2203, 0.0
        %v2303 = vsel %vm2156, %v2207, 0.0
        %v2304 = vsel %vm2157, %v2203, 0.0
        %v2305 = vsel %vm2158, %v2207, 0.0
        %v2306 = vsel %vm2159, %v2203, 0.0
        %v2307 = vsel %vm2160, %v2207, 0.0
        %v2308 = vsel %vm2161, %v2203, 0.0
        %v2309 = vsel %vm2162, %v2207, 0.0
        %v2310 = vsel %vm2163, %v2203, 0.0
        %v2311 = vsel %vm2164, %v2207, 0.0
        %v2312 = vsel %vm2165, %v2203, 0.0
        %v2313 = vsel %vm2166, %v2207, 0.0
        %v2314 = vsel %vm2167, %v2203, 0.0
        %v2315 = vsel %vm2168, %v2207, 0.0
        %v2316 = vsel %vm2169, %v2203, 0.0
        %v2317 = vsel %vm2170, %v2207, 0.0
        %v2318 = vsel %vm2171, %v2203, 0.0
        %v2319 = vsel %vm2172, %v2207, 0.0
        %v2320 = vsel %vm2173, %v2203, 0.0
        %v2321 = vsel %vm2174, %v2207, 0.0
        %v2322 = vsel %vm2175, %v2203, 0.0
        %v2323 = vsel %vm2176, %v2207, 0.0
        %v2324 = vsel %vm2177, %v2203, 0.0
        %v2325 = vsel %vm2178, %v2207, 0.0
        %v2326 = vsel %vm2179, %v2203, 0.0
        %v2327 = vsel %vm2180, %v2207, 0.0
        %v2328 = vsel %vm2181, %v2203, 0.0
        %v2329 = vsel %vm2182, %v2207, 0.0
        %v2330 = vsel %vm2183, %v2203, 0.0
        %v2331 = vsel %vm2184, %v2207, 0.0
        %v2332 = vsel %vm2185, %v2203, 0.0
        %v2333 = vsel %vm2186, %v2207, 0.0
        %v2334 = vsel %vm2187, %v2203, 0.0
        %v2335 = vsel %vm2188, %v2207, 0.0
        %v2336 = vadd.f32 %v1912, %v2208
        %v2337 = vadd.f32 %v1913, %v2209
        %v2338 = vadd.f32 %v1914, %v2210
        %v2339 = vadd.f32 %v1915, %v2211
        %v2340 = vadd.f32 %v1916, %v2212
        %v2341 = vadd.f32 %v1917, %v2213
        %v2342 = vadd.f32 %v1918, %v2214
        %v2343 = vadd.f32 %v1919, %v2215
        %v2344 = vadd.f32 %v1920, %v2216
        %v2345 = vadd.f32 %v1921, %v2217
        %v2346 = vadd.f32 %v1922, %v2218
        %v2347 = vadd.f32 %v1923, %v2219
        %v2348 = vadd.f32 %v1924, %v2220
        %v2349 = vadd.f32 %v1925, %v2221
        %v2350 = vadd.f32 %v1926, %v2222
        %v2351 = vadd.f32 %v1927, %v2223
        %v2352 = vadd.f32 %v1928, %v2224
        %v2353 = vadd.f32 %v1929, %v2225
        %v2354 = vadd.f32 %v1930, %v2226
        %v2355 = vadd.f32 %v1931, %v2227
        %v2356 = vadd.f32 %v1932, %v2228
        %v2357 = vadd.f32 %v1933, %v2229
        %v2358 = vadd.f32 %v1934, %v2230
        %v2359 = vadd.f32 %v1935, %v2231
        %v2360 = vadd.f32 %v1936, %v2232
        %v2361 = vadd.f32 %v1937, %v2233
        %v2362 = vadd.f32 %v1938, %v2234
        %v2363 = vadd.f32 %v1939, %v2235
        %v2364 = vadd.f32 %v1940, %v2236
        %v2365 = vadd.f32 %v1941, %v2237
        %v2366 = vadd.f32 %v1942, %v2238
        %v2367 = vadd.f32 %v1943, %v2239
        %v2368 = vadd.f32 %v1944, %v2240
        %v2369 = vadd.f32 %v1945, %v2241
        %v2370 = vadd.f32 %v1946, %v2242
        %v2371 = vadd.f32 %v1947, %v2243
        %v2372 = vadd.f32 %v1948, %v2244
        %v2373 = vadd.f32 %v1949, %v2245
        %v2374 = vadd.f32 %v1950, %v2246
        %v2375 = vadd.f32 %v1951, %v2247
        %v2376 = vadd.f32 %v1952, %v2248
        %v2377 = vadd.f32 %v1953, %v2249
        %v2378 = vadd.f32 %v1954, %v2250
        %v2379 = vadd.f32 %v1955, %v2251
        %v2380 = vadd.f32 %v1956, %v2252
        %v2381 = vadd.f32 %v1957, %v2253
        %v2382 = vadd.f32 %v1958, %v2254
        %v2383 = vadd.f32 %v1959, %v2255
        %v2384 = vadd.f32 %v1960, %v2256
        %v2385 = vadd.f32 %v1961, %v2257
        %v2386 = vadd.f32 %v1962, %v2258
        %v2387 = vadd.f32 %v1963, %v2259
        %v2388 = vadd.f32 %v1964, %v2260
        %v2389 = vadd.f32 %v1965, %v2261
        %v2390 = vadd.f32 %v1966, %v2262
        %v2391 = vadd.f32 %v1967, %v2263
        %v2392 = vadd.f32 %v1968, %v2264
        %v2393 = vadd.f32 %v1969, %v2265
        %v2394 = vadd.f32 %v1970, %v2266
        %v2395 = vadd.f32 %v1971, %v2267
        %v2396 = vadd.f32 %v1972, %v2268
        %v2397 = vadd.f32 %v1973, %v2269
        %v2398 = vadd.f32 %v1974, %v2270
        %v2399 = vadd.f32 %v1975, %v2271
        %v2400 = vadd.f32 %v1976, %v2272
        %v2401 = vadd.f32 %v1977, %v2273
        %v2402 = vadd.f32 %v1978, %v2274
        %v2403 = vadd.f32 %v1979, %v2275
        %v2404 = vadd.f32 %v1980, %v2276
        %v2405 = vadd.f32 %v1981, %v2277
        %v2406 = vadd.f32 %v1982, %v2278
        %v2407 = vadd.f32 %v1983, %v2279
        %v2408 = vadd.f32 %v1984, %v2280
        %v2409 = vadd.f32 %v1985, %v2281
        %v2410 = vadd.f32 %v1986, %v2282
        %v2411 = vadd.f32 %v1987, %v2283
        %v2412 = vadd.f32 %v1988, %v2284
        %v2413 = vadd.f32 %v1989, %v2285
        %v2414 = vadd.f32 %v1990, %v2286
        %v2415 = vadd.f32 %v1991, %v2287
        %v2416 = vadd.f32 %v1992, %v2288
        %v2417 = vadd.f32 %v1993, %v2289
        %v2418 = vadd.f32 %v1994, %v2290
        %v2419 = vadd.f32 %v1995, %v2291
        %v2420 = vadd.f32 %v1996, %v2292
        %v2421 = vadd.f32 %v1997, %v2293
        %v2422 = vadd.f32 %v1998, %v2294
        %v2423 = vadd.f32 %v1999, %v2295
        %v2424 = vadd.f32 %v2000, %v2296
        %v2425 = vadd.f32 %v2001, %v2297
        %v2426 = vadd.f32 %v2002, %v2298
        %v2427 = vadd.f32 %v2003, %v2299
        %v2428 = vadd.f32 %v2004, %v2300
        %v2429 = vadd.f32 %v2005, %v2301
        %v2430 = vadd.f32 %v2006, %v2302
        %v2431 = vadd.f32 %v2007, %v2303
        %v2432 = vadd.f32 %v2008, %v2304
        %v2433 = vadd.f32 %v2009, %v2305
        %v2434 = vadd.f32 %v2010, %v2306
        %v2435 = vadd.f32 %v2011, %v2307
        %v2436 = vadd.f32 %v2012, %v2308
        %v2437 = vadd.f32 %v2013, %v2309
        %v2438 = vadd.f32 %v2014, %v2310
        %v2439 = vadd.f32 %v2015, %v2311
        %v2440 = vadd.f32 %v2016, %v2312
        %v2441 = vadd.f32 %v2017, %v2313
        %v2442 = vadd.f32 %v2018, %v2314
        %v2443 = vadd.f32 %v2019, %v2315
        %v2444 = vadd.f32 %v2020, %v2316
        %v2445 = vadd.f32 %v2021, %v2317
        %v2446 = vadd.f32 %v2022, %v2318
        %v2447 = vadd.f32 %v2023, %v2319
        %v2448 = vadd.f32 %v2024, %v2320
        %v2449 = vadd.f32 %v2025, %v2321
        %v2450 = vadd.f32 %v2026, %v2322
        %v2451 = vadd.f32 %v2027, %v2323
        %v2452 = vadd.f32 %v2028, %v2324
        %v2453 = vadd.f32 %v2029, %v2325
        %v2454 = vadd.f32 %v2030, %v2326
        %v2455 = vadd.f32 %v2031, %v2327
        %v2456 = vadd.f32 %v2032, %v2328
        %v2457 = vadd.f32 %v2033, %v2329
        %v2458 = vadd.f32 %v2034, %v2330
        %v2459 = vadd.f32 %v2035, %v2331
        %v2460 = vadd.f32 %v2036, %v2332
        %v2461 = vadd.f32 %v2037, %v2333
        %v2462 = vadd.f32 %v2038, %v2334
        %v2463 = vadd.f32 %v2039, %v2335
        %v2464 = vadd.s32 %v2040, %v762
        %v2465 = vand.u32 %v2464, 511
        %v2466 = vmul.f32 %v2043, %v767
        %v2467 = vlaneseq
        %v2468 = vshrl.u32 %v2467, 7
        %v2469 = vsub.s32 0, %v2468
        %v2470 = vrot.slane %v2465, %v2469
        %v2471 = vlaneseq
        %v2472 = vshrl.u32 %v2471, 7
        %v2473 = vsub.s32 4, %v2472
        %v2474 = vrot.slane %v2465, %v2473
        %v2475 = vlaneseq
        %v2476 = vshrl.u32 %v2475, 7
        %v2477 = vsub.s32 0, %v2476
        %v2478 = vrot.slane %v2470, %v2477
        %v2479 = vlaneseq
        %v2480 = vshrl.u32 %v2479, 7
        %v2481 = vsub.s32 0, %v2480
        %v2482 = vrot.slane %v2474, %v2481
        %vm2483 = vcmp.eq.s32.totalorder %v262, %v2478
        %vm2484 = vcmp.eq.s32.totalorder %v262, %v2482
        %vm2485 = vcmp.eq.s32.totalorder %v263, %v2478
        %vm2486 = vcmp.eq.s32.totalorder %v263, %v2482
        %vm2487 = vcmp.eq.s32.totalorder %v264, %v2478
        %vm2488 = vcmp.eq.s32.totalorder %v264, %v2482
        %vm2489 = vcmp.eq.s32.totalorder %v265, %v2478
        %vm2490 = vcmp.eq.s32.totalorder %v265, %v2482
        %vm2491 = vcmp.eq.s32.totalorder %v266, %v2478
        %vm2492 = vcmp.eq.s32.totalorder %v266, %v2482
        %vm2493 = vcmp.eq.s32.totalorder %v267, %v2478
        %vm2494 = vcmp.eq.s32.totalorder %v267, %v2482
        %vm2495 = vcmp.eq.s32.totalorder %v268, %v2478
        %vm2496 = vcmp.eq.s32.totalorder %v268, %v2482
        %vm2497 = vcmp.eq.s32.totalorder %v269, %v2478
        %vm2498 = vcmp.eq.s32.totalorder %v269, %v2482
        %vm2499 = vcmp.eq.s32.totalorder %v270, %v2478
        %vm2500 = vcmp.eq.s32.totalorder %v270, %v2482
        %vm2501 = vcmp.eq.s32.totalorder %v271, %v2478
        %vm2502 = vcmp.eq.s32.totalorder %v271, %v2482
        %vm2503 = vcmp.eq.s32.totalorder %v272, %v2478
        %vm2504 = vcmp.eq.s32.totalorder %v272, %v2482
        %vm2505 = vcmp.eq.s32.totalorder %v273, %v2478
        %vm2506 = vcmp.eq.s32.totalorder %v273, %v2482
        %vm2507 = vcmp.eq.s32.totalorder %v274, %v2478
        %vm2508 = vcmp.eq.s32.totalorder %v274, %v2482
        %vm2509 = vcmp.eq.s32.totalorder %v275, %v2478
        %vm2510 = vcmp.eq.s32.totalorder %v275, %v2482
        %vm2511 = vcmp.eq.s32.totalorder %v276, %v2478
        %vm2512 = vcmp.eq.s32.totalorder %v276, %v2482
        %vm2513 = vcmp.eq.s32.totalorder %v277, %v2478
        %vm2514 = vcmp.eq.s32.totalorder %v277, %v2482
        %vm2515 = vcmp.eq.s32.totalorder %v278, %v2478
        %vm2516 = vcmp.eq.s32.totalorder %v278, %v2482
        %vm2517 = vcmp.eq.s32.totalorder %v279, %v2478
        %vm2518 = vcmp.eq.s32.totalorder %v279, %v2482
        %vm2519 = vcmp.eq.s32.totalorder %v280, %v2478
        %vm2520 = vcmp.eq.s32.totalorder %v280, %v2482
        %vm2521 = vcmp.eq.s32.totalorder %v281, %v2478
        %vm2522 = vcmp.eq.s32.totalorder %v281, %v2482
        %vm2523 = vcmp.eq.s32.totalorder %v282, %v2478
        %vm2524 = vcmp.eq.s32.totalorder %v282, %v2482
        %vm2525 = vcmp.eq.s32.totalorder %v283, %v2478
        %vm2526 = vcmp.eq.s32.totalorder %v283, %v2482
        %vm2527 = vcmp.eq.s32.totalorder %v284, %v2478
        %vm2528 = vcmp.eq.s32.totalorder %v284, %v2482
        %vm2529 = vcmp.eq.s32.totalorder %v285, %v2478
        %vm2530 = vcmp.eq.s32.totalorder %v285, %v2482
        %vm2531 = vcmp.eq.s32.totalorder %v286, %v2478
        %vm2532 = vcmp.eq.s32.totalorder %v286, %v2482
        %vm2533 = vcmp.eq.s32.totalorder %v287, %v2478
        %vm2534 = vcmp.eq.s32.totalorder %v287, %v2482
        %vm2535 = vcmp.eq.s32.totalorder %v288, %v2478
        %vm2536 = vcmp.eq.s32.totalorder %v288, %v2482
        %vm2537 = vcmp.eq.s32.totalorder %v289, %v2478
        %vm2538 = vcmp.eq.s32.totalorder %v289, %v2482
        %vm2539 = vcmp.eq.s32.totalorder %v290, %v2478
        %vm2540 = vcmp.eq.s32.totalorder %v290, %v2482
        %vm2541 = vcmp.eq.s32.totalorder %v291, %v2478
        %vm2542 = vcmp.eq.s32.totalorder %v291, %v2482
        %vm2543 = vcmp.eq.s32.totalorder %v292, %v2478
        %vm2544 = vcmp.eq.s32.totalorder %v292, %v2482
        %vm2545 = vcmp.eq.s32.totalorder %v293, %v2478
        %vm2546 = vcmp.eq.s32.totalorder %v293, %v2482
        %vm2547 = vcmp.eq.s32.totalorder %v294, %v2478
        %vm2548 = vcmp.eq.s32.totalorder %v294, %v2482
        %vm2549 = vcmp.eq.s32.totalorder %v295, %v2478
        %vm2550 = vcmp.eq.s32.totalorder %v295, %v2482
        %vm2551 = vcmp.eq.s32.totalorder %v296, %v2478
        %vm2552 = vcmp.eq.s32.totalorder %v296, %v2482
        %vm2553 = vcmp.eq.s32.totalorder %v297, %v2478
        %vm2554 = vcmp.eq.s32.totalorder %v297, %v2482
        %vm2555 = vcmp.eq.s32.totalorder %v298, %v2478
        %vm2556 = vcmp.eq.s32.totalorder %v298, %v2482
        %vm2557 = vcmp.eq.s32.totalorder %v299, %v2478
        %vm2558 = vcmp.eq.s32.totalorder %v299, %v2482
        %vm2559 = vcmp.eq.s32.totalorder %v300, %v2478
        %vm2560 = vcmp.eq.s32.totalorder %v300, %v2482
        %vm2561 = vcmp.eq.s32.totalorder %v301, %v2478
        %vm2562 = vcmp.eq.s32.totalorder %v301, %v2482
        %vm2563 = vcmp.eq.s32.totalorder %v302, %v2478
        %vm2564 = vcmp.eq.s32.totalorder %v302, %v2482
        %vm2565 = vcmp.eq.s32.totalorder %v303, %v2478
        %vm2566 = vcmp.eq.s32.totalorder %v303, %v2482
        %vm2567 = vcmp.eq.s32.totalorder %v304, %v2478
        %vm2568 = vcmp.eq.s32.totalorder %v304, %v2482
        %vm2569 = vcmp.eq.s32.totalorder %v305, %v2478
        %vm2570 = vcmp.eq.s32.totalorder %v305, %v2482
        %vm2571 = vcmp.eq.s32.totalorder %v306, %v2478
        %vm2572 = vcmp.eq.s32.totalorder %v306, %v2482
        %vm2573 = vcmp.eq.s32.totalorder %v307, %v2478
        %vm2574 = vcmp.eq.s32.totalorder %v307, %v2482
        %vm2575 = vcmp.eq.s32.totalorder %v308, %v2478
        %vm2576 = vcmp.eq.s32.totalorder %v308, %v2482
        %vm2577 = vcmp.eq.s32.totalorder %v309, %v2478
        %vm2578 = vcmp.eq.s32.totalorder %v309, %v2482
        %vm2579 = vcmp.eq.s32.totalorder %v310, %v2478
        %vm2580 = vcmp.eq.s32.totalorder %v310, %v2482
        %vm2581 = vcmp.eq.s32.totalorder %v311, %v2478
        %vm2582 = vcmp.eq.s32.totalorder %v311, %v2482
        %vm2583 = vcmp.eq.s32.totalorder %v312, %v2478
        %vm2584 = vcmp.eq.s32.totalorder %v312, %v2482
        %vm2585 = vcmp.eq.s32.totalorder %v313, %v2478
        %vm2586 = vcmp.eq.s32.totalorder %v313, %v2482
        %vm2587 = vcmp.eq.s32.totalorder %v314, %v2478
        %vm2588 = vcmp.eq.s32.totalorder %v314, %v2482
        %vm2589 = vcmp.eq.s32.totalorder %v315, %v2478
        %vm2590 = vcmp.eq.s32.totalorder %v315, %v2482
        %vm2591 = vcmp.eq.s32.totalorder %v316, %v2478
        %vm2592 = vcmp.eq.s32.totalorder %v316, %v2482
        %vm2593 = vcmp.eq.s32.totalorder %v317, %v2478
        %vm2594 = vcmp.eq.s32.totalorder %v317, %v2482
        %vm2595 = vcmp.eq.s32.totalorder %v318, %v2478
        %vm2596 = vcmp.eq.s32.totalorder %v318, %v2482
        %vm2597 = vcmp.eq.s32.totalorder %v319, %v2478
        %vm2598 = vcmp.eq.s32.totalorder %v319, %v2482
        %vm2599 = vcmp.eq.s32.totalorder %v320, %v2478
        %vm2600 = vcmp.eq.s32.totalorder %v320, %v2482
        %vm2601 = vcmp.eq.s32.totalorder %v321, %v2478
        %vm2602 = vcmp.eq.s32.totalorder %v321, %v2482
        %vm2603 = vcmp.eq.s32.totalorder %v322, %v2478
        %vm2604 = vcmp.eq.s32.totalorder %v322, %v2482
        %vm2605 = vcmp.eq.s32.totalorder %v323, %v2478
        %vm2606 = vcmp.eq.s32.totalorder %v323, %v2482
        %vm2607 = vcmp.eq.s32.totalorder %v324, %v2478
        %vm2608 = vcmp.eq.s32.totalorder %v324, %v2482
        %vm2609 = vcmp.eq.s32.totalorder %v325, %v2478
        %vm2610 = vcmp.eq.s32.totalorder %v325, %v2482
        %v2612 = vlaneseq
        %v2613 = vshrl.u32 %v2612, 7
        %v2614 = vsub.s32 0, %v2613
        %v2615 = vrot.slane %v2466, %v2614
        %v2616 = vlaneseq
        %v2617 = vshrl.u32 %v2616, 7
        %v2618 = vsub.s32 4, %v2617
        %v2619 = vrot.slane %v2466, %v2618
        %v2622 = vlaneseq
        %v2623 = vshrl.u32 %v2622, 7
        %v2624 = vsub.s32 0, %v2623
        %v2625 = vrot.slane %v2615, %v2624
        %v2626 = vlaneseq
        %v2627 = vshrl.u32 %v2626, 7
        %v2628 = vsub.s32 0, %v2627
        %v2629 = vrot.slane %v2619, %v2628
        %v2630 = vsel %vm2483, %v2625, 0.0
        %v2631 = vsel %vm2484, %v2629, 0.0
        %v2632 = vsel %vm2485, %v2625, 0.0
        %v2633 = vsel %vm2486, %v2629, 0.0
        %v2634 = vsel %vm2487, %v2625, 0.0
        %v2635 = vsel %vm2488, %v2629, 0.0
        %v2636 = vsel %vm2489, %v2625, 0.0
        %v2637 = vsel %vm2490, %v2629, 0.0
        %v2638 = vsel %vm2491, %v2625, 0.0
        %v2639 = vsel %vm2492, %v2629, 0.0
        %v2640 = vsel %vm2493, %v2625, 0.0
        %v2641 = vsel %vm2494, %v2629, 0.0
        %v2642 = vsel %vm2495, %v2625, 0.0
        %v2643 = vsel %vm2496, %v2629, 0.0
        %v2644 = vsel %vm2497, %v2625, 0.0
        %v2645 = vsel %vm2498, %v2629, 0.0
        %v2646 = vsel %vm2499, %v2625, 0.0
        %v2647 = vsel %vm2500, %v2629, 0.0
        %v2648 = vsel %vm2501, %v2625, 0.0
        %v2649 = vsel %vm2502, %v2629, 0.0
        %v2650 = vsel %vm2503, %v2625, 0.0
        %v2651 = vsel %vm2504, %v2629, 0.0
        %v2652 = vsel %vm2505, %v2625, 0.0
        %v2653 = vsel %vm2506, %v2629, 0.0
        %v2654 = vsel %vm2507, %v2625, 0.0
        %v2655 = vsel %vm2508, %v2629, 0.0
        %v2656 = vsel %vm2509, %v2625, 0.0
        %v2657 = vsel %vm2510, %v2629, 0.0
        %v2658 = vsel %vm2511, %v2625, 0.0
        %v2659 = vsel %vm2512, %v2629, 0.0
        %v2660 = vsel %vm2513, %v2625, 0.0
        %v2661 = vsel %vm2514, %v2629, 0.0
        %v2662 = vsel %vm2515, %v2625, 0.0
        %v2663 = vsel %vm2516, %v2629, 0.0
        %v2664 = vsel %vm2517, %v2625, 0.0
        %v2665 = vsel %vm2518, %v2629, 0.0
        %v2666 = vsel %vm2519, %v2625, 0.0
        %v2667 = vsel %vm2520, %v2629, 0.0
        %v2668 = vsel %vm2521, %v2625, 0.0
        %v2669 = vsel %vm2522, %v2629, 0.0
        %v2670 = vsel %vm2523, %v2625, 0.0
        %v2671 = vsel %vm2524, %v2629, 0.0
        %v2672 = vsel %vm2525, %v2625, 0.0
        %v2673 = vsel %vm2526, %v2629, 0.0
        %v2674 = vsel %vm2527, %v2625, 0.0
        %v2675 = vsel %vm2528, %v2629, 0.0
        %v2676 = vsel %vm2529, %v2625, 0.0
        %v2677 = vsel %vm2530, %v2629, 0.0
        %v2678 = vsel %vm2531, %v2625, 0.0
        %v2679 = vsel %vm2532, %v2629, 0.0
        %v2680 = vsel %vm2533, %v2625, 0.0
        %v2681 = vsel %vm2534, %v2629, 0.0
        %v2682 = vsel %vm2535, %v2625, 0.0
        %v2683 = vsel %vm2536, %v2629, 0.0
        %v2684 = vsel %vm2537, %v2625, 0.0
        %v2685 = vsel %vm2538, %v2629, 0.0
        %v2686 = vsel %vm2539, %v2625, 0.0
        %v2687 = vsel %vm2540, %v2629, 0.0
        %v2688 = vsel %vm2541, %v2625, 0.0
        %v2689 = vsel %vm2542, %v2629, 0.0
        %v2690 = vsel %vm2543, %v2625, 0.0
        %v2691 = vsel %vm2544, %v2629, 0.0
        %v2692 = vsel %vm2545, %v2625, 0.0
        %v2693 = vsel %vm2546, %v2629, 0.0
        %v2694 = vsel %vm2547, %v2625, 0.0
        %v2695 = vsel %vm2548, %v2629, 0.0
        %v2696 = vsel %vm2549, %v2625, 0.0
        %v2697 = vsel %vm2550, %v2629, 0.0
        %v2698 = vsel %vm2551, %v2625, 0.0
        %v2699 = vsel %vm2552, %v2629, 0.0
        %v2700 = vsel %vm2553, %v2625, 0.0
        %v2701 = vsel %vm2554, %v2629, 0.0
        %v2702 = vsel %vm2555, %v2625, 0.0
        %v2703 = vsel %vm2556, %v2629, 0.0
        %v2704 = vsel %vm2557, %v2625, 0.0
        %v2705 = vsel %vm2558, %v2629, 0.0
        %v2706 = vsel %vm2559, %v2625, 0.0
        %v2707 = vsel %vm2560, %v2629, 0.0
        %v2708 = vsel %vm2561, %v2625, 0.0
        %v2709 = vsel %vm2562, %v2629, 0.0
        %v2710 = vsel %vm2563, %v2625, 0.0
        %v2711 = vsel %vm2564, %v2629, 0.0
        %v2712 = vsel %vm2565, %v2625, 0.0
        %v2713 = vsel %vm2566, %v2629, 0.0
        %v2714 = vsel %vm2567, %v2625, 0.0
        %v2715 = vsel %vm2568, %v2629, 0.0
        %v2716 = vsel %vm2569, %v2625, 0.0
        %v2717 = vsel %vm2570, %v2629, 0.0
        %v2718 = vsel %vm2571, %v2625, 0.0
        %v2719 = vsel %vm2572, %v2629, 0.0
        %v2720 = vsel %vm2573, %v2625, 0.0
        %v2721 = vsel %vm2574, %v2629, 0.0
        %v2722 = vsel %vm2575, %v2625, 0.0
        %v2723 = vsel %vm2576, %v2629, 0.0
        %v2724 = vsel %vm2577, %v2625, 0.0
        %v2725 = vsel %vm2578, %v2629, 0.0
        %v2726 = vsel %vm2579, %v2625, 0.0
        %v2727 = vsel %vm2580, %v2629, 0.0
        %v2728 = vsel %vm2581, %v2625, 0.0
        %v2729 = vsel %vm2582, %v2629, 0.0
        %v2730 = vsel %vm2583, %v2625, 0.0
        %v2731 = vsel %vm2584, %v2629, 0.0
        %v2732 = vsel %vm2585, %v2625, 0.0
        %v2733 = vsel %vm2586, %v2629, 0.0
        %v2734 = vsel %vm2587, %v2625, 0.0
        %v2735 = vsel %vm2588, %v2629, 0.0
        %v2736 = vsel %vm2589, %v2625, 0.0
        %v2737 = vsel %vm2590, %v2629, 0.0
        %v2738 = vsel %vm2591, %v2625, 0.0
        %v2739 = vsel %vm2592, %v2629, 0.0
        %v2740 = vsel %vm2593, %v2625, 0.0
        %v2741 = vsel %vm2594, %v2629, 0.0
        %v2742 = vsel %vm2595, %v2625, 0.0
        %v2743 = vsel %vm2596, %v2629, 0.0
        %v2744 = vsel %vm2597, %v2625, 0.0
        %v2745 = vsel %vm2598, %v2629, 0.0
        %v2746 = vsel %vm2599, %v2625, 0.0
        %v2747 = vsel %vm2600, %v2629, 0.0
        %v2748 = vsel %vm2601, %v2625, 0.0
        %v2749 = vsel %vm2602, %v2629, 0.0
        %v2750 = vsel %vm2603, %v2625, 0.0
        %v2751 = vsel %vm2604, %v2629, 0.0
        %v2752 = vsel %vm2605, %v2625, 0.0
        %v2753 = vsel %vm2606, %v2629, 0.0
        %v2754 = vsel %vm2607, %v2625, 0.0
        %v2755 = vsel %vm2608, %v2629, 0.0
        %v2756 = vsel %vm2609, %v2625, 0.0
        %v2757 = vsel %vm2610, %v2629, 0.0
        %v2758 = vadd.f32 %v2336, %v2630
        %v2759 = vadd.f32 %v2337, %v2631
        %v2760 = vadd.f32 %v2338, %v2632
        %v2761 = vadd.f32 %v2339, %v2633
        %v2762 = vadd.f32 %v2340, %v2634
        %v2763 = vadd.f32 %v2341, %v2635
        %v2764 = vadd.f32 %v2342, %v2636
        %v2765 = vadd.f32 %v2343, %v2637
        %v2766 = vadd.f32 %v2344, %v2638
        %v2767 = vadd.f32 %v2345, %v2639
        %v2768 = vadd.f32 %v2346, %v2640
        %v2769 = vadd.f32 %v2347, %v2641
        %v2770 = vadd.f32 %v2348, %v2642
        %v2771 = vadd.f32 %v2349, %v2643
        %v2772 = vadd.f32 %v2350, %v2644
        %v2773 = vadd.f32 %v2351, %v2645
        %v2774 = vadd.f32 %v2352, %v2646
        %v2775 = vadd.f32 %v2353, %v2647
        %v2776 = vadd.f32 %v2354, %v2648
        %v2777 = vadd.f32 %v2355, %v2649
        %v2778 = vadd.f32 %v2356, %v2650
        %v2779 = vadd.f32 %v2357, %v2651
        %v2780 = vadd.f32 %v2358, %v2652
        %v2781 = vadd.f32 %v2359, %v2653
        %v2782 = vadd.f32 %v2360, %v2654
        %v2783 = vadd.f32 %v2361, %v2655
        %v2784 = vadd.f32 %v2362, %v2656
        %v2785 = vadd.f32 %v2363, %v2657
        %v2786 = vadd.f32 %v2364, %v2658
        %v2787 = vadd.f32 %v2365, %v2659
        %v2788 = vadd.f32 %v2366, %v2660
        %v2789 = vadd.f32 %v2367, %v2661
        %v2790 = vadd.f32 %v2368, %v2662
        %v2791 = vadd.f32 %v2369, %v2663
        %v2792 = vadd.f32 %v2370, %v2664
        %v2793 = vadd.f32 %v2371, %v2665
        %v2794 = vadd.f32 %v2372, %v2666
        %v2795 = vadd.f32 %v2373, %v2667
        %v2796 = vadd.f32 %v2374, %v2668
        %v2797 = vadd.f32 %v2375, %v2669
        %v2798 = vadd.f32 %v2376, %v2670
        %v2799 = vadd.f32 %v2377, %v2671
        %v2800 = vadd.f32 %v2378, %v2672
        %v2801 = vadd.f32 %v2379, %v2673
        %v2802 = vadd.f32 %v2380, %v2674
        %v2803 = vadd.f32 %v2381, %v2675
        %v2804 = vadd.f32 %v2382, %v2676
        %v2805 = vadd.f32 %v2383, %v2677
        %v2806 = vadd.f32 %v2384, %v2678
        %v2807 = vadd.f32 %v2385, %v2679
        %v2808 = vadd.f32 %v2386, %v2680
        %v2809 = vadd.f32 %v2387, %v2681
        %v2810 = vadd.f32 %v2388, %v2682
        %v2811 = vadd.f32 %v2389, %v2683
        %v2812 = vadd.f32 %v2390, %v2684
        %v2813 = vadd.f32 %v2391, %v2685
        %v2814 = vadd.f32 %v2392, %v2686
        %v2815 = vadd.f32 %v2393, %v2687
        %v2816 = vadd.f32 %v2394, %v2688
        %v2817 = vadd.f32 %v2395, %v2689
        %v2818 = vadd.f32 %v2396, %v2690
        %v2819 = vadd.f32 %v2397, %v2691
        %v2820 = vadd.f32 %v2398, %v2692
        %v2821 = vadd.f32 %v2399, %v2693
        %v2822 = vadd.f32 %v2400, %v2694
        %v2823 = vadd.f32 %v2401, %v2695
        %v2824 = vadd.f32 %v2402, %v2696
        %v2825 = vadd.f32 %v2403, %v2697
        %v2826 = vadd.f32 %v2404, %v2698
        %v2827 = vadd.f32 %v2405, %v2699
        %v2828 = vadd.f32 %v2406, %v2700
        %v2829 = vadd.f32 %v2407, %v2701
        %v2830 = vadd.f32 %v2408, %v2702
        %v2831 = vadd.f32 %v2409, %v2703
        %v2832 = vadd.f32 %v2410, %v2704
        %v2833 = vadd.f32 %v2411, %v2705
        %v2834 = vadd.f32 %v2412, %v2706
        %v2835 = vadd.f32 %v2413, %v2707
        %v2836 = vadd.f32 %v2414, %v2708
        %v2837 = vadd.f32 %v2415, %v2709
        %v2838 = vadd.f32 %v2416, %v2710
        %v2839 = vadd.f32 %v2417, %v2711
        %v2840 = vadd.f32 %v2418, %v2712
        %v2841 = vadd.f32 %v2419, %v2713
        %v2842 = vadd.f32 %v2420, %v2714
        %v2843 = vadd.f32 %v2421, %v2715
        %v2844 = vadd.f32 %v2422, %v2716
        %v2845 = vadd.f32 %v2423, %v2717
        %v2846 = vadd.f32 %v2424, %v2718
        %v2847 = vadd.f32 %v2425, %v2719
        %v2848 = vadd.f32 %v2426, %v2720
        %v2849 = vadd.f32 %v2427, %v2721
        %v2850 = vadd.f32 %v2428, %v2722
        %v2851 = vadd.f32 %v2429, %v2723
        %v2852 = vadd.f32 %v2430, %v2724
        %v2853 = vadd.f32 %v2431, %v2725
        %v2854 = vadd.f32 %v2432, %v2726
        %v2855 = vadd.f32 %v2433, %v2727
        %v2856 = vadd.f32 %v2434, %v2728
        %v2857 = vadd.f32 %v2435, %v2729
        %v2858 = vadd.f32 %v2436, %v2730
        %v2859 = vadd.f32 %v2437, %v2731
        %v2860 = vadd.f32 %v2438, %v2732
        %v2861 = vadd.f32 %v2439, %v2733
        %v2862 = vadd.f32 %v2440, %v2734
        %v2863 = vadd.f32 %v2441, %v2735
        %v2864 = vadd.f32 %v2442, %v2736
        %v2865 = vadd.f32 %v2443, %v2737
        %v2866 = vadd.f32 %v2444, %v2738
        %v2867 = vadd.f32 %v2445, %v2739
        %v2868 = vadd.f32 %v2446, %v2740
        %v2869 = vadd.f32 %v2447, %v2741
        %v2870 = vadd.f32 %v2448, %v2742
        %v2871 = vadd.f32 %v2449, %v2743
        %v2872 = vadd.f32 %v2450, %v2744
        %v2873 = vadd.f32 %v2451, %v2745
        %v2874 = vadd.f32 %v2452, %v2746
        %v2875 = vadd.f32 %v2453, %v2747
        %v2876 = vadd.f32 %v2454, %v2748
        %v2877 = vadd.f32 %v2455, %v2749
        %v2878 = vadd.f32 %v2456, %v2750
        %v2879 = vadd.f32 %v2457, %v2751
        %v2880 = vadd.f32 %v2458, %v2752
        %v2881 = vadd.f32 %v2459, %v2753
        %v2882 = vadd.f32 %v2460, %v2754
        %v2883 = vadd.f32 %v2461, %v2755
        %v2884 = vadd.f32 %v2462, %v2756
        %v2885 = vadd.f32 %v2463, %v2757
        %v2886 = vadd.s32 %v255, %v1190
        %v2887 = vadd.s32 %v2886, %v330
        %v2888 = vand.u32 %v2887, 511
        %v2889 = vmul.f32 %v228, %v1195
        %v2890 = vmul.f32 %v2889, %v339
        %v2891 = vlaneseq
        %v2892 = vshrl.u32 %v2891, 7
        %v2893 = vsub.s32 0, %v2892
        %v2894 = vrot.slane %v2888, %v2893
        %v2895 = vlaneseq
        %v2896 = vshrl.u32 %v2895, 7
        %v2897 = vsub.s32 4, %v2896
        %v2898 = vrot.slane %v2888, %v2897
        %v2899 = vlaneseq
        %v2900 = vshrl.u32 %v2899, 7
        %v2901 = vsub.s32 0, %v2900
        %v2902 = vrot.slane %v2894, %v2901
        %v2903 = vlaneseq
        %v2904 = vshrl.u32 %v2903, 7
        %v2905 = vsub.s32 0, %v2904
        %v2906 = vrot.slane %v2898, %v2905
        %vm2907 = vcmp.eq.s32.totalorder %v262, %v2902
        %vm2908 = vcmp.eq.s32.totalorder %v262, %v2906
        %vm2909 = vcmp.eq.s32.totalorder %v263, %v2902
        %vm2910 = vcmp.eq.s32.totalorder %v263, %v2906
        %vm2911 = vcmp.eq.s32.totalorder %v264, %v2902
        %vm2912 = vcmp.eq.s32.totalorder %v264, %v2906
        %vm2913 = vcmp.eq.s32.totalorder %v265, %v2902
        %vm2914 = vcmp.eq.s32.totalorder %v265, %v2906
        %vm2915 = vcmp.eq.s32.totalorder %v266, %v2902
        %vm2916 = vcmp.eq.s32.totalorder %v266, %v2906
        %vm2917 = vcmp.eq.s32.totalorder %v267, %v2902
        %vm2918 = vcmp.eq.s32.totalorder %v267, %v2906
        %vm2919 = vcmp.eq.s32.totalorder %v268, %v2902
        %vm2920 = vcmp.eq.s32.totalorder %v268, %v2906
        %vm2921 = vcmp.eq.s32.totalorder %v269, %v2902
        %vm2922 = vcmp.eq.s32.totalorder %v269, %v2906
        %vm2923 = vcmp.eq.s32.totalorder %v270, %v2902
        %vm2924 = vcmp.eq.s32.totalorder %v270, %v2906
        %vm2925 = vcmp.eq.s32.totalorder %v271, %v2902
        %vm2926 = vcmp.eq.s32.totalorder %v271, %v2906
        %vm2927 = vcmp.eq.s32.totalorder %v272, %v2902
        %vm2928 = vcmp.eq.s32.totalorder %v272, %v2906
        %vm2929 = vcmp.eq.s32.totalorder %v273, %v2902
        %vm2930 = vcmp.eq.s32.totalorder %v273, %v2906
        %vm2931 = vcmp.eq.s32.totalorder %v274, %v2902
        %vm2932 = vcmp.eq.s32.totalorder %v274, %v2906
        %vm2933 = vcmp.eq.s32.totalorder %v275, %v2902
        %vm2934 = vcmp.eq.s32.totalorder %v275, %v2906
        %vm2935 = vcmp.eq.s32.totalorder %v276, %v2902
        %vm2936 = vcmp.eq.s32.totalorder %v276, %v2906
        %vm2937 = vcmp.eq.s32.totalorder %v277, %v2902
        %vm2938 = vcmp.eq.s32.totalorder %v277, %v2906
        %vm2939 = vcmp.eq.s32.totalorder %v278, %v2902
        %vm2940 = vcmp.eq.s32.totalorder %v278, %v2906
        %vm2941 = vcmp.eq.s32.totalorder %v279, %v2902
        %vm2942 = vcmp.eq.s32.totalorder %v279, %v2906
        %vm2943 = vcmp.eq.s32.totalorder %v280, %v2902
        %vm2944 = vcmp.eq.s32.totalorder %v280, %v2906
        %vm2945 = vcmp.eq.s32.totalorder %v281, %v2902
        %vm2946 = vcmp.eq.s32.totalorder %v281, %v2906
        %vm2947 = vcmp.eq.s32.totalorder %v282, %v2902
        %vm2948 = vcmp.eq.s32.totalorder %v282, %v2906
        %vm2949 = vcmp.eq.s32.totalorder %v283, %v2902
        %vm2950 = vcmp.eq.s32.totalorder %v283, %v2906
        %vm2951 = vcmp.eq.s32.totalorder %v284, %v2902
        %vm2952 = vcmp.eq.s32.totalorder %v284, %v2906
        %vm2953 = vcmp.eq.s32.totalorder %v285, %v2902
        %vm2954 = vcmp.eq.s32.totalorder %v285, %v2906
        %vm2955 = vcmp.eq.s32.totalorder %v286, %v2902
        %vm2956 = vcmp.eq.s32.totalorder %v286, %v2906
        %vm2957 = vcmp.eq.s32.totalorder %v287, %v2902
        %vm2958 = vcmp.eq.s32.totalorder %v287, %v2906
        %vm2959 = vcmp.eq.s32.totalorder %v288, %v2902
        %vm2960 = vcmp.eq.s32.totalorder %v288, %v2906
        %vm2961 = vcmp.eq.s32.totalorder %v289, %v2902
        %vm2962 = vcmp.eq.s32.totalorder %v289, %v2906
        %vm2963 = vcmp.eq.s32.totalorder %v290, %v2902
        %vm2964 = vcmp.eq.s32.totalorder %v290, %v2906
        %vm2965 = vcmp.eq.s32.totalorder %v291, %v2902
        %vm2966 = vcmp.eq.s32.totalorder %v291, %v2906
        %vm2967 = vcmp.eq.s32.totalorder %v292, %v2902
        %vm2968 = vcmp.eq.s32.totalorder %v292, %v2906
        %vm2969 = vcmp.eq.s32.totalorder %v293, %v2902
        %vm2970 = vcmp.eq.s32.totalorder %v293, %v2906
        %vm2971 = vcmp.eq.s32.totalorder %v294, %v2902
        %vm2972 = vcmp.eq.s32.totalorder %v294, %v2906
        %vm2973 = vcmp.eq.s32.totalorder %v295, %v2902
        %vm2974 = vcmp.eq.s32.totalorder %v295, %v2906
        %vm2975 = vcmp.eq.s32.totalorder %v296, %v2902
        %vm2976 = vcmp.eq.s32.totalorder %v296, %v2906
        %vm2977 = vcmp.eq.s32.totalorder %v297, %v2902
        %vm2978 = vcmp.eq.s32.totalorder %v297, %v2906
        %vm2979 = vcmp.eq.s32.totalorder %v298, %v2902
        %vm2980 = vcmp.eq.s32.totalorder %v298, %v2906
        %vm2981 = vcmp.eq.s32.totalorder %v299, %v2902
        %vm2982 = vcmp.eq.s32.totalorder %v299, %v2906
        %vm2983 = vcmp.eq.s32.totalorder %v300, %v2902
        %vm2984 = vcmp.eq.s32.totalorder %v300, %v2906
        %vm2985 = vcmp.eq.s32.totalorder %v301, %v2902
        %vm2986 = vcmp.eq.s32.totalorder %v301, %v2906
        %vm2987 = vcmp.eq.s32.totalorder %v302, %v2902
        %vm2988 = vcmp.eq.s32.totalorder %v302, %v2906
        %vm2989 = vcmp.eq.s32.totalorder %v303, %v2902
        %vm2990 = vcmp.eq.s32.totalorder %v303, %v2906
        %vm2991 = vcmp.eq.s32.totalorder %v304, %v2902
        %vm2992 = vcmp.eq.s32.totalorder %v304, %v2906
        %vm2993 = vcmp.eq.s32.totalorder %v305, %v2902
        %vm2994 = vcmp.eq.s32.totalorder %v305, %v2906
        %vm2995 = vcmp.eq.s32.totalorder %v306, %v2902
        %vm2996 = vcmp.eq.s32.totalorder %v306, %v2906
        %vm2997 = vcmp.eq.s32.totalorder %v307, %v2902
        %vm2998 = vcmp.eq.s32.totalorder %v307, %v2906
        %vm2999 = vcmp.eq.s32.totalorder %v308, %v2902
        %vm3000 = vcmp.eq.s32.totalorder %v308, %v2906
        %vm3001 = vcmp.eq.s32.totalorder %v309, %v2902
        %vm3002 = vcmp.eq.s32.totalorder %v309, %v2906
        %vm3003 = vcmp.eq.s32.totalorder %v310, %v2902
        %vm3004 = vcmp.eq.s32.totalorder %v310, %v2906
        %vm3005 = vcmp.eq.s32.totalorder %v311, %v2902
        %vm3006 = vcmp.eq.s32.totalorder %v311, %v2906
        %vm3007 = vcmp.eq.s32.totalorder %v312, %v2902
        %vm3008 = vcmp.eq.s32.totalorder %v312, %v2906
        %vm3009 = vcmp.eq.s32.totalorder %v313, %v2902
        %vm3010 = vcmp.eq.s32.totalorder %v313, %v2906
        %vm3011 = vcmp.eq.s32.totalorder %v314, %v2902
        %vm3012 = vcmp.eq.s32.totalorder %v314, %v2906
        %vm3013 = vcmp.eq.s32.totalorder %v315, %v2902
        %vm3014 = vcmp.eq.s32.totalorder %v315, %v2906
        %vm3015 = vcmp.eq.s32.totalorder %v316, %v2902
        %vm3016 = vcmp.eq.s32.totalorder %v316, %v2906
        %vm3017 = vcmp.eq.s32.totalorder %v317, %v2902
        %vm3018 = vcmp.eq.s32.totalorder %v317, %v2906
        %vm3019 = vcmp.eq.s32.totalorder %v318, %v2902
        %vm3020 = vcmp.eq.s32.totalorder %v318, %v2906
        %vm3021 = vcmp.eq.s32.totalorder %v319, %v2902
        %vm3022 = vcmp.eq.s32.totalorder %v319, %v2906
        %vm3023 = vcmp.eq.s32.totalorder %v320, %v2902
        %vm3024 = vcmp.eq.s32.totalorder %v320, %v2906
        %vm3025 = vcmp.eq.s32.totalorder %v321, %v2902
        %vm3026 = vcmp.eq.s32.totalorder %v321, %v2906
        %vm3027 = vcmp.eq.s32.totalorder %v322, %v2902
        %vm3028 = vcmp.eq.s32.totalorder %v322, %v2906
        %vm3029 = vcmp.eq.s32.totalorder %v323, %v2902
        %vm3030 = vcmp.eq.s32.totalorder %v323, %v2906
        %vm3031 = vcmp.eq.s32.totalorder %v324, %v2902
        %vm3032 = vcmp.eq.s32.totalorder %v324, %v2906
        %vm3033 = vcmp.eq.s32.totalorder %v325, %v2902
        %vm3034 = vcmp.eq.s32.totalorder %v325, %v2906
        %v3036 = vlaneseq
        %v3037 = vshrl.u32 %v3036, 7
        %v3038 = vsub.s32 0, %v3037
        %v3039 = vrot.slane %v2890, %v3038
        %v3040 = vlaneseq
        %v3041 = vshrl.u32 %v3040, 7
        %v3042 = vsub.s32 4, %v3041
        %v3043 = vrot.slane %v2890, %v3042
        %v3046 = vlaneseq
        %v3047 = vshrl.u32 %v3046, 7
        %v3048 = vsub.s32 0, %v3047
        %v3049 = vrot.slane %v3039, %v3048
        %v3050 = vlaneseq
        %v3051 = vshrl.u32 %v3050, 7
        %v3052 = vsub.s32 0, %v3051
        %v3053 = vrot.slane %v3043, %v3052
        %v3054 = vsel %vm2907, %v3049, 0.0
        %v3055 = vsel %vm2908, %v3053, 0.0
        %v3056 = vsel %vm2909, %v3049, 0.0
        %v3057 = vsel %vm2910, %v3053, 0.0
        %v3058 = vsel %vm2911, %v3049, 0.0
        %v3059 = vsel %vm2912, %v3053, 0.0
        %v3060 = vsel %vm2913, %v3049, 0.0
        %v3061 = vsel %vm2914, %v3053, 0.0
        %v3062 = vsel %vm2915, %v3049, 0.0
        %v3063 = vsel %vm2916, %v3053, 0.0
        %v3064 = vsel %vm2917, %v3049, 0.0
        %v3065 = vsel %vm2918, %v3053, 0.0
        %v3066 = vsel %vm2919, %v3049, 0.0
        %v3067 = vsel %vm2920, %v3053, 0.0
        %v3068 = vsel %vm2921, %v3049, 0.0
        %v3069 = vsel %vm2922, %v3053, 0.0
        %v3070 = vsel %vm2923, %v3049, 0.0
        %v3071 = vsel %vm2924, %v3053, 0.0
        %v3072 = vsel %vm2925, %v3049, 0.0
        %v3073 = vsel %vm2926, %v3053, 0.0
        %v3074 = vsel %vm2927, %v3049, 0.0
        %v3075 = vsel %vm2928, %v3053, 0.0
        %v3076 = vsel %vm2929, %v3049, 0.0
        %v3077 = vsel %vm2930, %v3053, 0.0
        %v3078 = vsel %vm2931, %v3049, 0.0
        %v3079 = vsel %vm2932, %v3053, 0.0
        %v3080 = vsel %vm2933, %v3049, 0.0
        %v3081 = vsel %vm2934, %v3053, 0.0
        %v3082 = vsel %vm2935, %v3049, 0.0
        %v3083 = vsel %vm2936, %v3053, 0.0
        %v3084 = vsel %vm2937, %v3049, 0.0
        %v3085 = vsel %vm2938, %v3053, 0.0
        %v3086 = vsel %vm2939, %v3049, 0.0
        %v3087 = vsel %vm2940, %v3053, 0.0
        %v3088 = vsel %vm2941, %v3049, 0.0
        %v3089 = vsel %vm2942, %v3053, 0.0
        %v3090 = vsel %vm2943, %v3049, 0.0
        %v3091 = vsel %vm2944, %v3053, 0.0
        %v3092 = vsel %vm2945, %v3049, 0.0
        %v3093 = vsel %vm2946, %v3053, 0.0
        %v3094 = vsel %vm2947, %v3049, 0.0
        %v3095 = vsel %vm2948, %v3053, 0.0
        %v3096 = vsel %vm2949, %v3049, 0.0
        %v3097 = vsel %vm2950, %v3053, 0.0
        %v3098 = vsel %vm2951, %v3049, 0.0
        %v3099 = vsel %vm2952, %v3053, 0.0
        %v3100 = vsel %vm2953, %v3049, 0.0
        %v3101 = vsel %vm2954, %v3053, 0.0
        %v3102 = vsel %vm2955, %v3049, 0.0
        %v3103 = vsel %vm2956, %v3053, 0.0
        %v3104 = vsel %vm2957, %v3049, 0.0
        %v3105 = vsel %vm2958, %v3053, 0.0
        %v3106 = vsel %vm2959, %v3049, 0.0
        %v3107 = vsel %vm2960, %v3053, 0.0
        %v3108 = vsel %vm2961, %v3049, 0.0
        %v3109 = vsel %vm2962, %v3053, 0.0
        %v3110 = vsel %vm2963, %v3049, 0.0
        %v3111 = vsel %vm2964, %v3053, 0.0
        %v3112 = vsel %vm2965, %v3049, 0.0
        %v3113 = vsel %vm2966, %v3053, 0.0
        %v3114 = vsel %vm2967, %v3049, 0.0
        %v3115 = vsel %vm2968, %v3053, 0.0
        %v3116 = vsel %vm2969, %v3049, 0.0
        %v3117 = vsel %vm2970, %v3053, 0.0
        %v3118 = vsel %vm2971, %v3049, 0.0
        %v3119 = vsel %vm2972, %v3053, 0.0
        %v3120 = vsel %vm2973, %v3049, 0.0
        %v3121 = vsel %vm2974, %v3053, 0.0
        %v3122 = vsel %vm2975, %v3049, 0.0
        %v3123 = vsel %vm2976, %v3053, 0.0
        %v3124 = vsel %vm2977, %v3049, 0.0
        %v3125 = vsel %vm2978, %v3053, 0.0
        %v3126 = vsel %vm2979, %v3049, 0.0
        %v3127 = vsel %vm2980, %v3053, 0.0
        %v3128 = vsel %vm2981, %v3049, 0.0
        %v3129 = vsel %vm2982, %v3053, 0.0
        %v3130 = vsel %vm2983, %v3049, 0.0
        %v3131 = vsel %vm2984, %v3053, 0.0
        %v3132 = vsel %vm2985, %v3049, 0.0
        %v3133 = vsel %vm2986, %v3053, 0.0
        %v3134 = vsel %vm2987, %v3049, 0.0
        %v3135 = vsel %vm2988, %v3053, 0.0
        %v3136 = vsel %vm2989, %v3049, 0.0
        %v3137 = vsel %vm2990, %v3053, 0.0
        %v3138 = vsel %vm2991, %v3049, 0.0
        %v3139 = vsel %vm2992, %v3053, 0.0
        %v3140 = vsel %vm2993, %v3049, 0.0
        %v3141 = vsel %vm2994, %v3053, 0.0
        %v3142 = vsel %vm2995, %v3049, 0.0
        %v3143 = vsel %vm2996, %v3053, 0.0
        %v3144 = vsel %vm2997, %v3049, 0.0
        %v3145 = vsel %vm2998, %v3053, 0.0
        %v3146 = vsel %vm2999, %v3049, 0.0
        %v3147 = vsel %vm3000, %v3053, 0.0
        %v3148 = vsel %vm3001, %v3049, 0.0
        %v3149 = vsel %vm3002, %v3053, 0.0
        %v3150 = vsel %vm3003, %v3049, 0.0
        %v3151 = vsel %vm3004, %v3053, 0.0
        %v3152 = vsel %vm3005, %v3049, 0.0
        %v3153 = vsel %vm3006, %v3053, 0.0
        %v3154 = vsel %vm3007, %v3049, 0.0
        %v3155 = vsel %vm3008, %v3053, 0.0
        %v3156 = vsel %vm3009, %v3049, 0.0
        %v3157 = vsel %vm3010, %v3053, 0.0
        %v3158 = vsel %vm3011, %v3049, 0.0
        %v3159 = vsel %vm3012, %v3053, 0.0
        %v3160 = vsel %vm3013, %v3049, 0.0
        %v3161 = vsel %vm3014, %v3053, 0.0
        %v3162 = vsel %vm3015, %v3049, 0.0
        %v3163 = vsel %vm3016, %v3053, 0.0
        %v3164 = vsel %vm3017, %v3049, 0.0
        %v3165 = vsel %vm3018, %v3053, 0.0
        %v3166 = vsel %vm3019, %v3049, 0.0
        %v3167 = vsel %vm3020, %v3053, 0.0
        %v3168 = vsel %vm3021, %v3049, 0.0
        %v3169 = vsel %vm3022, %v3053, 0.0
        %v3170 = vsel %vm3023, %v3049, 0.0
        %v3171 = vsel %vm3024, %v3053, 0.0
        %v3172 = vsel %vm3025, %v3049, 0.0
        %v3173 = vsel %vm3026, %v3053, 0.0
        %v3174 = vsel %vm3027, %v3049, 0.0
        %v3175 = vsel %vm3028, %v3053, 0.0
        %v3176 = vsel %vm3029, %v3049, 0.0
        %v3177 = vsel %vm3030, %v3053, 0.0
        %v3178 = vsel %vm3031, %v3049, 0.0
        %v3179 = vsel %vm3032, %v3053, 0.0
        %v3180 = vsel %vm3033, %v3049, 0.0
        %v3181 = vsel %vm3034, %v3053, 0.0
        %v3182 = vadd.f32 %v2758, %v3054
        %v3183 = vadd.f32 %v2759, %v3055
        %v3184 = vadd.f32 %v2760, %v3056
        %v3185 = vadd.f32 %v2761, %v3057
        %v3186 = vadd.f32 %v2762, %v3058
        %v3187 = vadd.f32 %v2763, %v3059
        %v3188 = vadd.f32 %v2764, %v3060
        %v3189 = vadd.f32 %v2765, %v3061
        %v3190 = vadd.f32 %v2766, %v3062
        %v3191 = vadd.f32 %v2767, %v3063
        %v3192 = vadd.f32 %v2768, %v3064
        %v3193 = vadd.f32 %v2769, %v3065
        %v3194 = vadd.f32 %v2770, %v3066
        %v3195 = vadd.f32 %v2771, %v3067
        %v3196 = vadd.f32 %v2772, %v3068
        %v3197 = vadd.f32 %v2773, %v3069
        %v3198 = vadd.f32 %v2774, %v3070
        %v3199 = vadd.f32 %v2775, %v3071
        %v3200 = vadd.f32 %v2776, %v3072
        %v3201 = vadd.f32 %v2777, %v3073
        %v3202 = vadd.f32 %v2778, %v3074
        %v3203 = vadd.f32 %v2779, %v3075
        %v3204 = vadd.f32 %v2780, %v3076
        %v3205 = vadd.f32 %v2781, %v3077
        %v3206 = vadd.f32 %v2782, %v3078
        %v3207 = vadd.f32 %v2783, %v3079
        %v3208 = vadd.f32 %v2784, %v3080
        %v3209 = vadd.f32 %v2785, %v3081
        %v3210 = vadd.f32 %v2786, %v3082
        %v3211 = vadd.f32 %v2787, %v3083
        %v3212 = vadd.f32 %v2788, %v3084
        %v3213 = vadd.f32 %v2789, %v3085
        %v3214 = vadd.f32 %v2790, %v3086
        %v3215 = vadd.f32 %v2791, %v3087
        %v3216 = vadd.f32 %v2792, %v3088
        %v3217 = vadd.f32 %v2793, %v3089
        %v3218 = vadd.f32 %v2794, %v3090
        %v3219 = vadd.f32 %v2795, %v3091
        %v3220 = vadd.f32 %v2796, %v3092
        %v3221 = vadd.f32 %v2797, %v3093
        %v3222 = vadd.f32 %v2798, %v3094
        %v3223 = vadd.f32 %v2799, %v3095
        %v3224 = vadd.f32 %v2800, %v3096
        %v3225 = vadd.f32 %v2801, %v3097
        %v3226 = vadd.f32 %v2802, %v3098
        %v3227 = vadd.f32 %v2803, %v3099
        %v3228 = vadd.f32 %v2804, %v3100
        %v3229 = vadd.f32 %v2805, %v3101
        %v3230 = vadd.f32 %v2806, %v3102
        %v3231 = vadd.f32 %v2807, %v3103
        %v3232 = vadd.f32 %v2808, %v3104
        %v3233 = vadd.f32 %v2809, %v3105
        %v3234 = vadd.f32 %v2810, %v3106
        %v3235 = vadd.f32 %v2811, %v3107
        %v3236 = vadd.f32 %v2812, %v3108
        %v3237 = vadd.f32 %v2813, %v3109
        %v3238 = vadd.f32 %v2814, %v3110
        %v3239 = vadd.f32 %v2815, %v3111
        %v3240 = vadd.f32 %v2816, %v3112
        %v3241 = vadd.f32 %v2817, %v3113
        %v3242 = vadd.f32 %v2818, %v3114
        %v3243 = vadd.f32 %v2819, %v3115
        %v3244 = vadd.f32 %v2820, %v3116
        %v3245 = vadd.f32 %v2821, %v3117
        %v3246 = vadd.f32 %v2822, %v3118
        %v3247 = vadd.f32 %v2823, %v3119
        %v3248 = vadd.f32 %v2824, %v3120
        %v3249 = vadd.f32 %v2825, %v3121
        %v3250 = vadd.f32 %v2826, %v3122
        %v3251 = vadd.f32 %v2827, %v3123
        %v3252 = vadd.f32 %v2828, %v3124
        %v3253 = vadd.f32 %v2829, %v3125
        %v3254 = vadd.f32 %v2830, %v3126
        %v3255 = vadd.f32 %v2831, %v3127
        %v3256 = vadd.f32 %v2832, %v3128
        %v3257 = vadd.f32 %v2833, %v3129
        %v3258 = vadd.f32 %v2834, %v3130
        %v3259 = vadd.f32 %v2835, %v3131
        %v3260 = vadd.f32 %v2836, %v3132
        %v3261 = vadd.f32 %v2837, %v3133
        %v3262 = vadd.f32 %v2838, %v3134
        %v3263 = vadd.f32 %v2839, %v3135
        %v3264 = vadd.f32 %v2840, %v3136
        %v3265 = vadd.f32 %v2841, %v3137
        %v3266 = vadd.f32 %v2842, %v3138
        %v3267 = vadd.f32 %v2843, %v3139
        %v3268 = vadd.f32 %v2844, %v3140
        %v3269 = vadd.f32 %v2845, %v3141
        %v3270 = vadd.f32 %v2846, %v3142
        %v3271 = vadd.f32 %v2847, %v3143
        %v3272 = vadd.f32 %v2848, %v3144
        %v3273 = vadd.f32 %v2849, %v3145
        %v3274 = vadd.f32 %v2850, %v3146
        %v3275 = vadd.f32 %v2851, %v3147
        %v3276 = vadd.f32 %v2852, %v3148
        %v3277 = vadd.f32 %v2853, %v3149
        %v3278 = vadd.f32 %v2854, %v3150
        %v3279 = vadd.f32 %v2855, %v3151
        %v3280 = vadd.f32 %v2856, %v3152
        %v3281 = vadd.f32 %v2857, %v3153
        %v3282 = vadd.f32 %v2858, %v3154
        %v3283 = vadd.f32 %v2859, %v3155
        %v3284 = vadd.f32 %v2860, %v3156
        %v3285 = vadd.f32 %v2861, %v3157
        %v3286 = vadd.f32 %v2862, %v3158
        %v3287 = vadd.f32 %v2863, %v3159
        %v3288 = vadd.f32 %v2864, %v3160
        %v3289 = vadd.f32 %v2865, %v3161
        %v3290 = vadd.f32 %v2866, %v3162
        %v3291 = vadd.f32 %v2867, %v3163
        %v3292 = vadd.f32 %v2868, %v3164
        %v3293 = vadd.f32 %v2869, %v3165
        %v3294 = vadd.f32 %v2870, %v3166
        %v3295 = vadd.f32 %v2871, %v3167
        %v3296 = vadd.f32 %v2872, %v3168
        %v3297 = vadd.f32 %v2873, %v3169
        %v3298 = vadd.f32 %v2874, %v3170
        %v3299 = vadd.f32 %v2875, %v3171
        %v3300 = vadd.f32 %v2876, %v3172
        %v3301 = vadd.f32 %v2877, %v3173
        %v3302 = vadd.f32 %v2878, %v3174
        %v3303 = vadd.f32 %v2879, %v3175
        %v3304 = vadd.f32 %v2880, %v3176
        %v3305 = vadd.f32 %v2881, %v3177
        %v3306 = vadd.f32 %v2882, %v3178
        %v3307 = vadd.f32 %v2883, %v3179
        %v3308 = vadd.f32 %v2884, %v3180
        %v3309 = vadd.f32 %v2885, %v3181
        %v3310 = vadd.s32 %v2886, %v762
        %v3311 = vand.u32 %v3310, 511
        %v3312 = vmul.f32 %v2889, %v767
        %v3313 = vlaneseq
        %v3314 = vshrl.u32 %v3313, 7
        %v3315 = vsub.s32 0, %v3314
        %v3316 = vrot.slane %v3311, %v3315
        %v3317 = vlaneseq
        %v3318 = vshrl.u32 %v3317, 7
        %v3319 = vsub.s32 4, %v3318
        %v3320 = vrot.slane %v3311, %v3319
        %v3321 = vlaneseq
        %v3322 = vshrl.u32 %v3321, 7
        %v3323 = vsub.s32 0, %v3322
        %v3324 = vrot.slane %v3316, %v3323
        %v3325 = vlaneseq
        %v3326 = vshrl.u32 %v3325, 7
        %v3327 = vsub.s32 0, %v3326
        %v3328 = vrot.slane %v3320, %v3327
        %vm3329 = vcmp.eq.s32.totalorder %v262, %v3324
        %vm3330 = vcmp.eq.s32.totalorder %v262, %v3328
        %vm3331 = vcmp.eq.s32.totalorder %v263, %v3324
        %vm3332 = vcmp.eq.s32.totalorder %v263, %v3328
        %vm3333 = vcmp.eq.s32.totalorder %v264, %v3324
        %vm3334 = vcmp.eq.s32.totalorder %v264, %v3328
        %vm3335 = vcmp.eq.s32.totalorder %v265, %v3324
        %vm3336 = vcmp.eq.s32.totalorder %v265, %v3328
        %vm3337 = vcmp.eq.s32.totalorder %v266, %v3324
        %vm3338 = vcmp.eq.s32.totalorder %v266, %v3328
        %vm3339 = vcmp.eq.s32.totalorder %v267, %v3324
        %vm3340 = vcmp.eq.s32.totalorder %v267, %v3328
        %vm3341 = vcmp.eq.s32.totalorder %v268, %v3324
        %vm3342 = vcmp.eq.s32.totalorder %v268, %v3328
        %vm3343 = vcmp.eq.s32.totalorder %v269, %v3324
        %vm3344 = vcmp.eq.s32.totalorder %v269, %v3328
        %vm3345 = vcmp.eq.s32.totalorder %v270, %v3324
        %vm3346 = vcmp.eq.s32.totalorder %v270, %v3328
        %vm3347 = vcmp.eq.s32.totalorder %v271, %v3324
        %vm3348 = vcmp.eq.s32.totalorder %v271, %v3328
        %vm3349 = vcmp.eq.s32.totalorder %v272, %v3324
        %vm3350 = vcmp.eq.s32.totalorder %v272, %v3328
        %vm3351 = vcmp.eq.s32.totalorder %v273, %v3324
        %vm3352 = vcmp.eq.s32.totalorder %v273, %v3328
        %vm3353 = vcmp.eq.s32.totalorder %v274, %v3324
        %vm3354 = vcmp.eq.s32.totalorder %v274, %v3328
        %vm3355 = vcmp.eq.s32.totalorder %v275, %v3324
        %vm3356 = vcmp.eq.s32.totalorder %v275, %v3328
        %vm3357 = vcmp.eq.s32.totalorder %v276, %v3324
        %vm3358 = vcmp.eq.s32.totalorder %v276, %v3328
        %vm3359 = vcmp.eq.s32.totalorder %v277, %v3324
        %vm3360 = vcmp.eq.s32.totalorder %v277, %v3328
        %vm3361 = vcmp.eq.s32.totalorder %v278, %v3324
        %vm3362 = vcmp.eq.s32.totalorder %v278, %v3328
        %vm3363 = vcmp.eq.s32.totalorder %v279, %v3324
        %vm3364 = vcmp.eq.s32.totalorder %v279, %v3328
        %vm3365 = vcmp.eq.s32.totalorder %v280, %v3324
        %vm3366 = vcmp.eq.s32.totalorder %v280, %v3328
        %vm3367 = vcmp.eq.s32.totalorder %v281, %v3324
        %vm3368 = vcmp.eq.s32.totalorder %v281, %v3328
        %vm3369 = vcmp.eq.s32.totalorder %v282, %v3324
        %vm3370 = vcmp.eq.s32.totalorder %v282, %v3328
        %vm3371 = vcmp.eq.s32.totalorder %v283, %v3324
        %vm3372 = vcmp.eq.s32.totalorder %v283, %v3328
        %vm3373 = vcmp.eq.s32.totalorder %v284, %v3324
        %vm3374 = vcmp.eq.s32.totalorder %v284, %v3328
        %vm3375 = vcmp.eq.s32.totalorder %v285, %v3324
        %vm3376 = vcmp.eq.s32.totalorder %v285, %v3328
        %vm3377 = vcmp.eq.s32.totalorder %v286, %v3324
        %vm3378 = vcmp.eq.s32.totalorder %v286, %v3328
        %vm3379 = vcmp.eq.s32.totalorder %v287, %v3324
        %vm3380 = vcmp.eq.s32.totalorder %v287, %v3328
        %vm3381 = vcmp.eq.s32.totalorder %v288, %v3324
        %vm3382 = vcmp.eq.s32.totalorder %v288, %v3328
        %vm3383 = vcmp.eq.s32.totalorder %v289, %v3324
        %vm3384 = vcmp.eq.s32.totalorder %v289, %v3328
        %vm3385 = vcmp.eq.s32.totalorder %v290, %v3324
        %vm3386 = vcmp.eq.s32.totalorder %v290, %v3328
        %vm3387 = vcmp.eq.s32.totalorder %v291, %v3324
        %vm3388 = vcmp.eq.s32.totalorder %v291, %v3328
        %vm3389 = vcmp.eq.s32.totalorder %v292, %v3324
        %vm3390 = vcmp.eq.s32.totalorder %v292, %v3328
        %vm3391 = vcmp.eq.s32.totalorder %v293, %v3324
        %vm3392 = vcmp.eq.s32.totalorder %v293, %v3328
        %vm3393 = vcmp.eq.s32.totalorder %v294, %v3324
        %vm3394 = vcmp.eq.s32.totalorder %v294, %v3328
        %vm3395 = vcmp.eq.s32.totalorder %v295, %v3324
        %vm3396 = vcmp.eq.s32.totalorder %v295, %v3328
        %vm3397 = vcmp.eq.s32.totalorder %v296, %v3324
        %vm3398 = vcmp.eq.s32.totalorder %v296, %v3328
        %vm3399 = vcmp.eq.s32.totalorder %v297, %v3324
        %vm3400 = vcmp.eq.s32.totalorder %v297, %v3328
        %vm3401 = vcmp.eq.s32.totalorder %v298, %v3324
        %vm3402 = vcmp.eq.s32.totalorder %v298, %v3328
        %vm3403 = vcmp.eq.s32.totalorder %v299, %v3324
        %vm3404 = vcmp.eq.s32.totalorder %v299, %v3328
        %vm3405 = vcmp.eq.s32.totalorder %v300, %v3324
        %vm3406 = vcmp.eq.s32.totalorder %v300, %v3328
        %vm3407 = vcmp.eq.s32.totalorder %v301, %v3324
        %vm3408 = vcmp.eq.s32.totalorder %v301, %v3328
        %vm3409 = vcmp.eq.s32.totalorder %v302, %v3324
        %vm3410 = vcmp.eq.s32.totalorder %v302, %v3328
        %vm3411 = vcmp.eq.s32.totalorder %v303, %v3324
        %vm3412 = vcmp.eq.s32.totalorder %v303, %v3328
        %vm3413 = vcmp.eq.s32.totalorder %v304, %v3324
        %vm3414 = vcmp.eq.s32.totalorder %v304, %v3328
        %vm3415 = vcmp.eq.s32.totalorder %v305, %v3324
        %vm3416 = vcmp.eq.s32.totalorder %v305, %v3328
        %vm3417 = vcmp.eq.s32.totalorder %v306, %v3324
        %vm3418 = vcmp.eq.s32.totalorder %v306, %v3328
        %vm3419 = vcmp.eq.s32.totalorder %v307, %v3324
        %vm3420 = vcmp.eq.s32.totalorder %v307, %v3328
        %vm3421 = vcmp.eq.s32.totalorder %v308, %v3324
        %vm3422 = vcmp.eq.s32.totalorder %v308, %v3328
        %vm3423 = vcmp.eq.s32.totalorder %v309, %v3324
        %vm3424 = vcmp.eq.s32.totalorder %v309, %v3328
        %vm3425 = vcmp.eq.s32.totalorder %v310, %v3324
        %vm3426 = vcmp.eq.s32.totalorder %v310, %v3328
        %vm3427 = vcmp.eq.s32.totalorder %v311, %v3324
        %vm3428 = vcmp.eq.s32.totalorder %v311, %v3328
        %vm3429 = vcmp.eq.s32.totalorder %v312, %v3324
        %vm3430 = vcmp.eq.s32.totalorder %v312, %v3328
        %vm3431 = vcmp.eq.s32.totalorder %v313, %v3324
        %vm3432 = vcmp.eq.s32.totalorder %v313, %v3328
        %vm3433 = vcmp.eq.s32.totalorder %v314, %v3324
        %vm3434 = vcmp.eq.s32.totalorder %v314, %v3328
        %vm3435 = vcmp.eq.s32.totalorder %v315, %v3324
        %vm3436 = vcmp.eq.s32.totalorder %v315, %v3328
        %vm3437 = vcmp.eq.s32.totalorder %v316, %v3324
        %vm3438 = vcmp.eq.s32.totalorder %v316, %v3328
        %vm3439 = vcmp.eq.s32.totalorder %v317, %v3324
        %vm3440 = vcmp.eq.s32.totalorder %v317, %v3328
        %vm3441 = vcmp.eq.s32.totalorder %v318, %v3324
        %vm3442 = vcmp.eq.s32.totalorder %v318, %v3328
        %vm3443 = vcmp.eq.s32.totalorder %v319, %v3324
        %vm3444 = vcmp.eq.s32.totalorder %v319, %v3328
        %vm3445 = vcmp.eq.s32.totalorder %v320, %v3324
        %vm3446 = vcmp.eq.s32.totalorder %v320, %v3328
        %vm3447 = vcmp.eq.s32.totalorder %v321, %v3324
        %vm3448 = vcmp.eq.s32.totalorder %v321, %v3328
        %vm3449 = vcmp.eq.s32.totalorder %v322, %v3324
        %vm3450 = vcmp.eq.s32.totalorder %v322, %v3328
        %vm3451 = vcmp.eq.s32.totalorder %v323, %v3324
        %vm3452 = vcmp.eq.s32.totalorder %v323, %v3328
        %vm3453 = vcmp.eq.s32.totalorder %v324, %v3324
        %vm3454 = vcmp.eq.s32.totalorder %v324, %v3328
        %vm3455 = vcmp.eq.s32.totalorder %v325, %v3324
        %vm3456 = vcmp.eq.s32.totalorder %v325, %v3328
        %v3458 = vlaneseq
        %v3459 = vshrl.u32 %v3458, 7
        %v3460 = vsub.s32 0, %v3459
        %v3461 = vrot.slane %v3312, %v3460
        %v3462 = vlaneseq
        %v3463 = vshrl.u32 %v3462, 7
        %v3464 = vsub.s32 4, %v3463
        %v3465 = vrot.slane %v3312, %v3464
        %v3468 = vlaneseq
        %v3469 = vshrl.u32 %v3468, 7
        %v3470 = vsub.s32 0, %v3469
        %v3471 = vrot.slane %v3461, %v3470
        %v3472 = vlaneseq
        %v3473 = vshrl.u32 %v3472, 7
        %v3474 = vsub.s32 0, %v3473
        %v3475 = vrot.slane %v3465, %v3474
        %v3476 = vsel %vm3329, %v3471, 0.0
        %v3477 = vsel %vm3330, %v3475, 0.0
        %v3478 = vsel %vm3331, %v3471, 0.0
        %v3479 = vsel %vm3332, %v3475, 0.0
        %v3480 = vsel %vm3333, %v3471, 0.0
        %v3481 = vsel %vm3334, %v3475, 0.0
        %v3482 = vsel %vm3335, %v3471, 0.0
        %v3483 = vsel %vm3336, %v3475, 0.0
        %v3484 = vsel %vm3337, %v3471, 0.0
        %v3485 = vsel %vm3338, %v3475, 0.0
        %v3486 = vsel %vm3339, %v3471, 0.0
        %v3487 = vsel %vm3340, %v3475, 0.0
        %v3488 = vsel %vm3341, %v3471, 0.0
        %v3489 = vsel %vm3342, %v3475, 0.0
        %v3490 = vsel %vm3343, %v3471, 0.0
        %v3491 = vsel %vm3344, %v3475, 0.0
        %v3492 = vsel %vm3345, %v3471, 0.0
        %v3493 = vsel %vm3346, %v3475, 0.0
        %v3494 = vsel %vm3347, %v3471, 0.0
        %v3495 = vsel %vm3348, %v3475, 0.0
        %v3496 = vsel %vm3349, %v3471, 0.0
        %v3497 = vsel %vm3350, %v3475, 0.0
        %v3498 = vsel %vm3351, %v3471, 0.0
        %v3499 = vsel %vm3352, %v3475, 0.0
        %v3500 = vsel %vm3353, %v3471, 0.0
        %v3501 = vsel %vm3354, %v3475, 0.0
        %v3502 = vsel %vm3355, %v3471, 0.0
        %v3503 = vsel %vm3356, %v3475, 0.0
        %v3504 = vsel %vm3357, %v3471, 0.0
        %v3505 = vsel %vm3358, %v3475, 0.0
        %v3506 = vsel %vm3359, %v3471, 0.0
        %v3507 = vsel %vm3360, %v3475, 0.0
        %v3508 = vsel %vm3361, %v3471, 0.0
        %v3509 = vsel %vm3362, %v3475, 0.0
        %v3510 = vsel %vm3363, %v3471, 0.0
        %v3511 = vsel %vm3364, %v3475, 0.0
        %v3512 = vsel %vm3365, %v3471, 0.0
        %v3513 = vsel %vm3366, %v3475, 0.0
        %v3514 = vsel %vm3367, %v3471, 0.0
        %v3515 = vsel %vm3368, %v3475, 0.0
        %v3516 = vsel %vm3369, %v3471, 0.0
        %v3517 = vsel %vm3370, %v3475, 0.0
        %v3518 = vsel %vm3371, %v3471, 0.0
        %v3519 = vsel %vm3372, %v3475, 0.0
        %v3520 = vsel %vm3373, %v3471, 0.0
        %v3521 = vsel %vm3374, %v3475, 0.0
        %v3522 = vsel %vm3375, %v3471, 0.0
        %v3523 = vsel %vm3376, %v3475, 0.0
        %v3524 = vsel %vm3377, %v3471, 0.0
        %v3525 = vsel %vm3378, %v3475, 0.0
        %v3526 = vsel %vm3379, %v3471, 0.0
        %v3527 = vsel %vm3380, %v3475, 0.0
        %v3528 = vsel %vm3381, %v3471, 0.0
        %v3529 = vsel %vm3382, %v3475, 0.0
        %v3530 = vsel %vm3383, %v3471, 0.0
        %v3531 = vsel %vm3384, %v3475, 0.0
        %v3532 = vsel %vm3385, %v3471, 0.0
        %v3533 = vsel %vm3386, %v3475, 0.0
        %v3534 = vsel %vm3387, %v3471, 0.0
        %v3535 = vsel %vm3388, %v3475, 0.0
        %v3536 = vsel %vm3389, %v3471, 0.0
        %v3537 = vsel %vm3390, %v3475, 0.0
        %v3538 = vsel %vm3391, %v3471, 0.0
        %v3539 = vsel %vm3392, %v3475, 0.0
        %v3540 = vsel %vm3393, %v3471, 0.0
        %v3541 = vsel %vm3394, %v3475, 0.0
        %v3542 = vsel %vm3395, %v3471, 0.0
        %v3543 = vsel %vm3396, %v3475, 0.0
        %v3544 = vsel %vm3397, %v3471, 0.0
        %v3545 = vsel %vm3398, %v3475, 0.0
        %v3546 = vsel %vm3399, %v3471, 0.0
        %v3547 = vsel %vm3400, %v3475, 0.0
        %v3548 = vsel %vm3401, %v3471, 0.0
        %v3549 = vsel %vm3402, %v3475, 0.0
        %v3550 = vsel %vm3403, %v3471, 0.0
        %v3551 = vsel %vm3404, %v3475, 0.0
        %v3552 = vsel %vm3405, %v3471, 0.0
        %v3553 = vsel %vm3406, %v3475, 0.0
        %v3554 = vsel %vm3407, %v3471, 0.0
        %v3555 = vsel %vm3408, %v3475, 0.0
        %v3556 = vsel %vm3409, %v3471, 0.0
        %v3557 = vsel %vm3410, %v3475, 0.0
        %v3558 = vsel %vm3411, %v3471, 0.0
        %v3559 = vsel %vm3412, %v3475, 0.0
        %v3560 = vsel %vm3413, %v3471, 0.0
        %v3561 = vsel %vm3414, %v3475, 0.0
        %v3562 = vsel %vm3415, %v3471, 0.0
        %v3563 = vsel %vm3416, %v3475, 0.0
        %v3564 = vsel %vm3417, %v3471, 0.0
        %v3565 = vsel %vm3418, %v3475, 0.0
        %v3566 = vsel %vm3419, %v3471, 0.0
        %v3567 = vsel %vm3420, %v3475, 0.0
        %v3568 = vsel %vm3421, %v3471, 0.0
        %v3569 = vsel %vm3422, %v3475, 0.0
        %v3570 = vsel %vm3423, %v3471, 0.0
        %v3571 = vsel %vm3424, %v3475, 0.0
        %v3572 = vsel %vm3425, %v3471, 0.0
        %v3573 = vsel %vm3426, %v3475, 0.0
        %v3574 = vsel %vm3427, %v3471, 0.0
        %v3575 = vsel %vm3428, %v3475, 0.0
        %v3576 = vsel %vm3429, %v3471, 0.0
        %v3577 = vsel %vm3430, %v3475, 0.0
        %v3578 = vsel %vm3431, %v3471, 0.0
        %v3579 = vsel %vm3432, %v3475, 0.0
        %v3580 = vsel %vm3433, %v3471, 0.0
        %v3581 = vsel %vm3434, %v3475, 0.0
        %v3582 = vsel %vm3435, %v3471, 0.0
        %v3583 = vsel %vm3436, %v3475, 0.0
        %v3584 = vsel %vm3437, %v3471, 0.0
        %v3585 = vsel %vm3438, %v3475, 0.0
        %v3586 = vsel %vm3439, %v3471, 0.0
        %v3587 = vsel %vm3440, %v3475, 0.0
        %v3588 = vsel %vm3441, %v3471, 0.0
        %v3589 = vsel %vm3442, %v3475, 0.0
        %v3590 = vsel %vm3443, %v3471, 0.0
        %v3591 = vsel %vm3444, %v3475, 0.0
        %v3592 = vsel %vm3445, %v3471, 0.0
        %v3593 = vsel %vm3446, %v3475, 0.0
        %v3594 = vsel %vm3447, %v3471, 0.0
        %v3595 = vsel %vm3448, %v3475, 0.0
        %v3596 = vsel %vm3449, %v3471, 0.0
        %v3597 = vsel %vm3450, %v3475, 0.0
        %v3598 = vsel %vm3451, %v3471, 0.0
        %v3599 = vsel %vm3452, %v3475, 0.0
        %v3600 = vsel %vm3453, %v3471, 0.0
        %v3601 = vsel %vm3454, %v3475, 0.0
        %v3602 = vsel %vm3455, %v3471, 0.0
        %v3603 = vsel %vm3456, %v3475, 0.0
        %v3604 = vadd.f32 %v3182, %v3476
        %v3605 = vadd.f32 %v3183, %v3477
        %v3606 = vadd.f32 %v3184, %v3478
        %v3607 = vadd.f32 %v3185, %v3479
        %v3608 = vadd.f32 %v3186, %v3480
        %v3609 = vadd.f32 %v3187, %v3481
        %v3610 = vadd.f32 %v3188, %v3482
        %v3611 = vadd.f32 %v3189, %v3483
        %v3612 = vadd.f32 %v3190, %v3484
        %v3613 = vadd.f32 %v3191, %v3485
        %v3614 = vadd.f32 %v3192, %v3486
        %v3615 = vadd.f32 %v3193, %v3487
        %v3616 = vadd.f32 %v3194, %v3488
        %v3617 = vadd.f32 %v3195, %v3489
        %v3618 = vadd.f32 %v3196, %v3490
        %v3619 = vadd.f32 %v3197, %v3491
        %v3620 = vadd.f32 %v3198, %v3492
        %v3621 = vadd.f32 %v3199, %v3493
        %v3622 = vadd.f32 %v3200, %v3494
        %v3623 = vadd.f32 %v3201, %v3495
        %v3624 = vadd.f32 %v3202, %v3496
        %v3625 = vadd.f32 %v3203, %v3497
        %v3626 = vadd.f32 %v3204, %v3498
        %v3627 = vadd.f32 %v3205, %v3499
        %v3628 = vadd.f32 %v3206, %v3500
        %v3629 = vadd.f32 %v3207, %v3501
        %v3630 = vadd.f32 %v3208, %v3502
        %v3631 = vadd.f32 %v3209, %v3503
        %v3632 = vadd.f32 %v3210, %v3504
        %v3633 = vadd.f32 %v3211, %v3505
        %v3634 = vadd.f32 %v3212, %v3506
        %v3635 = vadd.f32 %v3213, %v3507
        %v3636 = vadd.f32 %v3214, %v3508
        %v3637 = vadd.f32 %v3215, %v3509
        %v3638 = vadd.f32 %v3216, %v3510
        %v3639 = vadd.f32 %v3217, %v3511
        %v3640 = vadd.f32 %v3218, %v3512
        %v3641 = vadd.f32 %v3219, %v3513
        %v3642 = vadd.f32 %v3220, %v3514
        %v3643 = vadd.f32 %v3221, %v3515
        %v3644 = vadd.f32 %v3222, %v3516
        %v3645 = vadd.f32 %v3223, %v3517
        %v3646 = vadd.f32 %v3224, %v3518
        %v3647 = vadd.f32 %v3225, %v3519
        %v3648 = vadd.f32 %v3226, %v3520
        %v3649 = vadd.f32 %v3227, %v3521
        %v3650 = vadd.f32 %v3228, %v3522
        %v3651 = vadd.f32 %v3229, %v3523
        %v3652 = vadd.f32 %v3230, %v3524
        %v3653 = vadd.f32 %v3231, %v3525
        %v3654 = vadd.f32 %v3232, %v3526
        %v3655 = vadd.f32 %v3233, %v3527
        %v3656 = vadd.f32 %v3234, %v3528
        %v3657 = vadd.f32 %v3235, %v3529
        %v3658 = vadd.f32 %v3236, %v3530
        %v3659 = vadd.f32 %v3237, %v3531
        %v3660 = vadd.f32 %v3238, %v3532
        %v3661 = vadd.f32 %v3239, %v3533
        %v3662 = vadd.f32 %v3240, %v3534
        %v3663 = vadd.f32 %v3241, %v3535
        %v3664 = vadd.f32 %v3242, %v3536
        %v3665 = vadd.f32 %v3243, %v3537
        %v3666 = vadd.f32 %v3244, %v3538
        %v3667 = vadd.f32 %v3245, %v3539
        %v3668 = vadd.f32 %v3246, %v3540
        %v3669 = vadd.f32 %v3247, %v3541
        %v3670 = vadd.f32 %v3248, %v3542
        %v3671 = vadd.f32 %v3249, %v3543
        %v3672 = vadd.f32 %v3250, %v3544
        %v3673 = vadd.f32 %v3251, %v3545
        %v3674 = vadd.f32 %v3252, %v3546
        %v3675 = vadd.f32 %v3253, %v3547
        %v3676 = vadd.f32 %v3254, %v3548
        %v3677 = vadd.f32 %v3255, %v3549
        %v3678 = vadd.f32 %v3256, %v3550
        %v3679 = vadd.f32 %v3257, %v3551
        %v3680 = vadd.f32 %v3258, %v3552
        %v3681 = vadd.f32 %v3259, %v3553
        %v3682 = vadd.f32 %v3260, %v3554
        %v3683 = vadd.f32 %v3261, %v3555
        %v3684 = vadd.f32 %v3262, %v3556
        %v3685 = vadd.f32 %v3263, %v3557
        %v3686 = vadd.f32 %v3264, %v3558
        %v3687 = vadd.f32 %v3265, %v3559
        %v3688 = vadd.f32 %v3266, %v3560
        %v3689 = vadd.f32 %v3267, %v3561
        %v3690 = vadd.f32 %v3268, %v3562
        %v3691 = vadd.f32 %v3269, %v3563
        %v3692 = vadd.f32 %v3270, %v3564
        %v3693 = vadd.f32 %v3271, %v3565
        %v3694 = vadd.f32 %v3272, %v3566
        %v3695 = vadd.f32 %v3273, %v3567
        %v3696 = vadd.f32 %v3274, %v3568
        %v3697 = vadd.f32 %v3275, %v3569
        %v3698 = vadd.f32 %v3276, %v3570
        %v3699 = vadd.f32 %v3277, %v3571
        %v3700 = vadd.f32 %v3278, %v3572
        %v3701 = vadd.f32 %v3279, %v3573
        %v3702 = vadd.f32 %v3280, %v3574
        %v3703 = vadd.f32 %v3281, %v3575
        %v3704 = vadd.f32 %v3282, %v3576
        %v3705 = vadd.f32 %v3283, %v3577
        %v3706 = vadd.f32 %v3284, %v3578
        %v3707 = vadd.f32 %v3285, %v3579
        %v3708 = vadd.f32 %v3286, %v3580
        %v3709 = vadd.f32 %v3287, %v3581
        %v3710 = vadd.f32 %v3288, %v3582
        %v3711 = vadd.f32 %v3289, %v3583
        %v3712 = vadd.f32 %v3290, %v3584
        %v3713 = vadd.f32 %v3291, %v3585
        %v3714 = vadd.f32 %v3292, %v3586
        %v3715 = vadd.f32 %v3293, %v3587
        %v3716 = vadd.f32 %v3294, %v3588
        %v3717 = vadd.f32 %v3295, %v3589
        %v3718 = vadd.f32 %v3296, %v3590
        %v3719 = vadd.f32 %v3297, %v3591
        %v3720 = vadd.f32 %v3298, %v3592
        %v3721 = vadd.f32 %v3299, %v3593
        %v3722 = vadd.f32 %v3300, %v3594
        %v3723 = vadd.f32 %v3301, %v3595
        %v3724 = vadd.f32 %v3302, %v3596
        %v3725 = vadd.f32 %v3303, %v3597
        %v3726 = vadd.f32 %v3304, %v3598
        %v3727 = vadd.f32 %v3305, %v3599
        %v3728 = vadd.f32 %v3306, %v3600
        %v3729 = vadd.f32 %v3307, %v3601
        %v3730 = vadd.f32 %v3308, %v3602
        %v3731 = vadd.f32 %v3309, %v3603
        %v3732 = vld [vmem:[%s191] sm:$0xff]
        %v3734 = vcombine.high %v3732, %v3732
        %v3736 = vunpack.c.l.s4 1983009808
        %v3737 = vunpack.c.0.s8 %v3736
        %v3738 = vlaneseq
        %v3739 = vshrl.u32 %v3738, 7
        %v3740 = vsub.s32 %v3737, %v3739
        %v3741 = vrot.slane %v3732, %v3740
        %v3743 = vunpack.c.l.s4 1983009808
        %v3744 = vunpack.c.0.s8 %v3743
        %v3745 = vlaneseq
        %v3746 = vshrl.u32 %v3745, 7
        %v3747 = vsub.s32 %v3744, %v3746
        %v3748 = vrot.slane %v3734, %v3747
        %v3749 = vcombine.high %v3741, %v3741
        %v3750 = vcombine.high %v3748, %v3748
        %3755 = vmatprep.subr.mxu0 %v3605
        %3756 = vmatpush1.msra.mxu0 %v3604
        %3757 = vmatprep.subr.mxu0 %v3607
        %3758 = vmatpush1.msra.mxu0 %v3606
        %3759 = vmatprep.subr.mxu0 %v3609
        %3760 = vmatpush1.msra.mxu0 %v3608
        %3761 = vmatprep.subr.mxu0 %v3611
        %3762 = vmatpush1.msra.mxu0 %v3610
        %3763 = vmatprep.subr.mxu0 %v3613
        %3764 = vmatpush1.msra.mxu0 %v3612
        %3765 = vmatprep.subr.mxu0 %v3615
        %3766 = vmatpush1.msra.mxu0 %v3614
        %3767 = vmatprep.subr.mxu0 %v3617
        %3768 = vmatpush1.msra.mxu0 %v3616
        %3769 = vmatprep.subr.mxu0 %v3619
        %3770 = vmatpush1.msra.mxu0 %v3618
        %3771 = vmatprep.subr.mxu0 %v3621
        %3772 = vmatpush1.msra.mxu0 %v3620
        %3773 = vmatprep.subr.mxu0 %v3623
        %3774 = vmatpush1.msra.mxu0 %v3622
        %3775 = vmatprep.subr.mxu0 %v3625
        %3776 = vmatpush1.msra.mxu0 %v3624
        %3777 = vmatprep.subr.mxu0 %v3627
        %3778 = vmatpush1.msra.mxu0 %v3626
        %3779 = vmatprep.subr.mxu0 %v3629
        %3780 = vmatpush1.msra.mxu0 %v3628
        %3781 = vmatprep.subr.mxu0 %v3631
        %3782 = vmatpush1.msra.mxu0 %v3630
        %3783 = vmatprep.subr.mxu0 %v3633
        %3784 = vmatpush1.msra.mxu0 %v3632
        %3785 = vmatprep.subr.mxu0 %v3635
        %3786 = vmatpush1.msra.mxu0 %v3634
        %3787 = vmatprep.subr.mxu0 %v3637
        %3788 = vmatpush1.msra.mxu0 %v3636
        %3789 = vmatprep.subr.mxu0 %v3639
        %3790 = vmatpush1.msra.mxu0 %v3638
        %3791 = vmatprep.subr.mxu0 %v3641
        %3792 = vmatpush1.msra.mxu0 %v3640
        %3793 = vmatprep.subr.mxu0 %v3643
        %3794 = vmatpush1.msra.mxu0 %v3642
        %3795 = vmatprep.subr.mxu0 %v3645
        %3796 = vmatpush1.msra.mxu0 %v3644
        %3797 = vmatprep.subr.mxu0 %v3647
        %3798 = vmatpush1.msra.mxu0 %v3646
        %3799 = vmatprep.subr.mxu0 %v3649
        %3800 = vmatpush1.msra.mxu0 %v3648
        %3801 = vmatprep.subr.mxu0 %v3651
        %3802 = vmatpush1.msra.mxu0 %v3650
        %3803 = vmatprep.subr.mxu0 %v3653
        %3804 = vmatpush1.msra.mxu0 %v3652
        %3805 = vmatprep.subr.mxu0 %v3655
        %3806 = vmatpush1.msra.mxu0 %v3654
        %3807 = vmatprep.subr.mxu0 %v3657
        %3808 = vmatpush1.msra.mxu0 %v3656
        %3809 = vmatprep.subr.mxu0 %v3659
        %3810 = vmatpush1.msra.mxu0 %v3658
        %3811 = vmatprep.subr.mxu0 %v3661
        %3812 = vmatpush1.msra.mxu0 %v3660
        %3813 = vmatprep.subr.mxu0 %v3663
        %3814 = vmatpush1.msra.mxu0 %v3662
        %3815 = vmatprep.subr.mxu0 %v3665
        %3816 = vmatpush1.msra.mxu0 %v3664
        %3817 = vmatprep.subr.mxu0 %v3667
        %3818 = vmatpush1.msra.mxu0 %v3666
        %3819 = vmatprep.mubr.f32.mxu0 %v3749
        %3820 = vmatmul.mubr.f32.gmra.mrb[0].mxu0 %v3741
        %v3821 = vpop.f32.mrb[0].mxu0
        %v3822 = vadd.f32 0.0, %v3821
        %v3823 = vpop.f32.mrb[0].mxu0
        %v3824 = vadd.f32 0.0, %v3823
        %3825 = vdwg.mxu0
        %3826 = vmatprep.subr.mxu0 %v3669
        %3827 = vmatpush1.msra.mxu0 %v3668
        %3828 = vmatprep.subr.mxu0 %v3671
        %3829 = vmatpush1.msra.mxu0 %v3670
        %3830 = vmatprep.subr.mxu0 %v3673
        %3831 = vmatpush1.msra.mxu0 %v3672
        %3832 = vmatprep.subr.mxu0 %v3675
        %3833 = vmatpush1.msra.mxu0 %v3674
        %3834 = vmatprep.subr.mxu0 %v3677
        %3835 = vmatpush1.msra.mxu0 %v3676
        %3836 = vmatprep.subr.mxu0 %v3679
        %3837 = vmatpush1.msra.mxu0 %v3678
        %3838 = vmatprep.subr.mxu0 %v3681
        %3839 = vmatpush1.msra.mxu0 %v3680
        %3840 = vmatprep.subr.mxu0 %v3683
        %3841 = vmatpush1.msra.mxu0 %v3682
        %3842 = vmatprep.subr.mxu0 %v3685
        %3843 = vmatpush1.msra.mxu0 %v3684
        %3844 = vmatprep.subr.mxu0 %v3687
        %3845 = vmatpush1.msra.mxu0 %v3686
        %3846 = vmatprep.subr.mxu0 %v3689
        %3847 = vmatpush1.msra.mxu0 %v3688
        %3848 = vmatprep.subr.mxu0 %v3691
        %3849 = vmatpush1.msra.mxu0 %v3690
        %3850 = vmatprep.subr.mxu0 %v3693
        %3851 = vmatpush1.msra.mxu0 %v3692
        %3852 = vmatprep.subr.mxu0 %v3695
        %3853 = vmatpush1.msra.mxu0 %v3694
        %3854 = vmatprep.subr.mxu0 %v3697
        %3855 = vmatpush1.msra.mxu0 %v3696
        %3856 = vmatprep.subr.mxu0 %v3699
        %3857 = vmatpush1.msra.mxu0 %v3698
        %3858 = vmatprep.subr.mxu0 %v3701
        %3859 = vmatpush1.msra.mxu0 %v3700
        %3860 = vmatprep.subr.mxu0 %v3703
        %3861 = vmatpush1.msra.mxu0 %v3702
        %3862 = vmatprep.subr.mxu0 %v3705
        %3863 = vmatpush1.msra.mxu0 %v3704
        %3864 = vmatprep.subr.mxu0 %v3707
        %3865 = vmatpush1.msra.mxu0 %v3706
        %3866 = vmatprep.subr.mxu0 %v3709
        %3867 = vmatpush1.msra.mxu0 %v3708
        %3868 = vmatprep.subr.mxu0 %v3711
        %3869 = vmatpush1.msra.mxu0 %v3710
        %3870 = vmatprep.subr.mxu0 %v3713
        %3871 = vmatpush1.msra.mxu0 %v3712
        %3872 = vmatprep.subr.mxu0 %v3715
        %3873 = vmatpush1.msra.mxu0 %v3714
        %3874 = vmatprep.subr.mxu0 %v3717
        %3875 = vmatpush1.msra.mxu0 %v3716
        %3876 = vmatprep.subr.mxu0 %v3719
        %3877 = vmatpush1.msra.mxu0 %v3718
        %3878 = vmatprep.subr.mxu0 %v3721
        %3879 = vmatpush1.msra.mxu0 %v3720
        %3880 = vmatprep.subr.mxu0 %v3723
        %3881 = vmatpush1.msra.mxu0 %v3722
        %3882 = vmatprep.subr.mxu0 %v3725
        %3883 = vmatpush1.msra.mxu0 %v3724
        %3884 = vmatprep.subr.mxu0 %v3727
        %3885 = vmatpush1.msra.mxu0 %v3726
        %3886 = vmatprep.subr.mxu0 %v3729
        %3887 = vmatpush1.msra.mxu0 %v3728
        %3888 = vmatprep.subr.mxu0 %v3731
        %3889 = vmatpush1.msra.mxu0 %v3730
        %3890 = vmatprep.mubr.f32.mxu0 %v3750
        %3891 = vmatmul.mubr.f32.gmra.mrb[0].mxu0 %v3748
        %v3892 = vpop.f32.mrb[0].mxu0
        %v3893 = vadd.f32 %v3822, %v3892
        %v3894 = vpop.f32.mrb[0].mxu0
        %v3895 = vadd.f32 %v3824, %v3894
        %3896 = vdwg.mxu0
        %v3899 = vcombine.low %v3893, %v3895
        %v3901 = vunpack.c.l.s4 1983009808
        %v3902 = vunpack.c.0.s8 %v3901
        %v3903 = vlaneseq
        %v3904 = vshrl.u32 %v3903, 7
        %v3905 = vsub.s32 %v3902, %v3904
        %v3906 = vrot.slane %v3899, %v3905
        %3908 = vst [vmem:[%s216] sm:$0xf] %v3906
        %s3909 = sand.u32 %s101, 1
        %s3910 = scalar_lea.sflag [#allocation6], %s3909
        %s3911 = sand.u32 %s101, 1
        %s3912 = smul.addr %s3911, 4
        %s3913 = scalar_lea.vmem [#allocation9], %s3912
        // Predicated region
        $region37: #{tpu_custom_call.1} parent=27 // pred_check
          %p3914 = pneg %p111
        $region38: #{tpu_custom_call.1} parent=27 // pred_check_branch
          %3916 = sbr.rel (%p3914) target = $region40
        $region39: #{tpu_custom_call.1} parent=27 // pred_region
          %s3917 = smul.u32 2, %s32
          %s3919 = ssub.s32 64, 64
          %3920 = vsyncadd %s3910, %s3919
          %s3921 = smul.addr %s31, 4
          %s3922 = sadd.s32 %s3917, %s3921
          %s3923 = smul.addr %s3922, 32
          %s3924 = scalar_lea.hbm %s3, %s3923
          %s3926 = sshll.u32 %s3913, 4
          %s3927 = int_to_ptr.vmem [resolvable:$true] %s3926
          %3929 = dma.vmem_to_hbm [thread:$0]  %s3927, 64, %s3924, %s3910
        $region40: #{tpu_custom_call.1} parent=27 // pred_fallthru
          _
      $region28: #{tpu_custom_call.1} parent=5 // pred_fallthru
        _
      %p3930 = scmp.le.s32.totalorder 2, %s22
      // Predicated region
      $region41: #{tpu_custom_call.1} parent=5 // pred_check
        %p3931 = pneg %p3930
      $region42: #{tpu_custom_call.1} parent=5 // pred_check_branch
        %3933 = sbr.rel (%p3931) target = $region44
      $region43: #{tpu_custom_call.1} parent=5 // pred_region
        %s3934 = ssub.s32 %s22, 2
        // Predicated region
        $region45: #{tpu_custom_call.1} parent=43 // pred_check
          %p3935 = pneg %p117
        $region46: #{tpu_custom_call.1} parent=43 // pred_check_branch
          %3937 = sbr.rel (%p3935) target = $region48
        $region47: #{tpu_custom_call.1} parent=43 // pred_region
          %s3938 = sand.u32 %s102, 1
          %s3939 = scalar_lea.sflag [#allocation6], %s3938
          %s3940 = sand.u32 %s102, 1
          %s3941 = smul.addr %s3940, 4
          %s3942 = scalar_lea.vmem [#allocation9], %s3941
          %3943 = dma.done %s3939, 64
        $region48: #{tpu_custom_call.1} parent=43 // pred_fallthru
          _
      $region44: #{tpu_custom_call.1} parent=5 // pred_fallthru
        _
    $region6: #{tpu_custom_call.1} parent=1 // loop_footer
      %s26 = sadd.s32 1, %s22
    $region7: #{tpu_custom_call.1} parent=1 // loop_footer_branch
      %21 = sbr.rel target = $region3
    $region8: #{tpu_custom_call.1} parent=1 // loop_exit
      _
    %3944 = vsyncpa [#allocation5], 1
    %s3945 = scalar_lea.sflag [#allocation5], 1
    %3946 = vsyncpa %s3945, 1
    %3947 = vsyncpa [#allocation8], 1
    %s3948 = scalar_lea.sflag [#allocation8], 1
    %3949 = vsyncpa %s3948, 1
    %3950 = vsyncpa [#allocation6], 1
    %s3951 = scalar_lea.sflag [#allocation6], 1
    %3952 = vsyncpa %s3951, 1

</llo_original>
